<compile_context>
chip_gen: v6e
topology: v6e:2x2x1
jax: 0.10.0
libtpu: 0.0.40
codegen_flags: <defaults>
</compile_context>

<pallas_src>
import functools

import jax
import jax.numpy as jnp
import numpy as np
from jax.experimental import pallas as pl
from jax.experimental.pallas import tpu as pltpu


def _round_up(x, m):
    return (x + m - 1) // m * m


# ----------------------------------------------------------------------------
# Fused kernel: bottom MLP + embedding bag-sums + 'dot' interaction + top MLP
# ----------------------------------------------------------------------------
def _dlrm_fused_kernel(xd_ref, idx_ref, tbl_ref, sel_l_ref, sel_r_ref, ones_ref,
                       *refs, bot_acts, top_acts, n_tables, bag_len):
    """One batch tile of the whole DLRM forward.

    refs = (bot w0, b0, ..., top w0, b0, ..., out_ref).  Weights / tables /
    selection matrices use constant index_maps -> resident in VMEM across the
    batch-tile grid.  Matmul operands bf16, accumulation f32, elementwise f32.
    """
    o_ref = refs[-1]
    wb = refs[:-1]
    n_bot = len(bot_acts)

    def mlp_layer(h, w_ref, b_ref, act):
        y = jnp.dot(h.astype(jnp.bfloat16), w_ref[...],
                    preferred_element_type=jnp.float32) + b_ref[...]
        if act == "relu":
            return jnp.maximum(y, 0.0)
        if act == "sigmoid":
            return jax.nn.sigmoid(y)
        return y

    # ---- bottom MLP ----
    h = xd_ref[...]                                   # (bt, n_in_pad) f32
    for l, act in enumerate(bot_acts):
        h = mlp_layer(h, wb[2 * l], wb[2 * l + 1], act)
    x = h                                             # (bt, d) f32

    # ---- EmbeddingBag(mode='sum'), fused: counts @ table on the MXU ----
    # counts[b, r] = #{l : idx[b, l] == r} (handles duplicate bag indices);
    # zero-padded table rows are unreachable.
    # TODO(synk): for production-size tables (VMEM overflow, esp. v7x 64 MiB)
    #             switch to a scalar-prefetched DMA row-gather
    #             (memory_space=pl.ANY + pltpu.make_async_copy, double-buffered).
    bt = x.shape[0]
    n_rows = tbl_ref.shape[1]
    row_iota = jax.lax.broadcasted_iota(jnp.int32, (bt, n_rows), 1)

    feats = [x]
    for t in range(n_tables):                         # nt small & static
        idx_t = idx_ref[t]                            # (bt, L) int32
        counts = jnp.zeros((bt, n_rows), jnp.float32)
        for l in range(bag_len):                      # short, full-vreg compares
            counts = counts + (row_iota == idx_t[:, l:l + 1]).astype(jnp.float32)
        feats.append(jnp.dot(counts.astype(jnp.bfloat16), tbl_ref[t],
                             preferred_element_type=jnp.float32))   # (bt, d)

    # ---- 'dot' interaction, strict lower triangle (itself=False) ----
    # Packed slab T (bt, nf*d); paired operand slabs via two 0/1 selection
    # matmuls (MXU, no per-pair lane concat); ONE VPU multiply; d-wise
    # reduction via a block-diagonal ones matmul (MXU, not XLU).
    # TODO(synk): at production nf (~27) replace the selection/block-diag path
    #             with an MXU-tiled gram matmul Z = T . T^T (O(bt*nf^2*d)).
    T = jnp.concatenate(feats, axis=-1).astype(jnp.bfloat16)        # (bt, nf*d)
    left = jnp.dot(T, sel_l_ref[...], preferred_element_type=jnp.float32)
    right = jnp.dot(T, sel_r_ref[...], preferred_element_type=jnp.float32)
    prods = (left * right).astype(jnp.bfloat16)                     # (bt, n_pairs*d)
    zflat = jnp.dot(prods, ones_ref[...],
                    preferred_element_type=jnp.float32)             # (bt, n_pairs_pad)

    h = jnp.concatenate([x, zflat], axis=-1)          # (bt, d + n_pairs_pad)

    # ---- top MLP (sigmoid on configured layer; last layer 128-lane padded) ----
    off = 2 * n_bot
    for l, act in enumerate(top_acts):
        h = mlp_layer(h, wb[off + 2 * l], wb[off + 2 * l + 1], act)

    o_ref[...] = h.astype(o_ref.dtype)


def dlrm_fused_forward(prep, dense_x, idx_stacked, *, block_batch=128):
    B = dense_x.shape[0]
    nt, B2, L = idx_stacked.shape
    assert B2 == B and nt == prep["nt"]
    n_in, n_in_pad = prep["n_in"], prep["n_in_pad"]
    if n_in_pad != n_in:
        dense_x = jnp.pad(dense_x, ((0, 0), (0, n_in_pad - n_in)))

    bt = min(block_batch, B)
    assert B % bt == 0

    bot_acts = tuple(a for (_, _, a) in prep["bot"])
    top_acts = tuple(a for (_, _, a) in prep["top"])
    n_out_pad = prep["n_final_pad"]

    # TODO(synk): at production sizes set vmem_limit_bytes and single-buffer
    #             (pipeline_mode=pl.Buffered(1)) the constant-index resident
    #             weight/table blocks, esp. for v7x's 64 MiB VMEM.
    in_specs = [
        pl.BlockSpec((bt, n_in_pad), lambda i: (i, 0)),               # dense feats
        pl.BlockSpec((nt, bt, L), lambda i: (0, i, 0)),               # bag indices
        pl.BlockSpec(prep["tables"].shape, lambda i: (0, 0, 0)),      # tables (resident)
        pl.BlockSpec(prep["sel_left"].shape, lambda i: (0, 0)),       # resident
        pl.BlockSpec(prep["sel_right"].shape, lambda i: (0, 0)),      # resident
        pl.BlockSpec(prep["ones_blk"].shape, lambda i: (0, 0)),       # resident
    ]
    args = [dense_x, idx_stacked, prep["tables"],
            prep["sel_left"], prep["sel_right"], prep["ones_blk"]]
    for (w, b, _) in prep["bot"] + prep["top"]:
        in_specs.append(pl.BlockSpec(w.shape, lambda i: (0, 0)))      # resident
        in_specs.append(pl.BlockSpec(b.shape, lambda i: (0, 0)))      # resident
        args.append(w)
        args.append(b)

    kernel = functools.partial(
        _dlrm_fused_kernel,
        bot_acts=bot_acts, top_acts=top_acts, n_tables=nt, bag_len=L)

    return pl.pallas_call(
        kernel,
        grid=(B // bt,),
        in_specs=in_specs,
        out_specs=pl.BlockSpec((bt, n_out_pad), lambda i: (i, 0)),
        out_shape=jax.ShapeDtypeStruct((B, n_out_pad), jnp.float32),
        compiler_params=pltpu.CompilerParams(
            dimension_semantics=("parallel",)),
    )(*args)


# ----------------------------------------------------------------------------
# One-time model setup (hoisted out of the forward hot path)
# ----------------------------------------------------------------------------
def prepare_dlrm(bot_layers, tables, top_layers):
    """Stack/pad tables, build interaction constants, cast/pad weights. Once."""
    d = int(tables[0].shape[1])
    nt = len(tables)
    nf = nt + 1
    n_pairs = nf * (nf - 1) // 2
    n_in = int(bot_layers[0][0].shape[0])

    # embedding tables: stack, zero-pad rows to a common 8-aligned count, bf16
    n_rows_pad = _round_up(max(int(t.shape[0]) for t in tables), 8)
    tables_stacked = jnp.stack(
        [jnp.pad(t, ((0, n_rows_pad - t.shape[0]), (0, 0))) for t in tables],
        axis=0).astype(jnp.bfloat16)

    # pair ordering matches torch lij: (i, j) for i in range(nf) for j in range(i)
    pairs = [(i, j) for i in range(nf) for j in range(i)]
    sel_l = np.zeros((nf * d, n_pairs * d), np.float32)
    sel_r = np.zeros((nf * d, n_pairs * d), np.float32)
    eye_d = np.eye(d, dtype=np.float32)
    for p, (i, j) in enumerate(pairs):
        sel_l[i * d:(i + 1) * d, p * d:(p + 1) * d] = eye_d
        sel_r[j * d:(j + 1) * d, p * d:(p + 1) * d] = eye_d

    # pad contraction dims to multiples of 16 (bf16 sublane packing)
    n_in_pad = _round_up(n_in, 16)
    top_in = d + n_pairs
    top_in_pad = _round_up(top_in, 16)
    n_pairs_pad = top_in_pad - d                      # >= n_pairs, extra cols zero

    ones_blk = np.zeros((n_pairs * d, n_pairs_pad), np.float32)
    for p in range(n_pairs):
        ones_blk[p * d:(p + 1) * d, p] = 1.0

    def cast_layer(w, b, act, row_pad=0, col_pad=0):
        if row_pad:
            w = jnp.pad(w, ((0, row_pad), (0, 0)))
        if col_pad:
            w = jnp.pad(w, ((0, 0), (0, col_pad)))
            b = jnp.pad(b, (0, col_pad))
        return (w.astype(jnp.bfloat16),
                b.reshape(1, -1).astype(jnp.float32), act)

    bot = []
    for li, (w, b, act) in enumerate(bot_layers):
        bot.append(cast_layer(w, b, act,
                              row_pad=(n_in_pad - n_in) if li == 0 else 0))

    # final top layer padded to 128-lane-dense output (sliced back in wrapper)
    # TODO(synk): for very large B consider a bf16 padded output slab as well.
    n_final = int(top_layers[-1][0].shape[1])
    n_final_pad = _round_up(n_final, 128)
    top = []
    n_top = len(top_layers)
    for li, (w, b, act) in enumerate(top_layers):
        rp = (top_in_pad - top_in) if li == 0 else 0
        cp = (n_final_pad - n_final) if li == n_top - 1 else 0
        top.append(cast_layer(w, b, act, row_pad=rp, col_pad=cp))

    return dict(
        tables=tables_stacked,
        sel_left=jnp.asarray(sel_l, jnp.bfloat16),
        sel_right=jnp.asarray(sel_r, jnp.bfloat16),
        ones_blk=jnp.asarray(ones_blk, jnp.bfloat16),
        bot=bot, top=top,
        d=d, nt=nt, n_pairs=n_pairs, n_pairs_pad=n_pairs_pad,
        n_in=n_in, n_in_pad=n_in_pad,
        n_final=n_final, n_final_pad=n_final_pad,
    )


def dlrm_forward(prep, dense_x, idx_stacked, loss_threshold=0.0,
                 block_batch=128):
    out_pad = dlrm_fused_forward(prep, dense_x, idx_stacked,
                                 block_batch=block_batch)
    p = out_pad[:, :prep["n_final"]]
    if 0.0 < loss_threshold < 1.0:
        p = jnp.clip(p, loss_threshold, 1.0 - loss_threshold)
    return p


# ----------------------------------------------------------------------------
# Parameter construction (deterministic, mirrors the PyTorch __init__ shapes)
# ----------------------------------------------------------------------------
def make_mlp_params(key, ln, sigmoid_layer):
    layers = []
    for i in range(len(ln) - 1):
        n, m = int(ln[i]), int(ln[i + 1])
        key, kw, kb = jax.random.split(key, 3)
        std_w = np.sqrt(2.0 / (m + n))
        std_b = np.sqrt(1.0 / m)
        w_t = jax.random.normal(kw, (m, n), jnp.float32) * std_w   # torch (m, n)
        b = jax.random.normal(kb, (m,), jnp.float32) * std_b
        act = "sigmoid" if i == sigmoid_layer else "relu"
        layers.append((w_t.T, b, act))  # store transposed: (n_in, n_out)
    return layers, key


def make_emb_params(key, m_spa, ln_emb):
    tables = []
    for n in ln_emb:
        key, kt = jax.random.split(key)
        bound = np.sqrt(1.0 / n)
        tables.append(
            jax.random.uniform(kt, (n, m_spa), jnp.float32, -bound, bound))
    return tables, key


# ----------------------------------------------------------------------------
# Pure-JAX reference for verification (f32 throughout)
# ----------------------------------------------------------------------------
def reference_forward(bot_layers, tables, top_layers, dense_x, sparse_idx_list):
    def mlp(x, layers):
        for w, b, act in layers:
            x = x @ w + b
            x = jax.nn.sigmoid(x) if act == "sigmoid" else jnp.maximum(x, 0.0)
        return x

    x = mlp(dense_x, bot_layers)
    ly = [tbl[idx].sum(axis=1) for tbl, idx in zip(tables, sparse_idx_list)]
    T = jnp.concatenate([x[:, None, :]] + [y[:, None, :] for y in ly], axis=1)
    Z = jnp.einsum("bfd,bgd->bfg", T, T)
    nf = T.shape[1]
    pairs = [(i, j) for i in range(nf) for j in range(i)]
    Zflat = jnp.stack([Z[:, i, j] for (i, j) in pairs], axis=1)
    R = jnp.concatenate([x, Zflat], axis=1)
    return mlp(R, top_layers)


# ----------------------------------------------------------------------------
if __name__ == "__main__":
    # small DLRM config
    B = 256                    # batch size -> two 128-row "parallel" grid tiles
    m_spa = 16                 # embedding dim (== bottom MLP output dim)
    ln_emb = [64, 96, 128]     # embedding table sizes
    ln_bot = [13, 32, 16]      # bottom MLP
    n_feat = 1 + len(ln_emb)   # dense + sparse features for interaction
    n_int = n_feat * (n_feat - 1) // 2
    ln_top = [m_spa + n_int, 32, 1]   # top MLP, sigmoid on last layer
    bag_len = 4
    block_batch = 128          # keeps 2 parallel tiles (v7x dual-TC); use 256 for v6e big-B

    key = jax.random.PRNGKey(0)
    bot_layers, key = make_mlp_params(key, ln_bot, sigmoid_layer=-1)
    top_layers, key = make_mlp_params(key, ln_top, sigmoid_layer=len(ln_top) - 2)
    tables, key = make_emb_params(key, m_spa, ln_emb)

    # one-time model setup (hoisted out of the forward hot path)
    prep = prepare_dlrm(bot_layers, tables, top_layers)

    key, kx = jax.random.split(key)
    dense_x = jax.random.normal(kx, (B, ln_bot[0]), jnp.float32)
    sparse_idx_list = []
    for n in ln_emb:
        key, ki = jax.random.split(key)
        sparse_idx_list.append(
            jax.random.randint(ki, (B, bag_len), 0, n, dtype=jnp.int32))
    idx_stacked = jnp.stack(sparse_idx_list, axis=0).astype(jnp.int32)  # (nt,B,L)

    out = dlrm_forward(prep, dense_x, idx_stacked, block_batch=block_batch)
    out = jax.block_until_ready(out)

    ref = reference_forward(bot_layers, tables, top_layers, dense_x,
                            sparse_idx_list)
    ref = jax.block_until_ready(ref)

    assert out.shape == (B, 1), out.shape
    assert bool(jnp.all(jnp.isfinite(out)))
    np.testing.assert_allclose(np.asarray(out), np.asarray(ref),
                               rtol=2e-2, atol=2e-2)

    print("KERNEL_OK")
</pallas_src>

<mosaic_0001>
module attributes {stable_mosaic.version = 11 : i64} {
  func.func @_dlrm_fused_kernel(%arg0: i32, %arg1: memref<128x16xf32, #tpu.memory_space<vmem>>, %arg2: memref<3x128x4xi32, #tpu.memory_space<vmem>>, %arg3: memref<3x128x16xbf16, #tpu.memory_space<vmem>>, %arg4: memref<64x96xbf16, #tpu.memory_space<vmem>>, %arg5: memref<64x96xbf16, #tpu.memory_space<vmem>>, %arg6: memref<96x16xbf16, #tpu.memory_space<vmem>>, %arg7: memref<16x32xbf16, #tpu.memory_space<vmem>>, %arg8: memref<1x32xf32, #tpu.memory_space<vmem>>, %arg9: memref<32x16xbf16, #tpu.memory_space<vmem>>, %arg10: memref<1x16xf32, #tpu.memory_space<vmem>>, %arg11: memref<32x32xbf16, #tpu.memory_space<vmem>>, %arg12: memref<1x32xf32, #tpu.memory_space<vmem>>, %arg13: memref<32x128xbf16, #tpu.memory_space<vmem>>, %arg14: memref<1x128xf32, #tpu.memory_space<vmem>>, %arg15: memref<128x128xf32, #tpu.memory_space<vmem>>) attributes {dimension_semantics = [#tpu.dimension_semantics<parallel>], iteration_bounds = array<i64: 2>, scalar_prefetch = 0 : i64, scratch_operands = 0 : i64, tpu.core_type = #tpu.core_type<tc>, window_params = [{transform_indices = @transform_0, window_bounds = array<i64: 128, 16>}, {transform_indices = @transform_1, window_bounds = array<i64: 3, 128, 4>}, {pipeline_mode = #tpu.pipeline_mode<synchronous>, transform_indices = @transform_2, window_bounds = array<i64: 3, 128, 16>}, {pipeline_mode = #tpu.pipeline_mode<synchronous>, transform_indices = @transform_3, window_bounds = array<i64: 64, 96>}, {pipeline_mode = #tpu.pipeline_mode<synchronous>, transform_indices = @transform_4, window_bounds = array<i64: 64, 96>}, {pipeline_mode = #tpu.pipeline_mode<synchronous>, transform_indices = @transform_5, window_bounds = array<i64: 96, 16>}, {pipeline_mode = #tpu.pipeline_mode<synchronous>, transform_indices = @transform_6, window_bounds = array<i64: 16, 32>}, {pipeline_mode = #tpu.pipeline_mode<synchronous>, transform_indices = @transform_7, window_bounds = array<i64: 1, 32>}, {pipeline_mode = #tpu.pipeline_mode<synchronous>, transform_indices = @transform_8, window_bounds = array<i64: 32, 16>}, {pipeline_mode = #tpu.pipeline_mode<synchronous>, transform_indices = @transform_9, window_bounds = array<i64: 1, 16>}, {pipeline_mode = #tpu.pipeline_mode<synchronous>, transform_indices = @transform_10, window_bounds = array<i64: 32, 32>}, {pipeline_mode = #tpu.pipeline_mode<synchronous>, transform_indices = @transform_11, window_bounds = array<i64: 1, 32>}, {pipeline_mode = #tpu.pipeline_mode<synchronous>, transform_indices = @transform_12, window_bounds = array<i64: 32, 128>}, {pipeline_mode = #tpu.pipeline_mode<synchronous>, transform_indices = @transform_13, window_bounds = array<i64: 1, 128>}, {transform_indices = @transform_14, window_bounds = array<i64: 128, 128>}]} {
    %c0 = arith.constant 0 : index
    %c0_0 = arith.constant 0 : index
    %0 = vector.load %arg1[%c0, %c0_0] : memref<128x16xf32, #tpu.memory_space<vmem>>, vector<128x16xf32>
    %1 = arith.truncf %0 : vector<128x16xf32> to vector<128x16xbf16>
    %c0_1 = arith.constant 0 : index
    %c0_2 = arith.constant 0 : index
    %2 = vector.load %arg7[%c0_1, %c0_2] : memref<16x32xbf16, #tpu.memory_space<vmem>>, vector<16x32xbf16>
    %cst = arith.constant dense<0.000000e+00> : vector<128x32xf32>
    %3 = tpu.matmul %1, %2, %cst {dimension_numbers = #tpu.dot_dimension_numbers<[1], [0], [0], [1], [0, 0, 1, 1], [], []>} : vector<128x16xbf16>, vector<16x32xbf16>, vector<128x32xf32> -> vector<128x32xf32>
    %c0_3 = arith.constant 0 : index
    %c0_4 = arith.constant 0 : index
    %4 = vector.load %arg8[%c0_3, %c0_4] : memref<1x32xf32, #tpu.memory_space<vmem>>, vector<1x32xf32>
    %5 = vector.broadcast %4 : vector<1x32xf32> to vector<128x32xf32>
    %6 = arith.addf %3, %5 : vector<128x32xf32>
    %cst_5 = arith.constant 0.000000e+00 : f32
    %7 = vector.broadcast %cst_5 : f32 to vector<128x32xf32>
    %8 = arith.maximumf %6, %7 : vector<128x32xf32>
    %9 = arith.truncf %8 : vector<128x32xf32> to vector<128x32xbf16>
    %c0_6 = arith.constant 0 : index
    %c0_7 = arith.constant 0 : index
    %10 = vector.load %arg9[%c0_6, %c0_7] : memref<32x16xbf16, #tpu.memory_space<vmem>>, vector<32x16xbf16>
    %cst_8 = arith.constant dense<0.000000e+00> : vector<128x16xf32>
    %11 = tpu.matmul %9, %10, %cst_8 {dimension_numbers = #tpu.dot_dimension_numbers<[1], [0], [0], [1], [0, 0, 1, 1], [], []>} : vector<128x32xbf16>, vector<32x16xbf16>, vector<128x16xf32> -> vector<128x16xf32>
    %c0_9 = arith.constant 0 : index
    %c0_10 = arith.constant 0 : index
    %12 = vector.load %arg10[%c0_9, %c0_10] : memref<1x16xf32, #tpu.memory_space<vmem>>, vector<1x16xf32>
    %13 = vector.broadcast %12 : vector<1x16xf32> to vector<128x16xf32>
    %14 = arith.addf %11, %13 : vector<128x16xf32>
    %cst_11 = arith.constant 0.000000e+00 : f32
    %15 = vector.broadcast %cst_11 : f32 to vector<128x16xf32>
    %16 = arith.maximumf %14, %15 : vector<128x16xf32>
    %17 = tpu.iota {dimensions = array<i32: 1>} : vector<128x128xi32>
    %c0_12 = arith.constant 0 : index
    %c0_13 = arith.constant 0 : index
    %c0_14 = arith.constant 0 : index
    %18 = vector.load %arg2[%c0_12, %c0_13, %c0_14] : memref<3x128x4xi32, #tpu.memory_space<vmem>>, vector<1x128x4xi32>
    %19 = vector.shape_cast %18 : vector<1x128x4xi32> to vector<128x4xi32>
    %cst_15 = arith.constant 0.000000e+00 : f32
    %20 = vector.broadcast %cst_15 : f32 to vector<128x128xf32>
    %21 = vector.extract_strided_slice %19 {offsets = [0, 0], sizes = [128, 1], strides = [1, 1]} : vector<128x4xi32> to vector<128x1xi32>
    %22 = vector.broadcast %21 : vector<128x1xi32> to vector<128x128xi32>
    %23 = arith.cmpi eq, %17, %22 : vector<128x128xi32>
    %24 = arith.extui %23 : vector<128x128xi1> to vector<128x128xi32>
    %25 = arith.sitofp %24 : vector<128x128xi32> to vector<128x128xf32>
    %26 = arith.addf %20, %25 : vector<128x128xf32>
    %27 = vector.extract_strided_slice %19 {offsets = [0, 1], sizes = [128, 1], strides = [1, 1]} : vector<128x4xi32> to vector<128x1xi32>
    %28 = vector.broadcast %27 : vector<128x1xi32> to vector<128x128xi32>
    %29 = arith.cmpi eq, %17, %28 : vector<128x128xi32>
    %30 = arith.extui %29 : vector<128x128xi1> to vector<128x128xi32>
    %31 = arith.sitofp %30 : vector<128x128xi32> to vector<128x128xf32>
    %32 = arith.addf %26, %31 : vector<128x128xf32>
    %33 = vector.extract_strided_slice %19 {offsets = [0, 2], sizes = [128, 1], strides = [1, 1]} : vector<128x4xi32> to vector<128x1xi32>
    %34 = vector.broadcast %33 : vector<128x1xi32> to vector<128x128xi32>
    %35 = arith.cmpi eq, %17, %34 : vector<128x128xi32>
    %36 = arith.extui %35 : vector<128x128xi1> to vector<128x128xi32>
    %37 = arith.sitofp %36 : vector<128x128xi32> to vector<128x128xf32>
    %38 = arith.addf %32, %37 : vector<128x128xf32>
    %39 = vector.extract_strided_slice %19 {offsets = [0, 3], sizes = [128, 1], strides = [1, 1]} : vector<128x4xi32> to vector<128x1xi32>
    %40 = vector.broadcast %39 : vector<128x1xi32> to vector<128x128xi32>
    %41 = arith.cmpi eq, %17, %40 : vector<128x128xi32>
    %42 = arith.extui %41 : vector<128x128xi1> to vector<128x128xi32>
    %43 = arith.sitofp %42 : vector<128x128xi32> to vector<128x128xf32>
    %44 = arith.addf %38, %43 : vector<128x128xf32>
    %45 = arith.truncf %44 : vector<128x128xf32> to vector<128x128xbf16>
    %c0_16 = arith.constant 0 : index
    %c0_17 = arith.constant 0 : index
    %c0_18 = arith.constant 0 : index
    %46 = vector.load %arg3[%c0_16, %c0_17, %c0_18] : memref<3x128x16xbf16, #tpu.memory_space<vmem>>, vector<1x128x16xbf16>
    %47 = vector.shape_cast %46 : vector<1x128x16xbf16> to vector<128x16xbf16>
    %cst_19 = arith.constant dense<0.000000e+00> : vector<128x16xf32>
    %48 = tpu.matmul %45, %47, %cst_19 {dimension_numbers = #tpu.dot_dimension_numbers<[1], [0], [0], [1], [0, 0, 1, 1], [], []>} : vector<128x128xbf16>, vector<128x16xbf16>, vector<128x16xf32> -> vector<128x16xf32>
    %c1 = arith.constant 1 : index
    %c0_20 = arith.constant 0 : index
    %c0_21 = arith.constant 0 : index
    %49 = vector.load %arg2[%c1, %c0_20, %c0_21] : memref<3x128x4xi32, #tpu.memory_space<vmem>>, vector<1x128x4xi32>
    %50 = vector.shape_cast %49 : vector<1x128x4xi32> to vector<128x4xi32>
    %cst_22 = arith.constant 0.000000e+00 : f32
    %51 = vector.broadcast %cst_22 : f32 to vector<128x128xf32>
    %52 = vector.extract_strided_slice %50 {offsets = [0, 0], sizes = [128, 1], strides = [1, 1]} : vector<128x4xi32> to vector<128x1xi32>
    %53 = vector.broadcast %52 : vector<128x1xi32> to vector<128x128xi32>
    %54 = arith.cmpi eq, %17, %53 : vector<128x128xi32>
    %55 = arith.extui %54 : vector<128x128xi1> to vector<128x128xi32>
    %56 = arith.sitofp %55 : vector<128x128xi32> to vector<128x128xf32>
    %57 = arith.addf %51, %56 : vector<128x128xf32>
    %58 = vector.extract_strided_slice %50 {offsets = [0, 1], sizes = [128, 1], strides = [1, 1]} : vector<128x4xi32> to vector<128x1xi32>
    %59 = vector.broadcast %58 : vector<128x1xi32> to vector<128x128xi32>
    %60 = arith.cmpi eq, %17, %59 : vector<128x128xi32>
    %61 = arith.extui %60 : vector<128x128xi1> to vector<128x128xi32>
    %62 = arith.sitofp %61 : vector<128x128xi32> to vector<128x128xf32>
    %63 = arith.addf %57, %62 : vector<128x128xf32>
    %64 = vector.extract_strided_slice %50 {offsets = [0, 2], sizes = [128, 1], strides = [1, 1]} : vector<128x4xi32> to vector<128x1xi32>
    %65 = vector.broadcast %64 : vector<128x1xi32> to vector<128x128xi32>
    %66 = arith.cmpi eq, %17, %65 : vector<128x128xi32>
    %67 = arith.extui %66 : vector<128x128xi1> to vector<128x128xi32>
    %68 = arith.sitofp %67 : vector<128x128xi32> to vector<128x128xf32>
    %69 = arith.addf %63, %68 : vector<128x128xf32>
    %70 = vector.extract_strided_slice %50 {offsets = [0, 3], sizes = [128, 1], strides = [1, 1]} : vector<128x4xi32> to vector<128x1xi32>
    %71 = vector.broadcast %70 : vector<128x1xi32> to vector<128x128xi32>
    %72 = arith.cmpi eq, %17, %71 : vector<128x128xi32>
    %73 = arith.extui %72 : vector<128x128xi1> to vector<128x128xi32>
    %74 = arith.sitofp %73 : vector<128x128xi32> to vector<128x128xf32>
    %75 = arith.addf %69, %74 : vector<128x128xf32>
    %76 = arith.truncf %75 : vector<128x128xf32> to vector<128x128xbf16>
    %c1_23 = arith.constant 1 : index
    %c0_24 = arith.constant 0 : index
    %c0_25 = arith.constant 0 : index
    %77 = vector.load %arg3[%c1_23, %c0_24, %c0_25] : memref<3x128x16xbf16, #tpu.memory_space<vmem>>, vector<1x128x16xbf16>
    %78 = vector.shape_cast %77 : vector<1x128x16xbf16> to vector<128x16xbf16>
    %cst_26 = arith.constant dense<0.000000e+00> : vector<128x16xf32>
    %79 = tpu.matmul %76, %78, %cst_26 {dimension_numbers = #tpu.dot_dimension_numbers<[1], [0], [0], [1], [0, 0, 1, 1], [], []>} : vector<128x128xbf16>, vector<128x16xbf16>, vector<128x16xf32> -> vector<128x16xf32>
    %c2 = arith.constant 2 : index
    %c0_27 = arith.constant 0 : index
    %c0_28 = arith.constant 0 : index
    %80 = vector.load %arg2[%c2, %c0_27, %c0_28] : memref<3x128x4xi32, #tpu.memory_space<vmem>>, vector<1x128x4xi32>
    %81 = vector.shape_cast %80 : vector<1x128x4xi32> to vector<128x4xi32>
    %cst_29 = arith.constant 0.000000e+00 : f32
    %82 = vector.broadcast %cst_29 : f32 to vector<128x128xf32>
    %83 = vector.extract_strided_slice %81 {offsets = [0, 0], sizes = [128, 1], strides = [1, 1]} : vector<128x4xi32> to vector<128x1xi32>
    %84 = vector.broadcast %83 : vector<128x1xi32> to vector<128x128xi32>
    %85 = arith.cmpi eq, %17, %84 : vector<128x128xi32>
    %86 = arith.extui %85 : vector<128x128xi1> to vector<128x128xi32>
    %87 = arith.sitofp %86 : vector<128x128xi32> to vector<128x128xf32>
    %88 = arith.addf %82, %87 : vector<128x128xf32>
    %89 = vector.extract_strided_slice %81 {offsets = [0, 1], sizes = [128, 1], strides = [1, 1]} : vector<128x4xi32> to vector<128x1xi32>
    %90 = vector.broadcast %89 : vector<128x1xi32> to vector<128x128xi32>
    %91 = arith.cmpi eq, %17, %90 : vector<128x128xi32>
    %92 = arith.extui %91 : vector<128x128xi1> to vector<128x128xi32>
    %93 = arith.sitofp %92 : vector<128x128xi32> to vector<128x128xf32>
    %94 = arith.addf %88, %93 : vector<128x128xf32>
    %95 = vector.extract_strided_slice %81 {offsets = [0, 2], sizes = [128, 1], strides = [1, 1]} : vector<128x4xi32> to vector<128x1xi32>
    %96 = vector.broadcast %95 : vector<128x1xi32> to vector<128x128xi32>
    %97 = arith.cmpi eq, %17, %96 : vector<128x128xi32>
    %98 = arith.extui %97 : vector<128x128xi1> to vector<128x128xi32>
    %99 = arith.sitofp %98 : vector<128x128xi32> to vector<128x128xf32>
    %100 = arith.addf %94, %99 : vector<128x128xf32>
    %101 = vector.extract_strided_slice %81 {offsets = [0, 3], sizes = [128, 1], strides = [1, 1]} : vector<128x4xi32> to vector<128x1xi32>
    %102 = vector.broadcast %101 : vector<128x1xi32> to vector<128x128xi32>
    %103 = arith.cmpi eq, %17, %102 : vector<128x128xi32>
    %104 = arith.extui %103 : vector<128x128xi1> to vector<128x128xi32>
    %105 = arith.sitofp %104 : vector<128x128xi32> to vector<128x128xf32>
    %106 = arith.addf %100, %105 : vector<128x128xf32>
    %107 = arith.truncf %106 : vector<128x128xf32> to vector<128x128xbf16>
    %c2_30 = arith.constant 2 : index
    %c0_31 = arith.constant 0 : index
    %c0_32 = arith.constant 0 : index
    %108 = vector.load %arg3[%c2_30, %c0_31, %c0_32] : memref<3x128x16xbf16, #tpu.memory_space<vmem>>, vector<1x128x16xbf16>
    %109 = vector.shape_cast %108 : vector<1x128x16xbf16> to vector<128x16xbf16>
    %cst_33 = arith.constant dense<0.000000e+00> : vector<128x16xf32>
    %110 = tpu.matmul %107, %109, %cst_33 {dimension_numbers = #tpu.dot_dimension_numbers<[1], [0], [0], [1], [0, 0, 1, 1], [], []>} : vector<128x128xbf16>, vector<128x16xbf16>, vector<128x16xf32> -> vector<128x16xf32>
    %111 = tpu.concatenate %16, %48, %79, %110 in 1 : vector<128x16xf32>, vector<128x16xf32>, vector<128x16xf32>, vector<128x16xf32> -> vector<128x64xf32>
    %112 = arith.truncf %111 : vector<128x64xf32> to vector<128x64xbf16>
    %c0_34 = arith.constant 0 : index
    %c0_35 = arith.constant 0 : index
    %113 = vector.load %arg4[%c0_34, %c0_35] : memref<64x96xbf16, #tpu.memory_space<vmem>>, vector<64x96xbf16>
    %cst_36 = arith.constant dense<0.000000e+00> : vector<128x96xf32>
    %114 = tpu.matmul %112, %113, %cst_36 {dimension_numbers = #tpu.dot_dimension_numbers<[1], [0], [0], [1], [0, 0, 1, 1], [], []>} : vector<128x64xbf16>, vector<64x96xbf16>, vector<128x96xf32> -> vector<128x96xf32>
    %c0_37 = arith.constant 0 : index
    %c0_38 = arith.constant 0 : index
    %115 = vector.load %arg5[%c0_37, %c0_38] : memref<64x96xbf16, #tpu.memory_space<vmem>>, vector<64x96xbf16>
    %cst_39 = arith.constant dense<0.000000e+00> : vector<128x96xf32>
    %116 = tpu.matmul %112, %115, %cst_39 {dimension_numbers = #tpu.dot_dimension_numbers<[1], [0], [0], [1], [0, 0, 1, 1], [], []>} : vector<128x64xbf16>, vector<64x96xbf16>, vector<128x96xf32> -> vector<128x96xf32>
    %117 = arith.mulf %114, %116 : vector<128x96xf32>
    %118 = arith.truncf %117 : vector<128x96xf32> to vector<128x96xbf16>
    %c0_40 = arith.constant 0 : index
    %c0_41 = arith.constant 0 : index
    %119 = vector.load %arg6[%c0_40, %c0_41] : memref<96x16xbf16, #tpu.memory_space<vmem>>, vector<96x16xbf16>
    %cst_42 = arith.constant dense<0.000000e+00> : vector<128x16xf32>
    %120 = tpu.matmul %118, %119, %cst_42 {dimension_numbers = #tpu.dot_dimension_numbers<[1], [0], [0], [1], [0, 0, 1, 1], [], []>} : vector<128x96xbf16>, vector<96x16xbf16>, vector<128x16xf32> -> vector<128x16xf32>
    %121 = tpu.concatenate %16, %120 in 1 : vector<128x16xf32>, vector<128x16xf32> -> vector<128x32xf32>
    %122 = arith.truncf %121 : vector<128x32xf32> to vector<128x32xbf16>
    %c0_43 = arith.constant 0 : index
    %c0_44 = arith.constant 0 : index
    %123 = vector.load %arg11[%c0_43, %c0_44] : memref<32x32xbf16, #tpu.memory_space<vmem>>, vector<32x32xbf16>
    %cst_45 = arith.constant dense<0.000000e+00> : vector<128x32xf32>
    %124 = tpu.matmul %122, %123, %cst_45 {dimension_numbers = #tpu.dot_dimension_numbers<[1], [0], [0], [1], [0, 0, 1, 1], [], []>} : vector<128x32xbf16>, vector<32x32xbf16>, vector<128x32xf32> -> vector<128x32xf32>
    %c0_46 = arith.constant 0 : index
    %c0_47 = arith.constant 0 : index
    %125 = vector.load %arg12[%c0_46, %c0_47] : memref<1x32xf32, #tpu.memory_space<vmem>>, vector<1x32xf32>
    %126 = vector.broadcast %125 : vector<1x32xf32> to vector<128x32xf32>
    %127 = arith.addf %124, %126 : vector<128x32xf32>
    %cst_48 = arith.constant 0.000000e+00 : f32
    %128 = vector.broadcast %cst_48 : f32 to vector<128x32xf32>
    %129 = arith.maximumf %127, %128 : vector<128x32xf32>
    %130 = arith.truncf %129 : vector<128x32xf32> to vector<128x32xbf16>
    %c0_49 = arith.constant 0 : index
    %c0_50 = arith.constant 0 : index
    %131 = vector.load %arg13[%c0_49, %c0_50] : memref<32x128xbf16, #tpu.memory_space<vmem>>, vector<32x128xbf16>
    %cst_51 = arith.constant dense<0.000000e+00> : vector<128x128xf32>
    %132 = tpu.matmul %130, %131, %cst_51 {dimension_numbers = #tpu.dot_dimension_numbers<[1], [0], [0], [1], [0, 0, 1, 1], [], []>} : vector<128x32xbf16>, vector<32x128xbf16>, vector<128x128xf32> -> vector<128x128xf32>
    %c0_52 = arith.constant 0 : index
    %c0_53 = arith.constant 0 : index
    %133 = vector.load %arg14[%c0_52, %c0_53] : memref<1x128xf32, #tpu.memory_space<vmem>>, vector<1x128xf32>
    %134 = vector.broadcast %133 : vector<1x128xf32> to vector<128x128xf32>
    %135 = arith.addf %132, %134 : vector<128x128xf32>
    %136 = arith.negf %135 : vector<128x128xf32>
    %137 = math.exp %136 : vector<128x128xf32>
    %cst_54 = arith.constant 1.000000e+00 : f32
    %138 = vector.broadcast %cst_54 : f32 to vector<128x128xf32>
    %139 = arith.addf %138, %137 : vector<128x128xf32>
    %140 = arith.divf %138, %139 : vector<128x128xf32>
    %c0_55 = arith.constant 0 : index
    %c0_56 = arith.constant 0 : index
    %141 = vector.load %arg15[%c0_55, %c0_56] : memref<128x128xf32, #tpu.memory_space<vmem>>, vector<128x128xf32>
    tpu.vector_store %arg15[%c0_55, %c0_56], %140 {strides = array<i32>} : memref<128x128xf32, #tpu.memory_space<vmem>>, vector<128x128xf32>,
    return
  }
  func.func @transform_0(%arg0: i32) -> (i32, i32) {
    %c0_i32 = arith.constant 0 : i32
    %c0_i32_0 = arith.constant 0 : i32
    return %arg0, %c0_i32 : i32, i32
  }
  func.func @transform_1(%arg0: i32) -> (i32, i32, i32) {
    %c0_i32 = arith.constant 0 : i32
    %c0_i32_0 = arith.constant 0 : i32
    %c0_i32_1 = arith.constant 0 : i32
    return %c0_i32, %arg0, %c0_i32_0 : i32, i32, i32
  }
  func.func @transform_2(%arg0: i32) -> (i32, i32, i32) {
    %c0_i32 = arith.constant 0 : i32
    %c0_i32_0 = arith.constant 0 : i32
    %c0_i32_1 = arith.constant 0 : i32
    %c0_i32_2 = arith.constant 0 : i32
    return %c0_i32, %c0_i32_0, %c0_i32_1 : i32, i32, i32
  }
  func.func @transform_3(%arg0: i32) -> (i32, i32) {
    %c0_i32 = arith.constant 0 : i32
    %c0_i32_0 = arith.constant 0 : i32
    %c0_i32_1 = arith.constant 0 : i32
    return %c0_i32, %c0_i32_0 : i32, i32
  }
  func.func @transform_4(%arg0: i32) -> (i32, i32) {
    %c0_i32 = arith.constant 0 : i32
    %c0_i32_0 = arith.constant 0 : i32
    %c0_i32_1 = arith.constant 0 : i32
    return %c0_i32, %c0_i32_0 : i32, i32
  }
  func.func @transform_5(%arg0: i32) -> (i32, i32) {
    %c0_i32 = arith.constant 0 : i32
    %c0_i32_0 = arith.constant 0 : i32
    %c0_i32_1 = arith.constant 0 : i32
    return %c0_i32, %c0_i32_0 : i32, i32
  }
  func.func @transform_6(%arg0: i32) -> (i32, i32) {
    %c0_i32 = arith.constant 0 : i32
    %c0_i32_0 = arith.constant 0 : i32
    %c0_i32_1 = arith.constant 0 : i32
    return %c0_i32, %c0_i32_0 : i32, i32
  }
  func.func @transform_7(%arg0: i32) -> (i32, i32) {
    %c0_i32 = arith.constant 0 : i32
    %c0_i32_0 = arith.constant 0 : i32
    %c0_i32_1 = arith.constant 0 : i32
    return %c0_i32, %c0_i32_0 : i32, i32
  }
  func.func @transform_8(%arg0: i32) -> (i32, i32) {
    %c0_i32 = arith.constant 0 : i32
    %c0_i32_0 = arith.constant 0 : i32
    %c0_i32_1 = arith.constant 0 : i32
    return %c0_i32, %c0_i32_0 : i32, i32
  }
  func.func @transform_9(%arg0: i32) -> (i32, i32) {
    %c0_i32 = arith.constant 0 : i32
    %c0_i32_0 = arith.constant 0 : i32
    %c0_i32_1 = arith.constant 0 : i32
    return %c0_i32, %c0_i32_0 : i32, i32
  }
  func.func @transform_10(%arg0: i32) -> (i32, i32) {
    %c0_i32 = arith.constant 0 : i32
    %c0_i32_0 = arith.constant 0 : i32
    %c0_i32_1 = arith.constant 0 : i32
    return %c0_i32, %c0_i32_0 : i32, i32
  }
  func.func @transform_11(%arg0: i32) -> (i32, i32) {
    %c0_i32 = arith.constant 0 : i32
    %c0_i32_0 = arith.constant 0 : i32
    %c0_i32_1 = arith.constant 0 : i32
    return %c0_i32, %c0_i32_0 : i32, i32
  }
  func.func @transform_12(%arg0: i32) -> (i32, i32) {
    %c0_i32 = arith.constant 0 : i32
    %c0_i32_0 = arith.constant 0 : i32
    %c0_i32_1 = arith.constant 0 : i32
    return %c0_i32, %c0_i32_0 : i32, i32
  }
  func.func @transform_13(%arg0: i32) -> (i32, i32) {
    %c0_i32 = arith.constant 0 : i32
    %c0_i32_0 = arith.constant 0 : i32
    %c0_i32_1 = arith.constant 0 : i32
    return %c0_i32, %c0_i32_0 : i32, i32
  }
  func.func @transform_14(%arg0: i32) -> (i32, i32) {
    %c0_i32 = arith.constant 0 : i32
    %c0_i32_0 = arith.constant 0 : i32
    return %arg0, %c0_i32 : i32, i32
  }
}

</mosaic_0001>

<llo_original>
// kernel: tpu_custom_call.1
$region0: #{tpu_custom_call.1}
  #allocation0 [shape = 'u32[]', space=smem, size = 0x4, offset = 0x4, fixed_abs, tag = 'smem constant byte address 0x4 - core index']
  #allocation1 [shape = 'u32[144,128]{1,0:T(1,128)}', space=vmem, size = 0x12000, scoped, tag = 'internal scratch']
  %s0 = inlined_call_operand.vmem [shape: f32[256,16], index: 0, kind: input, shape index: {}]
  %s1 = inlined_call_operand.vmem [shape: s32[3,256,4], index: 1, kind: input, shape index: {}]
  %s2 = inlined_call_operand.vmem [shape: bf16[3,128,16], index: 2, kind: input, shape index: {}]
  %s3 = inlined_call_operand.vmem [shape: bf16[64,96], index: 3, kind: input, shape index: {}]
  %s4 = inlined_call_operand.vmem [shape: bf16[64,96], index: 4, kind: input, shape index: {}]
  %s5 = inlined_call_operand.vmem [shape: bf16[96,16], index: 5, kind: input, shape index: {}]
  %s6 = inlined_call_operand.vmem [shape: bf16[16,32], index: 6, kind: input, shape index: {}]
  %s7 = inlined_call_operand.vmem [shape: f32[1,32], index: 7, kind: input, shape index: {}]
  %s8 = inlined_call_operand.vmem [shape: bf16[32,16], index: 8, kind: input, shape index: {}]
  %s9 = inlined_call_operand.vmem [shape: f32[1,16], index: 9, kind: input, shape index: {}]
  %s10 = inlined_call_operand.vmem [shape: bf16[32,32], index: 10, kind: input, shape index: {}]
  %s11 = inlined_call_operand.vmem [shape: f32[1,32], index: 11, kind: input, shape index: {}]
  %s12 = inlined_call_operand.vmem [shape: bf16[32,128], index: 12, kind: input, shape index: {}]
  %s13 = inlined_call_operand.vmem [shape: f32[1,128], index: 13, kind: input, shape index: {}]
  %s14 = inlined_call_operand.hbm [shape: f32[256,128], index: 14, kind: output, shape index: {}]
  %s15 = sld [smem:[#allocation0]]
  $region127: #{tpu_custom_call.1} parent=0
    _
  %s17 = ssub.s32 1, %s15
  %s18 = scalar_select 0, %s17, %s15
  $region1: #{tpu_custom_call.1} parent=0
    #allocation2 [shape = 'u8[393216]{0}', space=vmem, size = 0x60000, scoped, tag = 'input window, operand 1']
    #allocation3 [shape = 'u8[131072]{0}', space=vmem, size = 0x20000, scoped, tag = 'output window, operand 0']
    #allocation4 [shape = 's32[2]{0}', space=sflag, size = 0x8, scoped, tag = 'scoped memory for tpu_custom_call.1']
    %19 = vsyncpa [#allocation4], 0
    %s20 = scalar_lea.sflag [#allocation4], 1
    %21 = vsyncpa %s20, 0
    loop: start=0, step=1, limit=4
    $region2: #{tpu_custom_call.1} parent=1 // loop_pre_header
      _
    $region3: #{tpu_custom_call.1} parent=1 // loop_header
      %s23 = sphi 0, %s27
      %p24 = scmp.ge.s32.totalorder %s23, 4
      %s33 = sphi 0, %s35
      %s36 = sphi 0, %s33
      %s37 = sphi 0, %s36
      %s53 = sphi 0, %s37
      %s59 = sphi 0, %s61
      %s62 = sphi 0, %s59
      %s63 = sphi 0, %s62
      %s79 = sphi 0, %s63
      %s83 = sphi 0, %s83
      %s85 = sphi 0, %s83
      %s86 = sphi 0, %s85
      %s100 = sphi 0, %s86
      %s104 = sphi 0, %s104
      %s106 = sphi 0, %s104
      %s107 = sphi 0, %s106
      %s121 = sphi 0, %s107
      %s125 = sphi 0, %s125
      %s127 = sphi 0, %s125
      %s128 = sphi 0, %s127
      %s142 = sphi 0, %s128
      %s146 = sphi 0, %s146
      %s148 = sphi 0, %s146
      %s149 = sphi 0, %s148
      %s163 = sphi 0, %s149
      %s167 = sphi 0, %s167
      %s169 = sphi 0, %s167
      %s170 = sphi 0, %s169
      %s184 = sphi 0, %s170
      %s188 = sphi 0, %s188
      %s190 = sphi 0, %s188
      %s191 = sphi 0, %s190
      %s205 = sphi 0, %s191
      %s209 = sphi 0, %s209
      %s211 = sphi 0, %s209
      %s212 = sphi 0, %s211
      %s226 = sphi 0, %s212
      %s230 = sphi 0, %s230
      %s232 = sphi 0, %s230
      %s233 = sphi 0, %s232
      %s247 = sphi 0, %s233
      %s251 = sphi 0, %s251
      %s253 = sphi 0, %s251
      %s254 = sphi 0, %s253
      %s268 = sphi 0, %s254
      %s272 = sphi 0, %s272
      %s274 = sphi 0, %s272
      %s275 = sphi 0, %s274
      %s289 = sphi 0, %s275
      %s293 = sphi 0, %s293
      %s295 = sphi 0, %s293
      %s296 = sphi 0, %s295
      %s310 = sphi 0, %s296
      %s314 = sphi 0, %s314
      %s316 = sphi 0, %s314
      %s317 = sphi 0, %s316
      %s331 = sphi 0, %s317
      %s337 = sphi 0, %s339
      %s340 = sphi 0, %s337
      %s341 = sphi 0, %s340
      %s357 = sphi 0, %s341
    $region4: #{tpu_custom_call.1} parent=1 // loop_header_branch
      %26 = sbr.rel (%p24) target = $region8
    $region5: #{tpu_custom_call.1} parent=1 // loop_body
      %s28 = ssub.s32 %s23, 1
      %s29 = ssub.s32 %s23, 2
      %s30 = sadd.s32 %s23, 1
      %s31 = ssub.s32 %s23, %s30
      %p32 = scmp.eq.s32.totalorder %s31, 0
      %s34 = sadd.s32 %s33, 1
      %s35 = scalar_select %p32, %s33, %s34
      %p38 = pneg %p32
      %p39 = scmp.eq.s32.totalorder %s23, 1
      %p40 = por %p38, %p39
      %p41 = scmp.ne.s32.totalorder %s33, %s36
      %p42 = scmp.eq.s32.totalorder %s23, 0
      %p43 = por %p41, %p42
      %p44 = scmp.ne.s32.totalorder %s33, %s36
      %p45 = scmp.eq.s32.totalorder %s28, 1
      %p46 = por %p44, %p45
      %p47 = scmp.ne.s32.totalorder %s36, %s37
      %p48 = scmp.eq.s32.totalorder %s28, 0
      %p49 = por %p47, %p48
      %p50 = scmp.ne.s32.totalorder %s36, %s37
      %p51 = scmp.eq.s32.totalorder %s29, 1
      %p52 = por %p50, %p51
      %p54 = scmp.ne.s32.totalorder %s37, %s53
      %p55 = scmp.eq.s32.totalorder %s29, 0
      %p56 = por %p54, %p55
      %s57 = ssub.s32 %s23, %s30
      %p58 = scmp.eq.s32.totalorder %s57, 0
      %s60 = sadd.s32 %s59, 1
      %s61 = scalar_select %p58, %s59, %s60
      %p64 = pneg %p58
      %p65 = scmp.eq.s32.totalorder %s23, 1
      %p66 = por %p64, %p65
      %p67 = scmp.ne.s32.totalorder %s59, %s62
      %p68 = scmp.eq.s32.totalorder %s23, 0
      %p69 = por %p67, %p68
      %p70 = scmp.ne.s32.totalorder %s59, %s62
      %p71 = scmp.eq.s32.totalorder %s28, 1
      %p72 = por %p70, %p71
      %p73 = scmp.ne.s32.totalorder %s62, %s63
      %p74 = scmp.eq.s32.totalorder %s28, 0
      %p75 = por %p73, %p74
      %p76 = scmp.ne.s32.totalorder %s62, %s63
      %p77 = scmp.eq.s32.totalorder %s29, 1
      %p78 = por %p76, %p77
      %p80 = scmp.ne.s32.totalorder %s63, %s79
      %p81 = scmp.eq.s32.totalorder %s29, 0
      %p82 = por %p80, %p81
      %s84 = sadd.s32 %s83, 1
      %p87 = scmp.eq.s32.totalorder %s23, 1
      %p88 = scmp.ne.s32.totalorder %s83, %s85
      %p89 = scmp.eq.s32.totalorder %s23, 0
      %p90 = por %p88, %p89
      %p91 = scmp.ne.s32.totalorder %s83, %s85
      %p92 = scmp.eq.s32.totalorder %s28, 1
      %p93 = por %p91, %p92
      %p94 = scmp.ne.s32.totalorder %s85, %s86
      %p95 = scmp.eq.s32.totalorder %s28, 0
      %p96 = por %p94, %p95
      %p97 = scmp.ne.s32.totalorder %s85, %s86
      %p98 = scmp.eq.s32.totalorder %s29, 1
      %p99 = por %p97, %p98
      %p101 = scmp.ne.s32.totalorder %s86, %s100
      %p102 = scmp.eq.s32.totalorder %s29, 0
      %p103 = por %p101, %p102
      %s105 = sadd.s32 %s104, 1
      %p108 = scmp.eq.s32.totalorder %s23, 1
      %p109 = scmp.ne.s32.totalorder %s104, %s106
      %p110 = scmp.eq.s32.totalorder %s23, 0
      %p111 = por %p109, %p110
      %p112 = scmp.ne.s32.totalorder %s104, %s106
      %p113 = scmp.eq.s32.totalorder %s28, 1
      %p114 = por %p112, %p113
      %p115 = scmp.ne.s32.totalorder %s106, %s107
      %p116 = scmp.eq.s32.totalorder %s28, 0
      %p117 = por %p115, %p116
      %p118 = scmp.ne.s32.totalorder %s106, %s107
      %p119 = scmp.eq.s32.totalorder %s29, 1
      %p120 = por %p118, %p119
      %p122 = scmp.ne.s32.totalorder %s107, %s121
      %p123 = scmp.eq.s32.totalorder %s29, 0
      %p124 = por %p122, %p123
      %s126 = sadd.s32 %s125, 1
      %p129 = scmp.eq.s32.totalorder %s23, 1
      %p130 = scmp.ne.s32.totalorder %s125, %s127
      %p131 = scmp.eq.s32.totalorder %s23, 0
      %p132 = por %p130, %p131
      %p133 = scmp.ne.s32.totalorder %s125, %s127
      %p134 = scmp.eq.s32.totalorder %s28, 1
      %p135 = por %p133, %p134
      %p136 = scmp.ne.s32.totalorder %s127, %s128
      %p137 = scmp.eq.s32.totalorder %s28, 0
      %p138 = por %p136, %p137
      %p139 = scmp.ne.s32.totalorder %s127, %s128
      %p140 = scmp.eq.s32.totalorder %s29, 1
      %p141 = por %p139, %p140
      %p143 = scmp.ne.s32.totalorder %s128, %s142
      %p144 = scmp.eq.s32.totalorder %s29, 0
      %p145 = por %p143, %p144
      %s147 = sadd.s32 %s146, 1
      %p150 = scmp.eq.s32.totalorder %s23, 1
      %p151 = scmp.ne.s32.totalorder %s146, %s148
      %p152 = scmp.eq.s32.totalorder %s23, 0
      %p153 = por %p151, %p152
      %p154 = scmp.ne.s32.totalorder %s146, %s148
      %p155 = scmp.eq.s32.totalorder %s28, 1
      %p156 = por %p154, %p155
      %p157 = scmp.ne.s32.totalorder %s148, %s149
      %p158 = scmp.eq.s32.totalorder %s28, 0
      %p159 = por %p157, %p158
      %p160 = scmp.ne.s32.totalorder %s148, %s149
      %p161 = scmp.eq.s32.totalorder %s29, 1
      %p162 = por %p160, %p161
      %p164 = scmp.ne.s32.totalorder %s149, %s163
      %p165 = scmp.eq.s32.totalorder %s29, 0
      %p166 = por %p164, %p165
      %s168 = sadd.s32 %s167, 1
      %p171 = scmp.eq.s32.totalorder %s23, 1
      %p172 = scmp.ne.s32.totalorder %s167, %s169
      %p173 = scmp.eq.s32.totalorder %s23, 0
      %p174 = por %p172, %p173
      %p175 = scmp.ne.s32.totalorder %s167, %s169
      %p176 = scmp.eq.s32.totalorder %s28, 1
      %p177 = por %p175, %p176
      %p178 = scmp.ne.s32.totalorder %s169, %s170
      %p179 = scmp.eq.s32.totalorder %s28, 0
      %p180 = por %p178, %p179
      %p181 = scmp.ne.s32.totalorder %s169, %s170
      %p182 = scmp.eq.s32.totalorder %s29, 1
      %p183 = por %p181, %p182
      %p185 = scmp.ne.s32.totalorder %s170, %s184
      %p186 = scmp.eq.s32.totalorder %s29, 0
      %p187 = por %p185, %p186
      %s189 = sadd.s32 %s188, 1
      %p192 = scmp.eq.s32.totalorder %s23, 1
      %p193 = scmp.ne.s32.totalorder %s188, %s190
      %p194 = scmp.eq.s32.totalorder %s23, 0
      %p195 = por %p193, %p194
      %p196 = scmp.ne.s32.totalorder %s188, %s190
      %p197 = scmp.eq.s32.totalorder %s28, 1
      %p198 = por %p196, %p197
      %p199 = scmp.ne.s32.totalorder %s190, %s191
      %p200 = scmp.eq.s32.totalorder %s28, 0
      %p201 = por %p199, %p200
      %p202 = scmp.ne.s32.totalorder %s190, %s191
      %p203 = scmp.eq.s32.totalorder %s29, 1
      %p204 = por %p202, %p203
      %p206 = scmp.ne.s32.totalorder %s191, %s205
      %p207 = scmp.eq.s32.totalorder %s29, 0
      %p208 = por %p206, %p207
      %s210 = sadd.s32 %s209, 1
      %p213 = scmp.eq.s32.totalorder %s23, 1
      %p214 = scmp.ne.s32.totalorder %s209, %s211
      %p215 = scmp.eq.s32.totalorder %s23, 0
      %p216 = por %p214, %p215
      %p217 = scmp.ne.s32.totalorder %s209, %s211
      %p218 = scmp.eq.s32.totalorder %s28, 1
      %p219 = por %p217, %p218
      %p220 = scmp.ne.s32.totalorder %s211, %s212
      %p221 = scmp.eq.s32.totalorder %s28, 0
      %p222 = por %p220, %p221
      %p223 = scmp.ne.s32.totalorder %s211, %s212
      %p224 = scmp.eq.s32.totalorder %s29, 1
      %p225 = por %p223, %p224
      %p227 = scmp.ne.s32.totalorder %s212, %s226
      %p228 = scmp.eq.s32.totalorder %s29, 0
      %p229 = por %p227, %p228
      %s231 = sadd.s32 %s230, 1
      %p234 = scmp.eq.s32.totalorder %s23, 1
      %p235 = scmp.ne.s32.totalorder %s230, %s232
      %p236 = scmp.eq.s32.totalorder %s23, 0
      %p237 = por %p235, %p236
      %p238 = scmp.ne.s32.totalorder %s230, %s232
      %p239 = scmp.eq.s32.totalorder %s28, 1
      %p240 = por %p238, %p239
      %p241 = scmp.ne.s32.totalorder %s232, %s233
      %p242 = scmp.eq.s32.totalorder %s28, 0
      %p243 = por %p241, %p242
      %p244 = scmp.ne.s32.totalorder %s232, %s233
      %p245 = scmp.eq.s32.totalorder %s29, 1
      %p246 = por %p244, %p245
      %p248 = scmp.ne.s32.totalorder %s233, %s247
      %p249 = scmp.eq.s32.totalorder %s29, 0
      %p250 = por %p248, %p249
      %s252 = sadd.s32 %s251, 1
      %p255 = scmp.eq.s32.totalorder %s23, 1
      %p256 = scmp.ne.s32.totalorder %s251, %s253
      %p257 = scmp.eq.s32.totalorder %s23, 0
      %p258 = por %p256, %p257
      %p259 = scmp.ne.s32.totalorder %s251, %s253
      %p260 = scmp.eq.s32.totalorder %s28, 1
      %p261 = por %p259, %p260
      %p262 = scmp.ne.s32.totalorder %s253, %s254
      %p263 = scmp.eq.s32.totalorder %s28, 0
      %p264 = por %p262, %p263
      %p265 = scmp.ne.s32.totalorder %s253, %s254
      %p266 = scmp.eq.s32.totalorder %s29, 1
      %p267 = por %p265, %p266
      %p269 = scmp.ne.s32.totalorder %s254, %s268
      %p270 = scmp.eq.s32.totalorder %s29, 0
      %p271 = por %p269, %p270
      %s273 = sadd.s32 %s272, 1
      %p276 = scmp.eq.s32.totalorder %s23, 1
      %p277 = scmp.ne.s32.totalorder %s272, %s274
      %p278 = scmp.eq.s32.totalorder %s23, 0
      %p279 = por %p277, %p278
      %p280 = scmp.ne.s32.totalorder %s272, %s274
      %p281 = scmp.eq.s32.totalorder %s28, 1
      %p282 = por %p280, %p281
      %p283 = scmp.ne.s32.totalorder %s274, %s275
      %p284 = scmp.eq.s32.totalorder %s28, 0
      %p285 = por %p283, %p284
      %p286 = scmp.ne.s32.totalorder %s274, %s275
      %p287 = scmp.eq.s32.totalorder %s29, 1
      %p288 = por %p286, %p287
      %p290 = scmp.ne.s32.totalorder %s275, %s289
      %p291 = scmp.eq.s32.totalorder %s29, 0
      %p292 = por %p290, %p291
      %s294 = sadd.s32 %s293, 1
      %p297 = scmp.eq.s32.totalorder %s23, 1
      %p298 = scmp.ne.s32.totalorder %s293, %s295
      %p299 = scmp.eq.s32.totalorder %s23, 0
      %p300 = por %p298, %p299
      %p301 = scmp.ne.s32.totalorder %s293, %s295
      %p302 = scmp.eq.s32.totalorder %s28, 1
      %p303 = por %p301, %p302
      %p304 = scmp.ne.s32.totalorder %s295, %s296
      %p305 = scmp.eq.s32.totalorder %s28, 0
      %p306 = por %p304, %p305
      %p307 = scmp.ne.s32.totalorder %s295, %s296
      %p308 = scmp.eq.s32.totalorder %s29, 1
      %p309 = por %p307, %p308
      %p311 = scmp.ne.s32.totalorder %s296, %s310
      %p312 = scmp.eq.s32.totalorder %s29, 0
      %p313 = por %p311, %p312
      %s315 = sadd.s32 %s314, 1
      %p318 = scmp.eq.s32.totalorder %s23, 1
      %p319 = scmp.ne.s32.totalorder %s314, %s316
      %p320 = scmp.eq.s32.totalorder %s23, 0
      %p321 = por %p319, %p320
      %p322 = scmp.ne.s32.totalorder %s314, %s316
      %p323 = scmp.eq.s32.totalorder %s28, 1
      %p324 = por %p322, %p323
      %p325 = scmp.ne.s32.totalorder %s316, %s317
      %p326 = scmp.eq.s32.totalorder %s28, 0
      %p327 = por %p325, %p326
      %p328 = scmp.ne.s32.totalorder %s316, %s317
      %p329 = scmp.eq.s32.totalorder %s29, 1
      %p330 = por %p328, %p329
      %p332 = scmp.ne.s32.totalorder %s317, %s331
      %p333 = scmp.eq.s32.totalorder %s29, 0
      %p334 = por %p332, %p333
      %s335 = ssub.s32 %s23, %s30
      %p336 = scmp.eq.s32.totalorder %s335, 0
      %s338 = sadd.s32 %s337, 1
      %s339 = scalar_select %p336, %s337, %s338
      %p342 = pneg %p336
      %p343 = scmp.eq.s32.totalorder %s23, 1
      %p344 = por %p342, %p343
      %p345 = scmp.ne.s32.totalorder %s337, %s340
      %p346 = scmp.eq.s32.totalorder %s23, 0
      %p347 = por %p345, %p346
      %p348 = scmp.ne.s32.totalorder %s337, %s340
      %p349 = scmp.eq.s32.totalorder %s28, 1
      %p350 = por %p348, %p349
      %p351 = scmp.ne.s32.totalorder %s340, %s341
      %p352 = scmp.eq.s32.totalorder %s28, 0
      %p353 = por %p351, %p352
      %p354 = scmp.ne.s32.totalorder %s340, %s341
      %p355 = scmp.eq.s32.totalorder %s29, 1
      %p356 = por %p354, %p355
      %p358 = scmp.ne.s32.totalorder %s341, %s357
      %p359 = scmp.eq.s32.totalorder %s29, 0
      %p360 = por %p358, %p359
      %p361 = scmp.le.s32.totalorder 1, %s23
      %p362 = scmp.lt.s32.totalorder %s23, 3
      %p363 = pnand %p361, %p362
      %p364 = pneg %p363
      // Predicated region
      $region9: #{tpu_custom_call.1} parent=5 // pred_check
        _
      $region10: #{tpu_custom_call.1} parent=5 // pred_check_branch
        %366 = sbr.rel (%p363) target = $region12
      $region11: #{tpu_custom_call.1} parent=5 // pred_region
        %s367 = ssub.s32 %s23, 1
        // Predicated region
        $region13: #{tpu_custom_call.1} parent=11 // pred_check
          %p368 = pneg %p96
        $region14: #{tpu_custom_call.1} parent=11 // pred_check_branch
          %370 = sbr.rel (%p368) target = $region16
        $region15: #{tpu_custom_call.1} parent=11 // pred_region
          _
        $region16: #{tpu_custom_call.1} parent=11 // pred_fallthru
          _
        // Predicated region
        $region17: #{tpu_custom_call.1} parent=11 // pred_check
          %p371 = pneg %p117
        $region18: #{tpu_custom_call.1} parent=11 // pred_check_branch
          %373 = sbr.rel (%p371) target = $region20
        $region19: #{tpu_custom_call.1} parent=11 // pred_region
          _
        $region20: #{tpu_custom_call.1} parent=11 // pred_fallthru
          _
        // Predicated region
        $region21: #{tpu_custom_call.1} parent=11 // pred_check
          %p374 = pneg %p138
        $region22: #{tpu_custom_call.1} parent=11 // pred_check_branch
          %376 = sbr.rel (%p374) target = $region24
        $region23: #{tpu_custom_call.1} parent=11 // pred_region
          _
        $region24: #{tpu_custom_call.1} parent=11 // pred_fallthru
          _
        // Predicated region
        $region25: #{tpu_custom_call.1} parent=11 // pred_check
          %p377 = pneg %p159
        $region26: #{tpu_custom_call.1} parent=11 // pred_check_branch
          %379 = sbr.rel (%p377) target = $region28
        $region27: #{tpu_custom_call.1} parent=11 // pred_region
          _
        $region28: #{tpu_custom_call.1} parent=11 // pred_fallthru
          _
        // Predicated region
        $region29: #{tpu_custom_call.1} parent=11 // pred_check
          %p380 = pneg %p180
        $region30: #{tpu_custom_call.1} parent=11 // pred_check_branch
          %382 = sbr.rel (%p380) target = $region32
        $region31: #{tpu_custom_call.1} parent=11 // pred_region
          _
        $region32: #{tpu_custom_call.1} parent=11 // pred_fallthru
          _
        // Predicated region
        $region33: #{tpu_custom_call.1} parent=11 // pred_check
          %p383 = pneg %p201
        $region34: #{tpu_custom_call.1} parent=11 // pred_check_branch
          %385 = sbr.rel (%p383) target = $region36
        $region35: #{tpu_custom_call.1} parent=11 // pred_region
          _
        $region36: #{tpu_custom_call.1} parent=11 // pred_fallthru
          _
        // Predicated region
        $region37: #{tpu_custom_call.1} parent=11 // pred_check
          %p386 = pneg %p222
        $region38: #{tpu_custom_call.1} parent=11 // pred_check_branch
          %388 = sbr.rel (%p386) target = $region40
        $region39: #{tpu_custom_call.1} parent=11 // pred_region
          _
        $region40: #{tpu_custom_call.1} parent=11 // pred_fallthru
          _
        // Predicated region
        $region41: #{tpu_custom_call.1} parent=11 // pred_check
          %p389 = pneg %p243
        $region42: #{tpu_custom_call.1} parent=11 // pred_check_branch
          %391 = sbr.rel (%p389) target = $region44
        $region43: #{tpu_custom_call.1} parent=11 // pred_region
          _
        $region44: #{tpu_custom_call.1} parent=11 // pred_fallthru
          _
        // Predicated region
        $region45: #{tpu_custom_call.1} parent=11 // pred_check
          %p392 = pneg %p264
        $region46: #{tpu_custom_call.1} parent=11 // pred_check_branch
          %394 = sbr.rel (%p392) target = $region48
        $region47: #{tpu_custom_call.1} parent=11 // pred_region
          _
        $region48: #{tpu_custom_call.1} parent=11 // pred_fallthru
          _
        // Predicated region
        $region49: #{tpu_custom_call.1} parent=11 // pred_check
          %p395 = pneg %p285
        $region50: #{tpu_custom_call.1} parent=11 // pred_check_branch
          %397 = sbr.rel (%p395) target = $region52
        $region51: #{tpu_custom_call.1} parent=11 // pred_region
          _
        $region52: #{tpu_custom_call.1} parent=11 // pred_fallthru
          _
        // Predicated region
        $region53: #{tpu_custom_call.1} parent=11 // pred_check
          %p398 = pneg %p306
        $region54: #{tpu_custom_call.1} parent=11 // pred_check_branch
          %400 = sbr.rel (%p398) target = $region56
        $region55: #{tpu_custom_call.1} parent=11 // pred_region
          _
        $region56: #{tpu_custom_call.1} parent=11 // pred_fallthru
          _
        // Predicated region
        $region57: #{tpu_custom_call.1} parent=11 // pred_check
          %p401 = pneg %p327
        $region58: #{tpu_custom_call.1} parent=11 // pred_check_branch
          %403 = sbr.rel (%p401) target = $region60
        $region59: #{tpu_custom_call.1} parent=11 // pred_region
          _
        $region60: #{tpu_custom_call.1} parent=11 // pred_fallthru
          _
      $region12: #{tpu_custom_call.1} parent=5 // pred_fallthru
        _
      %p404 = scmp.lt.s32.totalorder %s23, 2
      // Predicated region
      $region61: #{tpu_custom_call.1} parent=5 // pred_check
        %p405 = pneg %p404
      $region62: #{tpu_custom_call.1} parent=5 // pred_check_branch
        %407 = sbr.rel (%p405) target = $region64
      $region63: #{tpu_custom_call.1} parent=5 // pred_region
        // Predicated region
        $region65: #{tpu_custom_call.1} parent=63 // pred_check
          %p408 = pneg %p43
        $region66: #{tpu_custom_call.1} parent=63 // pred_check_branch
          %410 = sbr.rel (%p408) target = $region68
        $region67: #{tpu_custom_call.1} parent=63 // pred_region
          %s411 = smul.u32 16, %s23
          %p412 = scmp.lt.s32.totalorder %s411, 31
          %s413 = scalar_select %p412, %s411, 31
          %s414 = smul.addr %s413, 8
          %s415 = scalar_lea.vmem %s0, %s414
          %s416 = smul.u32 16, %s23
        $region68: #{tpu_custom_call.1} parent=63 // pred_fallthru
          _
        // Predicated region
        $region69: #{tpu_custom_call.1} parent=63 // pred_check
          %p417 = pneg %p69
        $region70: #{tpu_custom_call.1} parent=63 // pred_check_branch
          %419 = sbr.rel (%p417) target = $region72
        $region71: #{tpu_custom_call.1} parent=63 // pred_region
          %s420 = sand.u32 %s59, 1
          %s421 = sand.u32 %s59, 1
          %s422 = smul.addr %s421, 384
          %s423 = scalar_lea.vmem [#allocation2], %s422
          %s424 = smul.u32 16, %s23
          %s425 = smul.addr %s424, 8
          %s426 = scalar_lea.vmem %s1, %s425
          // Predicated region
          $region73: #{tpu_custom_call.1} parent=71 // pred_check
            _
          $region74: #{tpu_custom_call.1} parent=71 // pred_check_branch
            %428 = sbr.rel (0) target = $region76
          $region75: #{tpu_custom_call.1} parent=71 // pred_region
            // Predicated region
            $region77: #{tpu_custom_call.1} parent=75 // pred_check
              _
            $region78: #{tpu_custom_call.1} parent=75 // pred_check_branch
              %430 = sbr.rel (0) target = $region80
            $region79: #{tpu_custom_call.1} parent=75 // pred_region
              // Predicated region
              $region92: #{tpu_custom_call.1} parent=79 // pred_check
                _
              $region93: #{tpu_custom_call.1} parent=79 // pred_check_branch
                %540 = sbr.rel (0) target = $region95
              $region94: #{tpu_custom_call.1} parent=79 // pred_region
                loop: start=0, step=1, limit=1
                $region96: #{tpu_custom_call.1} parent=94 // loop_pre_header
                  _
                $region97: #{tpu_custom_call.1} parent=94 // loop_header
                  %s542 = sphi 0, %s546
                  %p543 = scmp.ge.s32.totalorder %s542, 1
                  %s547 = sphi %s426, %s426
                  %s548 = sphi %s423, %s423
                $region98: #{tpu_custom_call.1} parent=94 // loop_header_branch
                  %545 = sbr.rel (%p543) target = $region102
                $region99: #{tpu_custom_call.1} parent=94 // loop_body
                  %v549 = vld [vmem:[%s547] sm:$0xff]
                  %550 = vst [vmem:[%s548] sm:$0xff] %v549
                  %v551 = vld [vmem:[%s547 + $0x8] sm:$0xff]
                  %552 = vst [vmem:[%s548 + $0x8] sm:$0xff] %v551
                  %v553 = vld [vmem:[%s547 + $0x10] sm:$0xff]
                  %554 = vst [vmem:[%s548 + $0x10] sm:$0xff] %v553
                  %v555 = vld [vmem:[%s547 + $0x18] sm:$0xff]
                  %556 = vst [vmem:[%s548 + $0x18] sm:$0xff] %v555
                  %v557 = vld [vmem:[%s547 + $0x20] sm:$0xff]
                  %558 = vst [vmem:[%s548 + $0x20] sm:$0xff] %v557
                  %v559 = vld [vmem:[%s547 + $0x28] sm:$0xff]
                  %560 = vst [vmem:[%s548 + $0x28] sm:$0xff] %v559
                  %v561 = vld [vmem:[%s547 + $0x30] sm:$0xff]
                  %562 = vst [vmem:[%s548 + $0x30] sm:$0xff] %v561
                  %v563 = vld [vmem:[%s547 + $0x38] sm:$0xff]
                  %564 = vst [vmem:[%s548 + $0x38] sm:$0xff] %v563
                  %v565 = vld [vmem:[%s547 + $0x40] sm:$0xff]
                  %566 = vst [vmem:[%s548 + $0x40] sm:$0xff] %v565
                  %v567 = vld [vmem:[%s547 + $0x48] sm:$0xff]
                  %568 = vst [vmem:[%s548 + $0x48] sm:$0xff] %v567
                  %v569 = vld [vmem:[%s547 + $0x50] sm:$0xff]
                  %570 = vst [vmem:[%s548 + $0x50] sm:$0xff] %v569
                  %v571 = vld [vmem:[%s547 + $0x58] sm:$0xff]
                  %572 = vst [vmem:[%s548 + $0x58] sm:$0xff] %v571
                  %v573 = vld [vmem:[%s547 + $0x60] sm:$0xff]
                  %574 = vst [vmem:[%s548 + $0x60] sm:$0xff] %v573
                  %v575 = vld [vmem:[%s547 + $0x68] sm:$0xff]
                  %576 = vst [vmem:[%s548 + $0x68] sm:$0xff] %v575
                  %v577 = vld [vmem:[%s547 + $0x70] sm:$0xff]
                  %578 = vst [vmem:[%s548 + $0x70] sm:$0xff] %v577
                  %v579 = vld [vmem:[%s547 + $0x78] sm:$0xff]
                  %580 = vst [vmem:[%s548 + $0x78] sm:$0xff] %v579
                  %v581 = vld [vmem:[%s547 + $0x100] sm:$0xff]
                  %582 = vst [vmem:[%s548 + $0x80] sm:$0xff] %v581
                  %v583 = vld [vmem:[%s547 + $0x108] sm:$0xff]
                  %584 = vst [vmem:[%s548 + $0x88] sm:$0xff] %v583
                  %v585 = vld [vmem:[%s547 + $0x110] sm:$0xff]
                  %586 = vst [vmem:[%s548 + $0x90] sm:$0xff] %v585
                  %v587 = vld [vmem:[%s547 + $0x118] sm:$0xff]
                  %588 = vst [vmem:[%s548 + $0x98] sm:$0xff] %v587
                  %v589 = vld [vmem:[%s547 + $0x120] sm:$0xff]
                  %590 = vst [vmem:[%s548 + $0xa0] sm:$0xff] %v589
                  %v591 = vld [vmem:[%s547 + $0x128] sm:$0xff]
                  %592 = vst [vmem:[%s548 + $0xa8] sm:$0xff] %v591
                  %v593 = vld [vmem:[%s547 + $0x130] sm:$0xff]
                  %594 = vst [vmem:[%s548 + $0xb0] sm:$0xff] %v593
                  %v595 = vld [vmem:[%s547 + $0x138] sm:$0xff]
                  %596 = vst [vmem:[%s548 + $0xb8] sm:$0xff] %v595
                  %v597 = vld [vmem:[%s547 + $0x140] sm:$0xff]
                  %598 = vst [vmem:[%s548 + $0xc0] sm:$0xff] %v597
                  %v599 = vld [vmem:[%s547 + $0x148] sm:$0xff]
                  %600 = vst [vmem:[%s548 + $0xc8] sm:$0xff] %v599
                  %v601 = vld [vmem:[%s547 + $0x150] sm:$0xff]
                  %602 = vst [vmem:[%s548 + $0xd0] sm:$0xff] %v601
                  %v603 = vld [vmem:[%s547 + $0x158] sm:$0xff]
                  %604 = vst [vmem:[%s548 + $0xd8] sm:$0xff] %v603
                  %v605 = vld [vmem:[%s547 + $0x160] sm:$0xff]
                  %606 = vst [vmem:[%s548 + $0xe0] sm:$0xff] %v605
                  %v607 = vld [vmem:[%s547 + $0x168] sm:$0xff]
                  %608 = vst [vmem:[%s548 + $0xe8] sm:$0xff] %v607
                  %v609 = vld [vmem:[%s547 + $0x170] sm:$0xff]
                  %610 = vst [vmem:[%s548 + $0xf0] sm:$0xff] %v609
                  %v611 = vld [vmem:[%s547 + $0x178] sm:$0xff]
                  %612 = vst [vmem:[%s548 + $0xf8] sm:$0xff] %v611
                  %v613 = vld [vmem:[%s547 + $0x200] sm:$0xff]
                  %614 = vst [vmem:[%s548 + $0x100] sm:$0xff] %v613
                  %v615 = vld [vmem:[%s547 + $0x208] sm:$0xff]
                  %616 = vst [vmem:[%s548 + $0x108] sm:$0xff] %v615
                  %v617 = vld [vmem:[%s547 + $0x210] sm:$0xff]
                  %618 = vst [vmem:[%s548 + $0x110] sm:$0xff] %v617
                  %v619 = vld [vmem:[%s547 + $0x218] sm:$0xff]
                  %620 = vst [vmem:[%s548 + $0x118] sm:$0xff] %v619
                  %v621 = vld [vmem:[%s547 + $0x220] sm:$0xff]
                  %622 = vst [vmem:[%s548 + $0x120] sm:$0xff] %v621
                  %v623 = vld [vmem:[%s547 + $0x228] sm:$0xff]
                  %624 = vst [vmem:[%s548 + $0x128] sm:$0xff] %v623
                  %v625 = vld [vmem:[%s547 + $0x230] sm:$0xff]
                  %626 = vst [vmem:[%s548 + $0x130] sm:$0xff] %v625
                  %v627 = vld [vmem:[%s547 + $0x238] sm:$0xff]
                  %628 = vst [vmem:[%s548 + $0x138] sm:$0xff] %v627
                  %v629 = vld [vmem:[%s547 + $0x240] sm:$0xff]
                  %630 = vst [vmem:[%s548 + $0x140] sm:$0xff] %v629
                  %v631 = vld [vmem:[%s547 + $0x248] sm:$0xff]
                  %632 = vst [vmem:[%s548 + $0x148] sm:$0xff] %v631
                  %v633 = vld [vmem:[%s547 + $0x250] sm:$0xff]
                  %634 = vst [vmem:[%s548 + $0x150] sm:$0xff] %v633
                  %v635 = vld [vmem:[%s547 + $0x258] sm:$0xff]
                  %636 = vst [vmem:[%s548 + $0x158] sm:$0xff] %v635
                  %v637 = vld [vmem:[%s547 + $0x260] sm:$0xff]
                  %638 = vst [vmem:[%s548 + $0x160] sm:$0xff] %v637
                  %v639 = vld [vmem:[%s547 + $0x268] sm:$0xff]
                  %640 = vst [vmem:[%s548 + $0x168] sm:$0xff] %v639
                  %v641 = vld [vmem:[%s547 + $0x270] sm:$0xff]
                  %642 = vst [vmem:[%s548 + $0x170] sm:$0xff] %v641
                  %v643 = vld [vmem:[%s547 + $0x278] sm:$0xff]
                  %644 = vst [vmem:[%s548 + $0x178] sm:$0xff] %v643
                $region100: #{tpu_custom_call.1} parent=94 // loop_footer
                  %s546 = sadd.s32 1, %s542
                $region101: #{tpu_custom_call.1} parent=94 // loop_footer_branch
                  %541 = sbr.rel target = $region97
                $region102: #{tpu_custom_call.1} parent=94 // loop_exit
                  _
              $region95: #{tpu_custom_call.1} parent=79 // pred_fallthru
                _
              // Predicated region
              $region103: #{tpu_custom_call.1} parent=79 // pred_check
                _
              $region104: #{tpu_custom_call.1} parent=79 // pred_check_branch
                %646 = sbr.rel target = $region106
              $region105: #{tpu_custom_call.1} parent=79 // pred_region
                _
              $region106: #{tpu_custom_call.1} parent=79 // pred_fallthru
                _
            $region80: #{tpu_custom_call.1} parent=75 // pred_fallthru
              _
            // Predicated region
            $region81: #{tpu_custom_call.1} parent=75 // pred_check
              _
            $region82: #{tpu_custom_call.1} parent=75 // pred_check_branch
              %432 = sbr.rel target = $region84
            $region83: #{tpu_custom_call.1} parent=75 // pred_region
              %s434 = ssub.s32 256, 1
              loop: start=0, step=1, limit=1
              $region85: #{tpu_custom_call.1} parent=83 // loop_pre_header
                _
              $region86: #{tpu_custom_call.1} parent=83 // loop_header
                %s436 = sphi 0, %s440
                %p437 = scmp.ge.s32.totalorder %s436, 1
                %s441 = sphi %s426, %s426
                %s442 = sphi %s423, %s423
              $region87: #{tpu_custom_call.1} parent=83 // loop_header_branch
                %439 = sbr.rel (%p437) target = $region91
              $region88: #{tpu_custom_call.1} parent=83 // loop_body
                %v443 = vld [vmem:[%s441] sm:%s434]
                %444 = vst [vmem:[%s442] sm:%s434] %v443
                %v445 = vld [vmem:[%s441 + $0x8] sm:%s434]
                %446 = vst [vmem:[%s442 + $0x8] sm:%s434] %v445
                %v447 = vld [vmem:[%s441 + $0x10] sm:%s434]
                %448 = vst [vmem:[%s442 + $0x10] sm:%s434] %v447
                %v449 = vld [vmem:[%s441 + $0x18] sm:%s434]
                %450 = vst [vmem:[%s442 + $0x18] sm:%s434] %v449
                %v451 = vld [vmem:[%s441 + $0x20] sm:%s434]
                %452 = vst [vmem:[%s442 + $0x20] sm:%s434] %v451
                %v453 = vld [vmem:[%s441 + $0x28] sm:%s434]
                %454 = vst [vmem:[%s442 + $0x28] sm:%s434] %v453
                %v455 = vld [vmem:[%s441 + $0x30] sm:%s434]
                %456 = vst [vmem:[%s442 + $0x30] sm:%s434] %v455
                %v457 = vld [vmem:[%s441 + $0x38] sm:%s434]
                %458 = vst [vmem:[%s442 + $0x38] sm:%s434] %v457
                %v459 = vld [vmem:[%s441 + $0x40] sm:%s434]
                %460 = vst [vmem:[%s442 + $0x40] sm:%s434] %v459
                %v461 = vld [vmem:[%s441 + $0x48] sm:%s434]
                %462 = vst [vmem:[%s442 + $0x48] sm:%s434] %v461
                %v463 = vld [vmem:[%s441 + $0x50] sm:%s434]
                %464 = vst [vmem:[%s442 + $0x50] sm:%s434] %v463
                %v465 = vld [vmem:[%s441 + $0x58] sm:%s434]
                %466 = vst [vmem:[%s442 + $0x58] sm:%s434] %v465
                %v467 = vld [vmem:[%s441 + $0x60] sm:%s434]
                %468 = vst [vmem:[%s442 + $0x60] sm:%s434] %v467
                %v469 = vld [vmem:[%s441 + $0x68] sm:%s434]
                %470 = vst [vmem:[%s442 + $0x68] sm:%s434] %v469
                %v471 = vld [vmem:[%s441 + $0x70] sm:%s434]
                %472 = vst [vmem:[%s442 + $0x70] sm:%s434] %v471
                %v473 = vld [vmem:[%s441 + $0x78] sm:%s434]
                %474 = vst [vmem:[%s442 + $0x78] sm:%s434] %v473
                %v475 = vld [vmem:[%s441 + $0x100] sm:%s434]
                %476 = vst [vmem:[%s442 + $0x80] sm:%s434] %v475
                %v477 = vld [vmem:[%s441 + $0x108] sm:%s434]
                %478 = vst [vmem:[%s442 + $0x88] sm:%s434] %v477
                %v479 = vld [vmem:[%s441 + $0x110] sm:%s434]
                %480 = vst [vmem:[%s442 + $0x90] sm:%s434] %v479
                %v481 = vld [vmem:[%s441 + $0x118] sm:%s434]
                %482 = vst [vmem:[%s442 + $0x98] sm:%s434] %v481
                %v483 = vld [vmem:[%s441 + $0x120] sm:%s434]
                %484 = vst [vmem:[%s442 + $0xa0] sm:%s434] %v483
                %v485 = vld [vmem:[%s441 + $0x128] sm:%s434]
                %486 = vst [vmem:[%s442 + $0xa8] sm:%s434] %v485
                %v487 = vld [vmem:[%s441 + $0x130] sm:%s434]
                %488 = vst [vmem:[%s442 + $0xb0] sm:%s434] %v487
                %v489 = vld [vmem:[%s441 + $0x138] sm:%s434]
                %490 = vst [vmem:[%s442 + $0xb8] sm:%s434] %v489
                %v491 = vld [vmem:[%s441 + $0x140] sm:%s434]
                %492 = vst [vmem:[%s442 + $0xc0] sm:%s434] %v491
                %v493 = vld [vmem:[%s441 + $0x148] sm:%s434]
                %494 = vst [vmem:[%s442 + $0xc8] sm:%s434] %v493
                %v495 = vld [vmem:[%s441 + $0x150] sm:%s434]
                %496 = vst [vmem:[%s442 + $0xd0] sm:%s434] %v495
                %v497 = vld [vmem:[%s441 + $0x158] sm:%s434]
                %498 = vst [vmem:[%s442 + $0xd8] sm:%s434] %v497
                %v499 = vld [vmem:[%s441 + $0x160] sm:%s434]
                %500 = vst [vmem:[%s442 + $0xe0] sm:%s434] %v499
                %v501 = vld [vmem:[%s441 + $0x168] sm:%s434]
                %502 = vst [vmem:[%s442 + $0xe8] sm:%s434] %v501
                %v503 = vld [vmem:[%s441 + $0x170] sm:%s434]
                %504 = vst [vmem:[%s442 + $0xf0] sm:%s434] %v503
                %v505 = vld [vmem:[%s441 + $0x178] sm:%s434]
                %506 = vst [vmem:[%s442 + $0xf8] sm:%s434] %v505
                %v507 = vld [vmem:[%s441 + $0x200] sm:%s434]
                %508 = vst [vmem:[%s442 + $0x100] sm:%s434] %v507
                %v509 = vld [vmem:[%s441 + $0x208] sm:%s434]
                %510 = vst [vmem:[%s442 + $0x108] sm:%s434] %v509
                %v511 = vld [vmem:[%s441 + $0x210] sm:%s434]
                %512 = vst [vmem:[%s442 + $0x110] sm:%s434] %v511
                %v513 = vld [vmem:[%s441 + $0x218] sm:%s434]
                %514 = vst [vmem:[%s442 + $0x118] sm:%s434] %v513
                %v515 = vld [vmem:[%s441 + $0x220] sm:%s434]
                %516 = vst [vmem:[%s442 + $0x120] sm:%s434] %v515
                %v517 = vld [vmem:[%s441 + $0x228] sm:%s434]
                %518 = vst [vmem:[%s442 + $0x128] sm:%s434] %v517
                %v519 = vld [vmem:[%s441 + $0x230] sm:%s434]
                %520 = vst [vmem:[%s442 + $0x130] sm:%s434] %v519
                %v521 = vld [vmem:[%s441 + $0x238] sm:%s434]
                %522 = vst [vmem:[%s442 + $0x138] sm:%s434] %v521
                %v523 = vld [vmem:[%s441 + $0x240] sm:%s434]
                %524 = vst [vmem:[%s442 + $0x140] sm:%s434] %v523
                %v525 = vld [vmem:[%s441 + $0x248] sm:%s434]
                %526 = vst [vmem:[%s442 + $0x148] sm:%s434] %v525
                %v527 = vld [vmem:[%s441 + $0x250] sm:%s434]
                %528 = vst [vmem:[%s442 + $0x150] sm:%s434] %v527
                %v529 = vld [vmem:[%s441 + $0x258] sm:%s434]
                %530 = vst [vmem:[%s442 + $0x158] sm:%s434] %v529
                %v531 = vld [vmem:[%s441 + $0x260] sm:%s434]
                %532 = vst [vmem:[%s442 + $0x160] sm:%s434] %v531
                %v533 = vld [vmem:[%s441 + $0x268] sm:%s434]
                %534 = vst [vmem:[%s442 + $0x168] sm:%s434] %v533
                %v535 = vld [vmem:[%s441 + $0x270] sm:%s434]
                %536 = vst [vmem:[%s442 + $0x170] sm:%s434] %v535
                %v537 = vld [vmem:[%s441 + $0x278] sm:%s434]
                %538 = vst [vmem:[%s442 + $0x178] sm:%s434] %v537
              $region89: #{tpu_custom_call.1} parent=83 // loop_footer
                %s440 = sadd.s32 1, %s436
              $region90: #{tpu_custom_call.1} parent=83 // loop_footer_branch
                %435 = sbr.rel target = $region86
              $region91: #{tpu_custom_call.1} parent=83 // loop_exit
                _
            $region84: #{tpu_custom_call.1} parent=75 // pred_fallthru
              _
          $region76: #{tpu_custom_call.1} parent=71 // pred_fallthru
            _
          %647 = vnop
        $region72: #{tpu_custom_call.1} parent=63 // pred_fallthru
          _
      $region64: #{tpu_custom_call.1} parent=5 // pred_fallthru
        _
      %p648 = scmp.le.s32.totalorder 1, %s23
      %p649 = scmp.lt.s32.totalorder %s23, 3
      %p650 = pnand %p648, %p649
      %p651 = pneg %p650
      // Predicated region
      $region107: #{tpu_custom_call.1} parent=5 // pred_check
        _
      $region108: #{tpu_custom_call.1} parent=5 // pred_check_branch
        %653 = sbr.rel (%p650) target = $region110
      $region109: #{tpu_custom_call.1} parent=5 // pred_region
        %s654 = ssub.s32 %s23, 1
        %s655 = sand.u32 %s62, 1
        %s656 = sand.u32 %s62, 1
        %s657 = smul.addr %s656, 384
        %s658 = scalar_lea.vmem [#allocation2], %s657
        // Predicated region
        $region111: #{tpu_custom_call.1} parent=109 // pred_check
          %p659 = pneg %p75
        $region112: #{tpu_custom_call.1} parent=109 // pred_check_branch
          %661 = sbr.rel (%p659) target = $region114
        $region113: #{tpu_custom_call.1} parent=109 // pred_region
          _
        $region114: #{tpu_custom_call.1} parent=109 // pred_fallthru
          _
        %s662 = smul.u32 16, %s28
        %p663 = scmp.lt.s32.totalorder %s662, 31
        %s664 = scalar_select %p663, %s662, 31
        %s665 = smul.addr %s664, 8
        %s666 = scalar_lea.vmem %s0, %s665
        %p667 = pneg %p49
        %p668 = pneg %p46
        %s669 = sand.u32 %s62, 1
        %s670 = sand.u32 %s62, 1
        %s671 = smul.addr %s670, 384
        %s672 = scalar_lea.vmem [#allocation2], %s671
        %p673 = pneg %p75
        %p674 = pneg %p72
        %p675 = pneg %p96
        %p676 = pneg %p93
        %p677 = pneg %p117
        %p678 = pneg %p114
        %p679 = pneg %p138
        %p680 = pneg %p135
        %p681 = pneg %p159
        %p682 = pneg %p156
        %p683 = pneg %p180
        %p684 = pneg %p177
        %p685 = pneg %p201
        %p686 = pneg %p198
        %p687 = pneg %p222
        %p688 = pneg %p219
        %p689 = pneg %p243
        %p690 = pneg %p240
        %p691 = pneg %p264
        %p692 = pneg %p261
        %p693 = pneg %p285
        %p694 = pneg %p282
        %p695 = pneg %p306
        %p696 = pneg %p303
        %p697 = pneg %p327
        %p698 = pneg %p324
        %p699 = pneg %p353
        %p700 = pneg %p350
        %s701 = sand.u32 %s340, 1
        %s702 = scalar_lea.sflag [#allocation4], %s701
        %s703 = sand.u32 %s340, 1
        %s704 = smul.addr %s703, 128
        %s705 = scalar_lea.vmem [#allocation3], %s704
        %s706 = smul.u32 16, %s28
        %p707 = scmp.lt.s32.totalorder %s706, 31
        %s708 = scalar_select %p707, %s706, 31
        %s709 = smul.addr %s708, 8
        %s710 = scalar_lea.vmem %s0, %s709
        %s711 = smul.u32 16, %s28
        %s712 = smul.u32 16, %s28
        %s713 = smul.u32 16, %s28
        %v715 = vld [vmem:[%s710] sm:$0xff]
        %v716 = vld [vmem:[%s710 + $0x8] sm:$0xff]
        %v717 = vld [vmem:[%s710 + $0x10] sm:$0xff]
        %v718 = vld [vmem:[%s710 + $0x18] sm:$0xff]
        %v719 = vld [vmem:[%s710 + $0x20] sm:$0xff]
        %v720 = vld [vmem:[%s710 + $0x28] sm:$0xff]
        %v721 = vld [vmem:[%s710 + $0x30] sm:$0xff]
        %v722 = vld [vmem:[%s710 + $0x38] sm:$0xff]
        %v723 = vld [vmem:[%s710 + $0x40] sm:$0xff]
        %v724 = vld [vmem:[%s710 + $0x48] sm:$0xff]
        %v725 = vld [vmem:[%s710 + $0x50] sm:$0xff]
        %v726 = vld [vmem:[%s710 + $0x58] sm:$0xff]
        %v727 = vld [vmem:[%s710 + $0x60] sm:$0xff]
        %v728 = vld [vmem:[%s710 + $0x68] sm:$0xff]
        %v729 = vld [vmem:[%s710 + $0x70] sm:$0xff]
        %v730 = vld [vmem:[%s710 + $0x78] sm:$0xff]
        %v731 = vpack.c.bf16 %v716, %v715
        %v732 = vpack.c.bf16 %v718, %v717
        %v733 = vpack.c.bf16 %v720, %v719
        %v734 = vpack.c.bf16 %v722, %v721
        %v735 = vpack.c.bf16 %v724, %v723
        %v736 = vpack.c.bf16 %v726, %v725
        %v737 = vpack.c.bf16 %v728, %v727
        %v738 = vpack.c.bf16 %v730, %v729
        %v739 = vld [vmem:[%s6] sm:$0xf]
        %v740 = vld [vmem:[%s6 + $0x4] sm:$0xf]
        %v741 = vld [vmem:[%s7] sm:$0x1]
        %v743 = vlaneseq
        %v744 = vshrl.u32 %v743, 7
        %v745 = vsub.s32 0, %v744
        %v746 = vrot.slane %v741, %v745
        %v750 = vunpack.c.l.b16 %v739
        %v751 = vunpack.c.l.b16 %v740
        %v752 = vpack.c.b16 %v751, %v750
        %vm754 = vcmask 130048
        %v756 = vsel %vm754, %v731, 0
        %v759 = vsel %vm754, %v732, 0
        %v762 = vsel %vm754, %v733, 0
        %v765 = vsel %vm754, %v734, 0
        %v768 = vsel %vm754, %v735, 0
        %v771 = vsel %vm754, %v736, 0
        %v774 = vsel %vm754, %v737, 0
        %v777 = vsel %vm754, %v738, 0
        %779 = vmatprep.subr.bf16.mxu0 0
        %780 = vmatpush1.bf16.msra.mxu0 0
        %781 = vmatprep.subr.bf16.mxu0 0
        %782 = vmatpush1.bf16.msra.mxu0 0
        %783 = vmatprep.subr.bf16.mxu0 0
        %784 = vmatpush1.bf16.msra.mxu0 0
        %785 = vmatprep.subr.bf16.mxu0 0
        %786 = vmatpush1.bf16.msra.mxu0 0
        %787 = vmatprep.subr.bf16.mxu0 0
        %788 = vmatpush1.bf16.msra.mxu0 0
        %789 = vmatprep.subr.bf16.mxu0 0
        %790 = vmatpush1.bf16.msra.mxu0 0
        %791 = vmatprep.subr.bf16.mxu0 0
        %792 = vmatpush1.bf16.msra.mxu0 0
        %793 = vmatprep.subr.bf16.mxu0 0
        %794 = vmatpush1.bf16.msra.mxu0 %v752
        %795 = vmatprep.subr.bf16.mxu0 0
        %796 = vmatpush2.bf16.msra.mxu0 0
        %797 = vmatprep.subr.bf16.mxu0 0
        %798 = vmatpush2.bf16.msra.mxu0 0
        %799 = vmatprep.subr.bf16.mxu0 0
        %800 = vmatpush2.bf16.msra.mxu0 0
        %801 = vmatprep.subr.bf16.mxu0 0
        %802 = vmatpush2.bf16.msra.mxu0 0
        %803 = vmatprep.subr.bf16.mxu0 0
        %804 = vmatpush2.bf16.msra.mxu0 0
        %805 = vmatprep.subr.bf16.mxu0 0
        %806 = vmatpush2.bf16.msra.mxu0 0
        %807 = vmatprep.subr.bf16.mxu0 0
        %808 = vmatpush2.bf16.msra.mxu0 0
        %809 = vmatprep.subr.bf16.mxu0 0
        %810 = vmatpush2.bf16.msra.mxu0 0
        %811 = vmatprep.mubr.bf16.mxu0 0
        %812 = vmatmul.mubr.bf16.gmra.mxu0 %v756
        %v813 = vpop.f32.mrf.mxu0
        %v814 = vadd.f32 %v746, %v813
        %v815 = vpop.f32.mrf.mxu0
        %v816 = vpop.f32.mrf.mxu0
        %v817 = vadd.f32 %v746, %v816
        %v818 = vpop.f32.mrf.mxu0
        %819 = vmatprep.mubr.bf16.mxu0 0
        %820 = vmatmul.mubr.bf16.gmra.mxu0 %v759
        %v821 = vpop.f32.mrf.mxu0
        %v822 = vadd.f32 %v746, %v821
        %v823 = vpop.f32.mrf.mxu0
        %v824 = vpop.f32.mrf.mxu0
        %v825 = vadd.f32 %v746, %v824
        %v826 = vpop.f32.mrf.mxu0
        %827 = vmatprep.mubr.bf16.mxu0 0
        %828 = vmatmul.mubr.bf16.gmra.mxu0 %v762
        %v829 = vpop.f32.mrf.mxu0
        %v830 = vadd.f32 %v746, %v829
        %v831 = vpop.f32.mrf.mxu0
        %v832 = vpop.f32.mrf.mxu0
        %v833 = vadd.f32 %v746, %v832
        %v834 = vpop.f32.mrf.mxu0
        %835 = vmatprep.mubr.bf16.mxu0 0
        %836 = vmatmul.mubr.bf16.gmra.mxu0 %v765
        %v837 = vpop.f32.mrf.mxu0
        %v838 = vadd.f32 %v746, %v837
        %v839 = vpop.f32.mrf.mxu0
        %v840 = vpop.f32.mrf.mxu0
        %v841 = vadd.f32 %v746, %v840
        %v842 = vpop.f32.mrf.mxu0
        %843 = vmatprep.mubr.bf16.mxu0 0
        %844 = vmatmul.mubr.bf16.gmra.mxu0 %v768
        %v845 = vpop.f32.mrf.mxu0
        %v846 = vadd.f32 %v746, %v845
        %v847 = vpop.f32.mrf.mxu0
        %v848 = vpop.f32.mrf.mxu0
        %v849 = vadd.f32 %v746, %v848
        %v850 = vpop.f32.mrf.mxu0
        %851 = vmatprep.mubr.bf16.mxu0 0
        %852 = vmatmul.mubr.bf16.gmra.mxu0 %v771
        %v853 = vpop.f32.mrf.mxu0
        %v854 = vadd.f32 %v746, %v853
        %v855 = vpop.f32.mrf.mxu0
        %v856 = vpop.f32.mrf.mxu0
        %v857 = vadd.f32 %v746, %v856
        %v858 = vpop.f32.mrf.mxu0
        %859 = vmatprep.mubr.bf16.mxu0 0
        %860 = vmatmul.mubr.bf16.gmra.mxu0 %v774
        %v861 = vpop.f32.mrf.mxu0
        %v862 = vadd.f32 %v746, %v861
        %v863 = vpop.f32.mrf.mxu0
        %v864 = vpop.f32.mrf.mxu0
        %v865 = vadd.f32 %v746, %v864
        %v866 = vpop.f32.mrf.mxu0
        %867 = vmatprep.mubr.bf16.mxu0 0
        %868 = vmatmul.mubr.bf16.gmra.mxu0 %v777
        %v869 = vpop.f32.mrf.mxu0
        %v870 = vadd.f32 %v746, %v869
        %v871 = vpop.f32.mrf.mxu0
        %v872 = vpop.f32.mrf.mxu0
        %v873 = vadd.f32 %v746, %v872
        %v874 = vpop.f32.mrf.mxu0
        %875 = vdwg.mxu0
        %v876 = vmax.f32 %v814, 0.0
        %v877 = vmax.f32 %v817, 0.0
        %v878 = vmax.f32 %v822, 0.0
        %v879 = vmax.f32 %v825, 0.0
        %v880 = vmax.f32 %v830, 0.0
        %v881 = vmax.f32 %v833, 0.0
        %v882 = vmax.f32 %v838, 0.0
        %v883 = vmax.f32 %v841, 0.0
        %v884 = vmax.f32 %v846, 0.0
        %v885 = vmax.f32 %v849, 0.0
        %v886 = vmax.f32 %v854, 0.0
        %v887 = vmax.f32 %v857, 0.0
        %v888 = vmax.f32 %v862, 0.0
        %v889 = vmax.f32 %v865, 0.0
        %v890 = vmax.f32 %v870, 0.0
        %v891 = vmax.f32 %v873, 0.0
        %v892 = vpack.c.bf16 %v877, %v876
        %v893 = vpack.c.bf16 %v879, %v878
        %v894 = vpack.c.bf16 %v881, %v880
        %v895 = vpack.c.bf16 %v883, %v882
        %v896 = vpack.c.bf16 %v885, %v884
        %v897 = vpack.c.bf16 %v887, %v886
        %v898 = vpack.c.bf16 %v889, %v888
        %v899 = vpack.c.bf16 %v891, %v890
        %v900 = vld [vmem:[%s8] sm:$0xf]
        %v901 = vld [vmem:[%s8 + $0x4] sm:$0xf]
        %v902 = vld [vmem:[%s8 + $0x8] sm:$0xf]
        %v903 = vld [vmem:[%s8 + $0xc] sm:$0xf]
        %v904 = vld [vmem:[%s9] sm:$0x1]
        %v906 = vlaneseq
        %v907 = vshrl.u32 %v906, 7
        %v908 = vsub.s32 0, %v907
        %v909 = vrot.slane %v904, %v908
        %v915 = vunpack.c.l.b16 %v900
        %v916 = vunpack.c.l.b16 %v901
        %v917 = vunpack.c.l.b16 %v902
        %v918 = vunpack.c.l.b16 %v903
        %v919 = vpack.c.b16 %v916, %v915
        %v920 = vpack.c.b16 %v918, %v917
        %vm923 = vcmask 261120
        %v925 = vsel %vm923, %v892, 0
        %v928 = vsel %vm923, %v893, 0
        %v931 = vsel %vm923, %v894, 0
        %v934 = vsel %vm923, %v895, 0
        %v937 = vsel %vm923, %v896, 0
        %v940 = vsel %vm923, %v897, 0
        %v943 = vsel %vm923, %v898, 0
        %v946 = vsel %vm923, %v899, 0
        %948 = vmatprep.subr.bf16.mxu0 0
        %949 = vmatpush1.bf16.msra.mxu0 0
        %950 = vmatprep.subr.bf16.mxu0 0
        %951 = vmatpush1.bf16.msra.mxu0 0
        %952 = vmatprep.subr.bf16.mxu0 0
        %953 = vmatpush1.bf16.msra.mxu0 0
        %954 = vmatprep.subr.bf16.mxu0 0
        %955 = vmatpush1.bf16.msra.mxu0 0
        %956 = vmatprep.subr.bf16.mxu0 0
        %957 = vmatpush1.bf16.msra.mxu0 0
        %958 = vmatprep.subr.bf16.mxu0 0
        %959 = vmatpush1.bf16.msra.mxu0 0
        %960 = vmatprep.subr.bf16.mxu0 0
        %961 = vmatpush1.bf16.msra.mxu0 %v920
        %962 = vmatprep.subr.bf16.mxu0 0
        %963 = vmatpush1.bf16.msra.mxu0 %v919
        %964 = vmatprep.subr.bf16.mxu0 0
        %965 = vmatpush2.bf16.msra.mxu0 0
        %966 = vmatprep.subr.bf16.mxu0 0
        %967 = vmatpush2.bf16.msra.mxu0 0
        %968 = vmatprep.subr.bf16.mxu0 0
        %969 = vmatpush2.bf16.msra.mxu0 0
        %970 = vmatprep.subr.bf16.mxu0 0
        %971 = vmatpush2.bf16.msra.mxu0 0
        %972 = vmatprep.subr.bf16.mxu0 0
        %973 = vmatpush2.bf16.msra.mxu0 0
        %974 = vmatprep.subr.bf16.mxu0 0
        %975 = vmatpush2.bf16.msra.mxu0 0
        %976 = vmatprep.subr.bf16.mxu0 0
        %977 = vmatpush2.bf16.msra.mxu0 0
        %978 = vmatprep.subr.bf16.mxu0 0
        %979 = vmatpush2.bf16.msra.mxu0 0
        %980 = vmatprep.mubr.bf16.mxu0 0
        %981 = vmatmul.mubr.bf16.gmra.mxu0 %v925
        %v982 = vpop.f32.mrf.mxu0
        %v983 = vadd.f32 %v909, %v982
        %v984 = vpop.f32.mrf.mxu0
        %v985 = vpop.f32.mrf.mxu0
        %v986 = vadd.f32 %v909, %v985
        %v987 = vpop.f32.mrf.mxu0
        %988 = vmatprep.mubr.bf16.mxu0 0
        %989 = vmatmul.mubr.bf16.gmra.mxu0 %v928
        %v990 = vpop.f32.mrf.mxu0
        %v991 = vadd.f32 %v909, %v990
        %v992 = vpop.f32.mrf.mxu0
        %v993 = vpop.f32.mrf.mxu0
        %v994 = vadd.f32 %v909, %v993
        %v995 = vpop.f32.mrf.mxu0
        %996 = vmatprep.mubr.bf16.mxu0 0
        %997 = vmatmul.mubr.bf16.gmra.mxu0 %v931
        %v998 = vpop.f32.mrf.mxu0
        %v999 = vadd.f32 %v909, %v998
        %v1000 = vpop.f32.mrf.mxu0
        %v1001 = vpop.f32.mrf.mxu0
        %v1002 = vadd.f32 %v909, %v1001
        %v1003 = vpop.f32.mrf.mxu0
        %1004 = vmatprep.mubr.bf16.mxu0 0
        %1005 = vmatmul.mubr.bf16.gmra.mxu0 %v934
        %v1006 = vpop.f32.mrf.mxu0
        %v1007 = vadd.f32 %v909, %v1006
        %v1008 = vpop.f32.mrf.mxu0
        %v1009 = vpop.f32.mrf.mxu0
        %v1010 = vadd.f32 %v909, %v1009
        %v1011 = vpop.f32.mrf.mxu0
        %1012 = vmatprep.mubr.bf16.mxu0 0
        %1013 = vmatmul.mubr.bf16.gmra.mxu0 %v937
        %v1014 = vpop.f32.mrf.mxu0
        %v1015 = vadd.f32 %v909, %v1014
        %v1016 = vpop.f32.mrf.mxu0
        %v1017 = vpop.f32.mrf.mxu0
        %v1018 = vadd.f32 %v909, %v1017
        %v1019 = vpop.f32.mrf.mxu0
        %1020 = vmatprep.mubr.bf16.mxu0 0
        %1021 = vmatmul.mubr.bf16.gmra.mxu0 %v940
        %v1022 = vpop.f32.mrf.mxu0
        %v1023 = vadd.f32 %v909, %v1022
        %v1024 = vpop.f32.mrf.mxu0
        %v1025 = vpop.f32.mrf.mxu0
        %v1026 = vadd.f32 %v909, %v1025
        %v1027 = vpop.f32.mrf.mxu0
        %1028 = vmatprep.mubr.bf16.mxu0 0
        %1029 = vmatmul.mubr.bf16.gmra.mxu0 %v943
        %v1030 = vpop.f32.mrf.mxu0
        %v1031 = vadd.f32 %v909, %v1030
        %v1032 = vpop.f32.mrf.mxu0
        %v1033 = vpop.f32.mrf.mxu0
        %v1034 = vadd.f32 %v909, %v1033
        %v1035 = vpop.f32.mrf.mxu0
        %1036 = vmatprep.mubr.bf16.mxu0 0
        %1037 = vmatmul.mubr.bf16.gmra.mxu0 %v946
        %v1038 = vpop.f32.mrf.mxu0
        %v1039 = vadd.f32 %v909, %v1038
        %v1040 = vpop.f32.mrf.mxu0
        %v1041 = vpop.f32.mrf.mxu0
        %v1042 = vadd.f32 %v909, %v1041
        %v1043 = vpop.f32.mrf.mxu0
        %1044 = vdwg.mxu0
        %v1045 = vmax.f32 %v983, 0.0
        %v1046 = vmax.f32 %v986, 0.0
        %v1047 = vmax.f32 %v991, 0.0
        %v1048 = vmax.f32 %v994, 0.0
        %v1049 = vmax.f32 %v999, 0.0
        %v1050 = vmax.f32 %v1002, 0.0
        %v1051 = vmax.f32 %v1007, 0.0
        %v1052 = vmax.f32 %v1010, 0.0
        %v1053 = vmax.f32 %v1015, 0.0
        %v1054 = vmax.f32 %v1018, 0.0
        %v1055 = vmax.f32 %v1023, 0.0
        %v1056 = vmax.f32 %v1026, 0.0
        %v1057 = vmax.f32 %v1031, 0.0
        %v1058 = vmax.f32 %v1034, 0.0
        %v1059 = vmax.f32 %v1039, 0.0
        %v1060 = vmax.f32 %v1042, 0.0
        %v1061 = vlaneseq
        %v1062 = vand.u32 %v1061, 127
        %v1063 = vld [vmem:[%s658] sm:$0xff]
        %v1064 = vld [vmem:[%s658 + $0x8] sm:$0xff]
        %v1065 = vld [vmem:[%s658 + $0x10] sm:$0xff]
        %v1066 = vld [vmem:[%s658 + $0x18] sm:$0xff]
        %v1067 = vld [vmem:[%s658 + $0x20] sm:$0xff]
        %v1068 = vld [vmem:[%s658 + $0x28] sm:$0xff]
        %v1069 = vld [vmem:[%s658 + $0x30] sm:$0xff]
        %v1070 = vld [vmem:[%s658 + $0x38] sm:$0xff]
        %v1071 = vld [vmem:[%s658 + $0x40] sm:$0xff]
        %v1072 = vld [vmem:[%s658 + $0x48] sm:$0xff]
        %v1073 = vld [vmem:[%s658 + $0x50] sm:$0xff]
        %v1074 = vld [vmem:[%s658 + $0x58] sm:$0xff]
        %v1075 = vld [vmem:[%s658 + $0x60] sm:$0xff]
        %v1076 = vld [vmem:[%s658 + $0x68] sm:$0xff]
        %v1077 = vld [vmem:[%s658 + $0x70] sm:$0xff]
        %v1078 = vld [vmem:[%s658 + $0x78] sm:$0xff]
        %1079 = vset.pattern.permute.xlu0 0
        %1080 = vperm.xlu0 %1079, %v1063
        %v1081 = vpop.permute.xlu0 %1080
        %1082 = vset.pattern.permute.xlu0 0
        %1083 = vperm.xlu0 %1082, %v1064
        %v1084 = vpop.permute.xlu0 %1083
        %1085 = vset.pattern.permute.xlu0 0
        %1086 = vperm.xlu0 %1085, %v1065
        %v1087 = vpop.permute.xlu0 %1086
        %1088 = vset.pattern.permute.xlu0 0
        %1089 = vperm.xlu0 %1088, %v1066
        %v1090 = vpop.permute.xlu0 %1089
        %1091 = vset.pattern.permute.xlu0 0
        %1092 = vperm.xlu0 %1091, %v1067
        %v1093 = vpop.permute.xlu0 %1092
        %1094 = vset.pattern.permute.xlu0 0
        %1095 = vperm.xlu0 %1094, %v1068
        %v1096 = vpop.permute.xlu0 %1095
        %1097 = vset.pattern.permute.xlu0 0
        %1098 = vperm.xlu0 %1097, %v1069
        %v1099 = vpop.permute.xlu0 %1098
        %1100 = vset.pattern.permute.xlu0 0
        %1101 = vperm.xlu0 %1100, %v1070
        %v1102 = vpop.permute.xlu0 %1101
        %1103 = vset.pattern.permute.xlu0 0
        %1104 = vperm.xlu0 %1103, %v1071
        %v1105 = vpop.permute.xlu0 %1104
        %1106 = vset.pattern.permute.xlu0 0
        %1107 = vperm.xlu0 %1106, %v1072
        %v1108 = vpop.permute.xlu0 %1107
        %1109 = vset.pattern.permute.xlu0 0
        %1110 = vperm.xlu0 %1109, %v1073
        %v1111 = vpop.permute.xlu0 %1110
        %1112 = vset.pattern.permute.xlu0 0
        %1113 = vperm.xlu0 %1112, %v1074
        %v1114 = vpop.permute.xlu0 %1113
        %1115 = vset.pattern.permute.xlu0 0
        %1116 = vperm.xlu0 %1115, %v1075
        %v1117 = vpop.permute.xlu0 %1116
        %1118 = vset.pattern.permute.xlu0 0
        %1119 = vperm.xlu0 %1118, %v1076
        %v1120 = vpop.permute.xlu0 %1119
        %1121 = vset.pattern.permute.xlu0 0
        %1122 = vperm.xlu0 %1121, %v1077
        %v1123 = vpop.permute.xlu0 %1122
        %1124 = vset.pattern.permute.xlu0 0
        %1125 = vperm.xlu0 %1124, %v1078
        %v1126 = vpop.permute.xlu0 %1125
        %vm1127 = vcmp.eq.s32.totalorder %v1062, %v1081
        %vm1128 = vcmp.eq.s32.totalorder %v1062, %v1084
        %vm1129 = vcmp.eq.s32.totalorder %v1062, %v1087
        %vm1130 = vcmp.eq.s32.totalorder %v1062, %v1090
        %vm1131 = vcmp.eq.s32.totalorder %v1062, %v1093
        %vm1132 = vcmp.eq.s32.totalorder %v1062, %v1096
        %vm1133 = vcmp.eq.s32.totalorder %v1062, %v1099
        %vm1134 = vcmp.eq.s32.totalorder %v1062, %v1102
        %vm1135 = vcmp.eq.s32.totalorder %v1062, %v1105
        %vm1136 = vcmp.eq.s32.totalorder %v1062, %v1108
        %vm1137 = vcmp.eq.s32.totalorder %v1062, %v1111
        %vm1138 = vcmp.eq.s32.totalorder %v1062, %v1114
        %vm1139 = vcmp.eq.s32.totalorder %v1062, %v1117
        %vm1140 = vcmp.eq.s32.totalorder %v1062, %v1120
        %vm1141 = vcmp.eq.s32.totalorder %v1062, %v1123
        %vm1142 = vcmp.eq.s32.totalorder %v1062, %v1126
        %v1143 = vsel %vm1127, 1, 0
        %v1144 = vsel %vm1128, 1, 0
        %v1145 = vsel %vm1129, 1, 0
        %v1146 = vsel %vm1130, 1, 0
        %v1147 = vsel %vm1131, 1, 0
        %v1148 = vsel %vm1132, 1, 0
        %v1149 = vsel %vm1133, 1, 0
        %v1150 = vsel %vm1134, 1, 0
        %v1151 = vsel %vm1135, 1, 0
        %v1152 = vsel %vm1136, 1, 0
        %v1153 = vsel %vm1137, 1, 0
        %v1154 = vsel %vm1138, 1, 0
        %v1155 = vsel %vm1139, 1, 0
        %v1156 = vsel %vm1140, 1, 0
        %v1157 = vsel %vm1141, 1, 0
        %v1158 = vsel %vm1142, 1, 0
        %v1159 = vcvt.s32.f32 %v1143
        %v1160 = vcvt.s32.f32 %v1144
        %v1161 = vcvt.s32.f32 %v1145
        %v1162 = vcvt.s32.f32 %v1146
        %v1163 = vcvt.s32.f32 %v1147
        %v1164 = vcvt.s32.f32 %v1148
        %v1165 = vcvt.s32.f32 %v1149
        %v1166 = vcvt.s32.f32 %v1150
        %v1167 = vcvt.s32.f32 %v1151
        %v1168 = vcvt.s32.f32 %v1152
        %v1169 = vcvt.s32.f32 %v1153
        %v1170 = vcvt.s32.f32 %v1154
        %v1171 = vcvt.s32.f32 %v1155
        %v1172 = vcvt.s32.f32 %v1156
        %v1173 = vcvt.s32.f32 %v1157
        %v1174 = vcvt.s32.f32 %v1158
        %v1175 = vadd.f32 %v1159, 0.0
        %v1176 = vadd.f32 %v1160, 0.0
        %v1177 = vadd.f32 %v1161, 0.0
        %v1178 = vadd.f32 %v1162, 0.0
        %v1179 = vadd.f32 %v1163, 0.0
        %v1180 = vadd.f32 %v1164, 0.0
        %v1181 = vadd.f32 %v1165, 0.0
        %v1182 = vadd.f32 %v1166, 0.0
        %v1183 = vadd.f32 %v1167, 0.0
        %v1184 = vadd.f32 %v1168, 0.0
        %v1185 = vadd.f32 %v1169, 0.0
        %v1186 = vadd.f32 %v1170, 0.0
        %v1187 = vadd.f32 %v1171, 0.0
        %v1188 = vadd.f32 %v1172, 0.0
        %v1189 = vadd.f32 %v1173, 0.0
        %v1190 = vadd.f32 %v1174, 0.0
        %1191 = vset.pattern.permute.xlu0 1
        %1192 = vperm.xlu0 %1191, %v1063
        %v1193 = vpop.permute.xlu0 %1192
        %1194 = vset.pattern.permute.xlu0 1
        %1195 = vperm.xlu0 %1194, %v1064
        %v1196 = vpop.permute.xlu0 %1195
        %1197 = vset.pattern.permute.xlu0 1
        %1198 = vperm.xlu0 %1197, %v1065
        %v1199 = vpop.permute.xlu0 %1198
        %1200 = vset.pattern.permute.xlu0 1
        %1201 = vperm.xlu0 %1200, %v1066
        %v1202 = vpop.permute.xlu0 %1201
        %1203 = vset.pattern.permute.xlu0 1
        %1204 = vperm.xlu0 %1203, %v1067
        %v1205 = vpop.permute.xlu0 %1204
        %1206 = vset.pattern.permute.xlu0 1
        %1207 = vperm.xlu0 %1206, %v1068
        %v1208 = vpop.permute.xlu0 %1207
        %1209 = vset.pattern.permute.xlu0 1
        %1210 = vperm.xlu0 %1209, %v1069
        %v1211 = vpop.permute.xlu0 %1210
        %1212 = vset.pattern.permute.xlu0 1
        %1213 = vperm.xlu0 %1212, %v1070
        %v1214 = vpop.permute.xlu0 %1213
        %1215 = vset.pattern.permute.xlu0 1
        %1216 = vperm.xlu0 %1215, %v1071
        %v1217 = vpop.permute.xlu0 %1216
        %1218 = vset.pattern.permute.xlu0 1
        %1219 = vperm.xlu0 %1218, %v1072
        %v1220 = vpop.permute.xlu0 %1219
        %1221 = vset.pattern.permute.xlu0 1
        %1222 = vperm.xlu0 %1221, %v1073
        %v1223 = vpop.permute.xlu0 %1222
        %1224 = vset.pattern.permute.xlu0 1
        %1225 = vperm.xlu0 %1224, %v1074
        %v1226 = vpop.permute.xlu0 %1225
        %1227 = vset.pattern.permute.xlu0 1
        %1228 = vperm.xlu0 %1227, %v1075
        %v1229 = vpop.permute.xlu0 %1228
        %1230 = vset.pattern.permute.xlu0 1
        %1231 = vperm.xlu0 %1230, %v1076
        %v1232 = vpop.permute.xlu0 %1231
        %1233 = vset.pattern.permute.xlu0 1
        %1234 = vperm.xlu0 %1233, %v1077
        %v1235 = vpop.permute.xlu0 %1234
        %1236 = vset.pattern.permute.xlu0 1
        %1237 = vperm.xlu0 %1236, %v1078
        %v1238 = vpop.permute.xlu0 %1237
        %vm1239 = vcmp.eq.s32.totalorder %v1062, %v1193
        %vm1240 = vcmp.eq.s32.totalorder %v1062, %v1196
        %vm1241 = vcmp.eq.s32.totalorder %v1062, %v1199
        %vm1242 = vcmp.eq.s32.totalorder %v1062, %v1202
        %vm1243 = vcmp.eq.s32.totalorder %v1062, %v1205
        %vm1244 = vcmp.eq.s32.totalorder %v1062, %v1208
        %vm1245 = vcmp.eq.s32.totalorder %v1062, %v1211
        %vm1246 = vcmp.eq.s32.totalorder %v1062, %v1214
        %vm1247 = vcmp.eq.s32.totalorder %v1062, %v1217
        %vm1248 = vcmp.eq.s32.totalorder %v1062, %v1220
        %vm1249 = vcmp.eq.s32.totalorder %v1062, %v1223
        %vm1250 = vcmp.eq.s32.totalorder %v1062, %v1226
        %vm1251 = vcmp.eq.s32.totalorder %v1062, %v1229
        %vm1252 = vcmp.eq.s32.totalorder %v1062, %v1232
        %vm1253 = vcmp.eq.s32.totalorder %v1062, %v1235
        %vm1254 = vcmp.eq.s32.totalorder %v1062, %v1238
        %v1255 = vsel %vm1239, 1, 0
        %v1256 = vsel %vm1240, 1, 0
        %v1257 = vsel %vm1241, 1, 0
        %v1258 = vsel %vm1242, 1, 0
        %v1259 = vsel %vm1243, 1, 0
        %v1260 = vsel %vm1244, 1, 0
        %v1261 = vsel %vm1245, 1, 0
        %v1262 = vsel %vm1246, 1, 0
        %v1263 = vsel %vm1247, 1, 0
        %v1264 = vsel %vm1248, 1, 0
        %v1265 = vsel %vm1249, 1, 0
        %v1266 = vsel %vm1250, 1, 0
        %v1267 = vsel %vm1251, 1, 0
        %v1268 = vsel %vm1252, 1, 0
        %v1269 = vsel %vm1253, 1, 0
        %v1270 = vsel %vm1254, 1, 0
        %v1271 = vcvt.s32.f32 %v1255
        %v1272 = vcvt.s32.f32 %v1256
        %v1273 = vcvt.s32.f32 %v1257
        %v1274 = vcvt.s32.f32 %v1258
        %v1275 = vcvt.s32.f32 %v1259
        %v1276 = vcvt.s32.f32 %v1260
        %v1277 = vcvt.s32.f32 %v1261
        %v1278 = vcvt.s32.f32 %v1262
        %v1279 = vcvt.s32.f32 %v1263
        %v1280 = vcvt.s32.f32 %v1264
        %v1281 = vcvt.s32.f32 %v1265
        %v1282 = vcvt.s32.f32 %v1266
        %v1283 = vcvt.s32.f32 %v1267
        %v1284 = vcvt.s32.f32 %v1268
        %v1285 = vcvt.s32.f32 %v1269
        %v1286 = vcvt.s32.f32 %v1270
        %v1287 = vadd.f32 %v1175, %v1271
        %v1288 = vadd.f32 %v1176, %v1272
        %v1289 = vadd.f32 %v1177, %v1273
        %v1290 = vadd.f32 %v1178, %v1274
        %v1291 = vadd.f32 %v1179, %v1275
        %v1292 = vadd.f32 %v1180, %v1276
        %v1293 = vadd.f32 %v1181, %v1277
        %v1294 = vadd.f32 %v1182, %v1278
        %v1295 = vadd.f32 %v1183, %v1279
        %v1296 = vadd.f32 %v1184, %v1280
        %v1297 = vadd.f32 %v1185, %v1281
        %v1298 = vadd.f32 %v1186, %v1282
        %v1299 = vadd.f32 %v1187, %v1283
        %v1300 = vadd.f32 %v1188, %v1284
        %v1301 = vadd.f32 %v1189, %v1285
        %v1302 = vadd.f32 %v1190, %v1286
        %1303 = vset.pattern.permute.xlu0 2
        %1304 = vperm.xlu0 %1303, %v1063
        %v1305 = vpop.permute.xlu0 %1304
        %1306 = vset.pattern.permute.xlu0 2
        %1307 = vperm.xlu0 %1306, %v1064
        %v1308 = vpop.permute.xlu0 %1307
        %1309 = vset.pattern.permute.xlu0 2
        %1310 = vperm.xlu0 %1309, %v1065
        %v1311 = vpop.permute.xlu0 %1310
        %1312 = vset.pattern.permute.xlu0 2
        %1313 = vperm.xlu0 %1312, %v1066
        %v1314 = vpop.permute.xlu0 %1313
        %1315 = vset.pattern.permute.xlu0 2
        %1316 = vperm.xlu0 %1315, %v1067
        %v1317 = vpop.permute.xlu0 %1316
        %1318 = vset.pattern.permute.xlu0 2
        %1319 = vperm.xlu0 %1318, %v1068
        %v1320 = vpop.permute.xlu0 %1319
        %1321 = vset.pattern.permute.xlu0 2
        %1322 = vperm.xlu0 %1321, %v1069
        %v1323 = vpop.permute.xlu0 %1322
        %1324 = vset.pattern.permute.xlu0 2
        %1325 = vperm.xlu0 %1324, %v1070
        %v1326 = vpop.permute.xlu0 %1325
        %1327 = vset.pattern.permute.xlu0 2
        %1328 = vperm.xlu0 %1327, %v1071
        %v1329 = vpop.permute.xlu0 %1328
        %1330 = vset.pattern.permute.xlu0 2
        %1331 = vperm.xlu0 %1330, %v1072
        %v1332 = vpop.permute.xlu0 %1331
        %1333 = vset.pattern.permute.xlu0 2
        %1334 = vperm.xlu0 %1333, %v1073
        %v1335 = vpop.permute.xlu0 %1334
        %1336 = vset.pattern.permute.xlu0 2
        %1337 = vperm.xlu0 %1336, %v1074
        %v1338 = vpop.permute.xlu0 %1337
        %1339 = vset.pattern.permute.xlu0 2
        %1340 = vperm.xlu0 %1339, %v1075
        %v1341 = vpop.permute.xlu0 %1340
        %1342 = vset.pattern.permute.xlu0 2
        %1343 = vperm.xlu0 %1342, %v1076
        %v1344 = vpop.permute.xlu0 %1343
        %1345 = vset.pattern.permute.xlu0 2
        %1346 = vperm.xlu0 %1345, %v1077
        %v1347 = vpop.permute.xlu0 %1346
        %1348 = vset.pattern.permute.xlu0 2
        %1349 = vperm.xlu0 %1348, %v1078
        %v1350 = vpop.permute.xlu0 %1349
        %vm1351 = vcmp.eq.s32.totalorder %v1062, %v1305
        %vm1352 = vcmp.eq.s32.totalorder %v1062, %v1308
        %vm1353 = vcmp.eq.s32.totalorder %v1062, %v1311
        %vm1354 = vcmp.eq.s32.totalorder %v1062, %v1314
        %vm1355 = vcmp.eq.s32.totalorder %v1062, %v1317
        %vm1356 = vcmp.eq.s32.totalorder %v1062, %v1320
        %vm1357 = vcmp.eq.s32.totalorder %v1062, %v1323
        %vm1358 = vcmp.eq.s32.totalorder %v1062, %v1326
        %vm1359 = vcmp.eq.s32.totalorder %v1062, %v1329
        %vm1360 = vcmp.eq.s32.totalorder %v1062, %v1332
        %vm1361 = vcmp.eq.s32.totalorder %v1062, %v1335
        %vm1362 = vcmp.eq.s32.totalorder %v1062, %v1338
        %vm1363 = vcmp.eq.s32.totalorder %v1062, %v1341
        %vm1364 = vcmp.eq.s32.totalorder %v1062, %v1344
        %vm1365 = vcmp.eq.s32.totalorder %v1062, %v1347
        %vm1366 = vcmp.eq.s32.totalorder %v1062, %v1350
        %v1367 = vsel %vm1351, 1, 0
        %v1368 = vsel %vm1352, 1, 0
        %v1369 = vsel %vm1353, 1, 0
        %v1370 = vsel %vm1354, 1, 0
        %v1371 = vsel %vm1355, 1, 0
        %v1372 = vsel %vm1356, 1, 0
        %v1373 = vsel %vm1357, 1, 0
        %v1374 = vsel %vm1358, 1, 0
        %v1375 = vsel %vm1359, 1, 0
        %v1376 = vsel %vm1360, 1, 0
        %v1377 = vsel %vm1361, 1, 0
        %v1378 = vsel %vm1362, 1, 0
        %v1379 = vsel %vm1363, 1, 0
        %v1380 = vsel %vm1364, 1, 0
        %v1381 = vsel %vm1365, 1, 0
        %v1382 = vsel %vm1366, 1, 0
        %v1383 = vcvt.s32.f32 %v1367
        %v1384 = vcvt.s32.f32 %v1368
        %v1385 = vcvt.s32.f32 %v1369
        %v1386 = vcvt.s32.f32 %v1370
        %v1387 = vcvt.s32.f32 %v1371
        %v1388 = vcvt.s32.f32 %v1372
        %v1389 = vcvt.s32.f32 %v1373
        %v1390 = vcvt.s32.f32 %v1374
        %v1391 = vcvt.s32.f32 %v1375
        %v1392 = vcvt.s32.f32 %v1376
        %v1393 = vcvt.s32.f32 %v1377
        %v1394 = vcvt.s32.f32 %v1378
        %v1395 = vcvt.s32.f32 %v1379
        %v1396 = vcvt.s32.f32 %v1380
        %v1397 = vcvt.s32.f32 %v1381
        %v1398 = vcvt.s32.f32 %v1382
        %v1399 = vadd.f32 %v1287, %v1383
        %v1400 = vadd.f32 %v1288, %v1384
        %v1401 = vadd.f32 %v1289, %v1385
        %v1402 = vadd.f32 %v1290, %v1386
        %v1403 = vadd.f32 %v1291, %v1387
        %v1404 = vadd.f32 %v1292, %v1388
        %v1405 = vadd.f32 %v1293, %v1389
        %v1406 = vadd.f32 %v1294, %v1390
        %v1407 = vadd.f32 %v1295, %v1391
        %v1408 = vadd.f32 %v1296, %v1392
        %v1409 = vadd.f32 %v1297, %v1393
        %v1410 = vadd.f32 %v1298, %v1394
        %v1411 = vadd.f32 %v1299, %v1395
        %v1412 = vadd.f32 %v1300, %v1396
        %v1413 = vadd.f32 %v1301, %v1397
        %v1414 = vadd.f32 %v1302, %v1398
        %1415 = vset.pattern.permute.xlu0 3
        %1416 = vperm.xlu0 %1415, %v1063
        %v1417 = vpop.permute.xlu0 %1416
        %1418 = vset.pattern.permute.xlu0 3
        %1419 = vperm.xlu0 %1418, %v1064
        %v1420 = vpop.permute.xlu0 %1419
        %1421 = vset.pattern.permute.xlu0 3
        %1422 = vperm.xlu0 %1421, %v1065
        %v1423 = vpop.permute.xlu0 %1422
        %1424 = vset.pattern.permute.xlu0 3
        %1425 = vperm.xlu0 %1424, %v1066
        %v1426 = vpop.permute.xlu0 %1425
        %1427 = vset.pattern.permute.xlu0 3
        %1428 = vperm.xlu0 %1427, %v1067
        %v1429 = vpop.permute.xlu0 %1428
        %1430 = vset.pattern.permute.xlu0 3
        %1431 = vperm.xlu0 %1430, %v1068
        %v1432 = vpop.permute.xlu0 %1431
        %1433 = vset.pattern.permute.xlu0 3
        %1434 = vperm.xlu0 %1433, %v1069
        %v1435 = vpop.permute.xlu0 %1434
        %1436 = vset.pattern.permute.xlu0 3
        %1437 = vperm.xlu0 %1436, %v1070
        %v1438 = vpop.permute.xlu0 %1437
        %1439 = vset.pattern.permute.xlu0 3
        %1440 = vperm.xlu0 %1439, %v1071
        %v1441 = vpop.permute.xlu0 %1440
        %1442 = vset.pattern.permute.xlu0 3
        %1443 = vperm.xlu0 %1442, %v1072
        %v1444 = vpop.permute.xlu0 %1443
        %1445 = vset.pattern.permute.xlu0 3
        %1446 = vperm.xlu0 %1445, %v1073
        %v1447 = vpop.permute.xlu0 %1446
        %1448 = vset.pattern.permute.xlu0 3
        %1449 = vperm.xlu0 %1448, %v1074
        %v1450 = vpop.permute.xlu0 %1449
        %1451 = vset.pattern.permute.xlu0 3
        %1452 = vperm.xlu0 %1451, %v1075
        %v1453 = vpop.permute.xlu0 %1452
        %1454 = vset.pattern.permute.xlu0 3
        %1455 = vperm.xlu0 %1454, %v1076
        %v1456 = vpop.permute.xlu0 %1455
        %1457 = vset.pattern.permute.xlu0 3
        %1458 = vperm.xlu0 %1457, %v1077
        %v1459 = vpop.permute.xlu0 %1458
        %1460 = vset.pattern.permute.xlu0 3
        %1461 = vperm.xlu0 %1460, %v1078
        %v1462 = vpop.permute.xlu0 %1461
        %vm1463 = vcmp.eq.s32.totalorder %v1062, %v1417
        %vm1464 = vcmp.eq.s32.totalorder %v1062, %v1420
        %vm1465 = vcmp.eq.s32.totalorder %v1062, %v1423
        %vm1466 = vcmp.eq.s32.totalorder %v1062, %v1426
        %vm1467 = vcmp.eq.s32.totalorder %v1062, %v1429
        %vm1468 = vcmp.eq.s32.totalorder %v1062, %v1432
        %vm1469 = vcmp.eq.s32.totalorder %v1062, %v1435
        %vm1470 = vcmp.eq.s32.totalorder %v1062, %v1438
        %vm1471 = vcmp.eq.s32.totalorder %v1062, %v1441
        %vm1472 = vcmp.eq.s32.totalorder %v1062, %v1444
        %vm1473 = vcmp.eq.s32.totalorder %v1062, %v1447
        %vm1474 = vcmp.eq.s32.totalorder %v1062, %v1450
        %vm1475 = vcmp.eq.s32.totalorder %v1062, %v1453
        %vm1476 = vcmp.eq.s32.totalorder %v1062, %v1456
        %vm1477 = vcmp.eq.s32.totalorder %v1062, %v1459
        %vm1478 = vcmp.eq.s32.totalorder %v1062, %v1462
        %v1479 = vsel %vm1463, 1, 0
        %v1480 = vsel %vm1464, 1, 0
        %v1481 = vsel %vm1465, 1, 0
        %v1482 = vsel %vm1466, 1, 0
        %v1483 = vsel %vm1467, 1, 0
        %v1484 = vsel %vm1468, 1, 0
        %v1485 = vsel %vm1469, 1, 0
        %v1486 = vsel %vm1470, 1, 0
        %v1487 = vsel %vm1471, 1, 0
        %v1488 = vsel %vm1472, 1, 0
        %v1489 = vsel %vm1473, 1, 0
        %v1490 = vsel %vm1474, 1, 0
        %v1491 = vsel %vm1475, 1, 0
        %v1492 = vsel %vm1476, 1, 0
        %v1493 = vsel %vm1477, 1, 0
        %v1494 = vsel %vm1478, 1, 0
        %v1495 = vcvt.s32.f32 %v1479
        %v1496 = vcvt.s32.f32 %v1480
        %v1497 = vcvt.s32.f32 %v1481
        %v1498 = vcvt.s32.f32 %v1482
        %v1499 = vcvt.s32.f32 %v1483
        %v1500 = vcvt.s32.f32 %v1484
        %v1501 = vcvt.s32.f32 %v1485
        %v1502 = vcvt.s32.f32 %v1486
        %v1503 = vcvt.s32.f32 %v1487
        %v1504 = vcvt.s32.f32 %v1488
        %v1505 = vcvt.s32.f32 %v1489
        %v1506 = vcvt.s32.f32 %v1490
        %v1507 = vcvt.s32.f32 %v1491
        %v1508 = vcvt.s32.f32 %v1492
        %v1509 = vcvt.s32.f32 %v1493
        %v1510 = vcvt.s32.f32 %v1494
        %v1511 = vadd.f32 %v1399, %v1495
        %v1512 = vadd.f32 %v1400, %v1496
        %v1513 = vadd.f32 %v1401, %v1497
        %v1514 = vadd.f32 %v1402, %v1498
        %v1515 = vadd.f32 %v1403, %v1499
        %v1516 = vadd.f32 %v1404, %v1500
        %v1517 = vadd.f32 %v1405, %v1501
        %v1518 = vadd.f32 %v1406, %v1502
        %v1519 = vadd.f32 %v1407, %v1503
        %v1520 = vadd.f32 %v1408, %v1504
        %v1521 = vadd.f32 %v1409, %v1505
        %v1522 = vadd.f32 %v1410, %v1506
        %v1523 = vadd.f32 %v1411, %v1507
        %v1524 = vadd.f32 %v1412, %v1508
        %v1525 = vadd.f32 %v1413, %v1509
        %v1526 = vadd.f32 %v1414, %v1510
        %v1527 = vpack.c.bf16 %v1512, %v1511
        %v1528 = vpack.c.bf16 %v1514, %v1513
        %v1529 = vpack.c.bf16 %v1516, %v1515
        %v1530 = vpack.c.bf16 %v1518, %v1517
        %v1531 = vpack.c.bf16 %v1520, %v1519
        %v1532 = vpack.c.bf16 %v1522, %v1521
        %v1533 = vpack.c.bf16 %v1524, %v1523
        %v1534 = vpack.c.bf16 %v1526, %v1525
        %v1535 = vld [vmem:[%s2] sm:$0xf]
        %v1536 = vld [vmem:[%s2 + $0x4] sm:$0xf]
        %v1537 = vld [vmem:[%s2 + $0x8] sm:$0xf]
        %v1538 = vld [vmem:[%s2 + $0xc] sm:$0xf]
        %v1539 = vld [vmem:[%s2 + $0x10] sm:$0xf]
        %v1540 = vld [vmem:[%s2 + $0x14] sm:$0xf]
        %v1541 = vld [vmem:[%s2 + $0x18] sm:$0xf]
        %v1542 = vld [vmem:[%s2 + $0x1c] sm:$0xf]
        %v1543 = vld [vmem:[%s2 + $0x20] sm:$0xf]
        %v1544 = vld [vmem:[%s2 + $0x24] sm:$0xf]
        %v1545 = vld [vmem:[%s2 + $0x28] sm:$0xf]
        %v1546 = vld [vmem:[%s2 + $0x2c] sm:$0xf]
        %v1547 = vld [vmem:[%s2 + $0x30] sm:$0xf]
        %v1548 = vld [vmem:[%s2 + $0x34] sm:$0xf]
        %v1549 = vld [vmem:[%s2 + $0x38] sm:$0xf]
        %v1550 = vld [vmem:[%s2 + $0x3c] sm:$0xf]
        %v1567 = vunpack.c.l.b16 %v1535
        %v1568 = vunpack.c.l.b16 %v1536
        %v1569 = vunpack.c.l.b16 %v1537
        %v1570 = vunpack.c.l.b16 %v1538
        %v1571 = vunpack.c.l.b16 %v1539
        %v1572 = vunpack.c.l.b16 %v1540
        %v1573 = vunpack.c.l.b16 %v1541
        %v1574 = vunpack.c.l.b16 %v1542
        %v1575 = vunpack.c.l.b16 %v1543
        %v1576 = vunpack.c.l.b16 %v1544
        %v1577 = vunpack.c.l.b16 %v1545
        %v1578 = vunpack.c.l.b16 %v1546
        %v1579 = vunpack.c.l.b16 %v1547
        %v1580 = vunpack.c.l.b16 %v1548
        %v1581 = vunpack.c.l.b16 %v1549
        %v1582 = vunpack.c.l.b16 %v1550
        %v1583 = vpack.c.b16 %v1568, %v1567
        %v1584 = vpack.c.b16 %v1570, %v1569
        %v1585 = vpack.c.b16 %v1572, %v1571
        %v1586 = vpack.c.b16 %v1574, %v1573
        %v1587 = vpack.c.b16 %v1576, %v1575
        %v1588 = vpack.c.b16 %v1578, %v1577
        %v1589 = vpack.c.b16 %v1580, %v1579
        %v1590 = vpack.c.b16 %v1582, %v1581
        %1599 = vmatprep.subr.bf16.mxu0 0
        %1600 = vmatpush1.bf16.msra.mxu0 %v1590
        %1601 = vmatprep.subr.bf16.mxu0 0
        %1602 = vmatpush1.bf16.msra.mxu0 %v1589
        %1603 = vmatprep.subr.bf16.mxu0 0
        %1604 = vmatpush1.bf16.msra.mxu0 %v1588
        %1605 = vmatprep.subr.bf16.mxu0 0
        %1606 = vmatpush1.bf16.msra.mxu0 %v1587
        %1607 = vmatprep.subr.bf16.mxu0 0
        %1608 = vmatpush1.bf16.msra.mxu0 %v1586
        %1609 = vmatprep.subr.bf16.mxu0 0
        %1610 = vmatpush1.bf16.msra.mxu0 %v1585
        %1611 = vmatprep.subr.bf16.mxu0 0
        %1612 = vmatpush1.bf16.msra.mxu0 %v1584
        %1613 = vmatprep.subr.bf16.mxu0 0
        %1614 = vmatpush1.bf16.msra.mxu0 %v1583
        %1615 = vmatprep.subr.bf16.mxu0 0
        %1616 = vmatpush2.bf16.msra.mxu0 0
        %1617 = vmatprep.subr.bf16.mxu0 0
        %1618 = vmatpush2.bf16.msra.mxu0 0
        %1619 = vmatprep.subr.bf16.mxu0 0
        %1620 = vmatpush2.bf16.msra.mxu0 0
        %1621 = vmatprep.subr.bf16.mxu0 0
        %1622 = vmatpush2.bf16.msra.mxu0 0
        %1623 = vmatprep.subr.bf16.mxu0 0
        %1624 = vmatpush2.bf16.msra.mxu0 0
        %1625 = vmatprep.subr.bf16.mxu0 0
        %1626 = vmatpush2.bf16.msra.mxu0 0
        %1627 = vmatprep.subr.bf16.mxu0 0
        %1628 = vmatpush2.bf16.msra.mxu0 0
        %1629 = vmatprep.subr.bf16.mxu0 0
        %1630 = vmatpush2.bf16.msra.mxu0 0
        %1631 = vmatprep.mubr.bf16.mxu0 0
        %1632 = vmatmul.mubr.bf16.gmra.mxu0 %v1527
        %v1633 = vpop.f32.mrf.mxu0
        %v1634 = vadd.f32 0.0, %v1633
        %v1635 = vpop.f32.mrf.mxu0
        %v1636 = vpop.f32.mrf.mxu0
        %v1637 = vadd.f32 0.0, %v1636
        %v1638 = vpop.f32.mrf.mxu0
        %1639 = vmatprep.mubr.bf16.mxu0 0
        %1640 = vmatmul.mubr.bf16.gmra.mxu0 %v1528
        %v1641 = vpop.f32.mrf.mxu0
        %v1642 = vadd.f32 0.0, %v1641
        %v1643 = vpop.f32.mrf.mxu0
        %v1644 = vpop.f32.mrf.mxu0
        %v1645 = vadd.f32 0.0, %v1644
        %v1646 = vpop.f32.mrf.mxu0
        %1647 = vmatprep.mubr.bf16.mxu0 0
        %1648 = vmatmul.mubr.bf16.gmra.mxu0 %v1529
        %v1649 = vpop.f32.mrf.mxu0
        %v1650 = vadd.f32 0.0, %v1649
        %v1651 = vpop.f32.mrf.mxu0
        %v1652 = vpop.f32.mrf.mxu0
        %v1653 = vadd.f32 0.0, %v1652
        %v1654 = vpop.f32.mrf.mxu0
        %1655 = vmatprep.mubr.bf16.mxu0 0
        %1656 = vmatmul.mubr.bf16.gmra.mxu0 %v1530
        %v1657 = vpop.f32.mrf.mxu0
        %v1658 = vadd.f32 0.0, %v1657
        %v1659 = vpop.f32.mrf.mxu0
        %v1660 = vpop.f32.mrf.mxu0
        %v1661 = vadd.f32 0.0, %v1660
        %v1662 = vpop.f32.mrf.mxu0
        %1663 = vmatprep.mubr.bf16.mxu0 0
        %1664 = vmatmul.mubr.bf16.gmra.mxu0 %v1531
        %v1665 = vpop.f32.mrf.mxu0
        %v1666 = vadd.f32 0.0, %v1665
        %v1667 = vpop.f32.mrf.mxu0
        %v1668 = vpop.f32.mrf.mxu0
        %v1669 = vadd.f32 0.0, %v1668
        %v1670 = vpop.f32.mrf.mxu0
        %1671 = vmatprep.mubr.bf16.mxu0 0
        %1672 = vmatmul.mubr.bf16.gmra.mxu0 %v1532
        %v1673 = vpop.f32.mrf.mxu0
        %v1674 = vadd.f32 0.0, %v1673
        %v1675 = vpop.f32.mrf.mxu0
        %v1676 = vpop.f32.mrf.mxu0
        %v1677 = vadd.f32 0.0, %v1676
        %v1678 = vpop.f32.mrf.mxu0
        %1679 = vmatprep.mubr.bf16.mxu0 0
        %1680 = vmatmul.mubr.bf16.gmra.mxu0 %v1533
        %v1681 = vpop.f32.mrf.mxu0
        %v1682 = vadd.f32 0.0, %v1681
        %v1683 = vpop.f32.mrf.mxu0
        %v1684 = vpop.f32.mrf.mxu0
        %v1685 = vadd.f32 0.0, %v1684
        %v1686 = vpop.f32.mrf.mxu0
        %1687 = vmatprep.mubr.bf16.mxu0 0
        %1688 = vmatmul.mubr.bf16.gmra.mxu0 %v1534
        %v1689 = vpop.f32.mrf.mxu0
        %v1690 = vadd.f32 0.0, %v1689
        %v1691 = vpop.f32.mrf.mxu0
        %v1692 = vpop.f32.mrf.mxu0
        %v1693 = vadd.f32 0.0, %v1692
        %v1694 = vpop.f32.mrf.mxu0
        %1695 = vdwg.mxu0
        %s1696 = scalar_lea.vmem %s658, 128 [#allocation2]
        %v1697 = vld [vmem:[%s1696] sm:$0xff]
        %v1698 = vld [vmem:[%s1696 + $0x8] sm:$0xff]
        %v1699 = vld [vmem:[%s1696 + $0x10] sm:$0xff]
        %v1700 = vld [vmem:[%s1696 + $0x18] sm:$0xff]
        %v1701 = vld [vmem:[%s1696 + $0x20] sm:$0xff]
        %v1702 = vld [vmem:[%s1696 + $0x28] sm:$0xff]
        %v1703 = vld [vmem:[%s1696 + $0x30] sm:$0xff]
        %v1704 = vld [vmem:[%s1696 + $0x38] sm:$0xff]
        %v1705 = vld [vmem:[%s1696 + $0x40] sm:$0xff]
        %v1706 = vld [vmem:[%s1696 + $0x48] sm:$0xff]
        %v1707 = vld [vmem:[%s1696 + $0x50] sm:$0xff]
        %v1708 = vld [vmem:[%s1696 + $0x58] sm:$0xff]
        %v1709 = vld [vmem:[%s1696 + $0x60] sm:$0xff]
        %v1710 = vld [vmem:[%s1696 + $0x68] sm:$0xff]
        %v1711 = vld [vmem:[%s1696 + $0x70] sm:$0xff]
        %v1712 = vld [vmem:[%s1696 + $0x78] sm:$0xff]
        %1713 = vset.pattern.permute.xlu0 0
        %1714 = vperm.xlu0 %1713, %v1697
        %v1715 = vpop.permute.xlu0 %1714
        %1716 = vset.pattern.permute.xlu0 0
        %1717 = vperm.xlu0 %1716, %v1698
        %v1718 = vpop.permute.xlu0 %1717
        %1719 = vset.pattern.permute.xlu0 0
        %1720 = vperm.xlu0 %1719, %v1699
        %v1721 = vpop.permute.xlu0 %1720
        %1722 = vset.pattern.permute.xlu0 0
        %1723 = vperm.xlu0 %1722, %v1700
        %v1724 = vpop.permute.xlu0 %1723
        %1725 = vset.pattern.permute.xlu0 0
        %1726 = vperm.xlu0 %1725, %v1701
        %v1727 = vpop.permute.xlu0 %1726
        %1728 = vset.pattern.permute.xlu0 0
        %1729 = vperm.xlu0 %1728, %v1702
        %v1730 = vpop.permute.xlu0 %1729
        %1731 = vset.pattern.permute.xlu0 0
        %1732 = vperm.xlu0 %1731, %v1703
        %v1733 = vpop.permute.xlu0 %1732
        %1734 = vset.pattern.permute.xlu0 0
        %1735 = vperm.xlu0 %1734, %v1704
        %v1736 = vpop.permute.xlu0 %1735
        %1737 = vset.pattern.permute.xlu0 0
        %1738 = vperm.xlu0 %1737, %v1705
        %v1739 = vpop.permute.xlu0 %1738
        %1740 = vset.pattern.permute.xlu0 0
        %1741 = vperm.xlu0 %1740, %v1706
        %v1742 = vpop.permute.xlu0 %1741
        %1743 = vset.pattern.permute.xlu0 0
        %1744 = vperm.xlu0 %1743, %v1707
        %v1745 = vpop.permute.xlu0 %1744
        %1746 = vset.pattern.permute.xlu0 0
        %1747 = vperm.xlu0 %1746, %v1708
        %v1748 = vpop.permute.xlu0 %1747
        %1749 = vset.pattern.permute.xlu0 0
        %1750 = vperm.xlu0 %1749, %v1709
        %v1751 = vpop.permute.xlu0 %1750
        %1752 = vset.pattern.permute.xlu0 0
        %1753 = vperm.xlu0 %1752, %v1710
        %v1754 = vpop.permute.xlu0 %1753
        %1755 = vset.pattern.permute.xlu0 0
        %1756 = vperm.xlu0 %1755, %v1711
        %v1757 = vpop.permute.xlu0 %1756
        %1758 = vset.pattern.permute.xlu0 0
        %1759 = vperm.xlu0 %1758, %v1712
        %v1760 = vpop.permute.xlu0 %1759
        %vm1761 = vcmp.eq.s32.totalorder %v1062, %v1715
        %vm1762 = vcmp.eq.s32.totalorder %v1062, %v1718
        %vm1763 = vcmp.eq.s32.totalorder %v1062, %v1721
        %vm1764 = vcmp.eq.s32.totalorder %v1062, %v1724
        %vm1765 = vcmp.eq.s32.totalorder %v1062, %v1727
        %vm1766 = vcmp.eq.s32.totalorder %v1062, %v1730
        %vm1767 = vcmp.eq.s32.totalorder %v1062, %v1733
        %vm1768 = vcmp.eq.s32.totalorder %v1062, %v1736
        %vm1769 = vcmp.eq.s32.totalorder %v1062, %v1739
        %vm1770 = vcmp.eq.s32.totalorder %v1062, %v1742
        %vm1771 = vcmp.eq.s32.totalorder %v1062, %v1745
        %vm1772 = vcmp.eq.s32.totalorder %v1062, %v1748
        %vm1773 = vcmp.eq.s32.totalorder %v1062, %v1751
        %vm1774 = vcmp.eq.s32.totalorder %v1062, %v1754
        %vm1775 = vcmp.eq.s32.totalorder %v1062, %v1757
        %vm1776 = vcmp.eq.s32.totalorder %v1062, %v1760
        %v1777 = vsel %vm1761, 1, 0
        %v1778 = vsel %vm1762, 1, 0
        %v1779 = vsel %vm1763, 1, 0
        %v1780 = vsel %vm1764, 1, 0
        %v1781 = vsel %vm1765, 1, 0
        %v1782 = vsel %vm1766, 1, 0
        %v1783 = vsel %vm1767, 1, 0
        %v1784 = vsel %vm1768, 1, 0
        %v1785 = vsel %vm1769, 1, 0
        %v1786 = vsel %vm1770, 1, 0
        %v1787 = vsel %vm1771, 1, 0
        %v1788 = vsel %vm1772, 1, 0
        %v1789 = vsel %vm1773, 1, 0
        %v1790 = vsel %vm1774, 1, 0
        %v1791 = vsel %vm1775, 1, 0
        %v1792 = vsel %vm1776, 1, 0
        %v1793 = vcvt.s32.f32 %v1777
        %v1794 = vcvt.s32.f32 %v1778
        %v1795 = vcvt.s32.f32 %v1779
        %v1796 = vcvt.s32.f32 %v1780
        %v1797 = vcvt.s32.f32 %v1781
        %v1798 = vcvt.s32.f32 %v1782
        %v1799 = vcvt.s32.f32 %v1783
        %v1800 = vcvt.s32.f32 %v1784
        %v1801 = vcvt.s32.f32 %v1785
        %v1802 = vcvt.s32.f32 %v1786
        %v1803 = vcvt.s32.f32 %v1787
        %v1804 = vcvt.s32.f32 %v1788
        %v1805 = vcvt.s32.f32 %v1789
        %v1806 = vcvt.s32.f32 %v1790
        %v1807 = vcvt.s32.f32 %v1791
        %v1808 = vcvt.s32.f32 %v1792
        %v1809 = vadd.f32 %v1793, 0.0
        %v1810 = vadd.f32 %v1794, 0.0
        %v1811 = vadd.f32 %v1795, 0.0
        %v1812 = vadd.f32 %v1796, 0.0
        %v1813 = vadd.f32 %v1797, 0.0
        %v1814 = vadd.f32 %v1798, 0.0
        %v1815 = vadd.f32 %v1799, 0.0
        %v1816 = vadd.f32 %v1800, 0.0
        %v1817 = vadd.f32 %v1801, 0.0
        %v1818 = vadd.f32 %v1802, 0.0
        %v1819 = vadd.f32 %v1803, 0.0
        %v1820 = vadd.f32 %v1804, 0.0
        %v1821 = vadd.f32 %v1805, 0.0
        %v1822 = vadd.f32 %v1806, 0.0
        %v1823 = vadd.f32 %v1807, 0.0
        %v1824 = vadd.f32 %v1808, 0.0
        %1825 = vset.pattern.permute.xlu0 1
        %1826 = vperm.xlu0 %1825, %v1697
        %v1827 = vpop.permute.xlu0 %1826
        %1828 = vset.pattern.permute.xlu0 1
        %1829 = vperm.xlu0 %1828, %v1698
        %v1830 = vpop.permute.xlu0 %1829
        %1831 = vset.pattern.permute.xlu0 1
        %1832 = vperm.xlu0 %1831, %v1699
        %v1833 = vpop.permute.xlu0 %1832
        %1834 = vset.pattern.permute.xlu0 1
        %1835 = vperm.xlu0 %1834, %v1700
        %v1836 = vpop.permute.xlu0 %1835
        %1837 = vset.pattern.permute.xlu0 1
        %1838 = vperm.xlu0 %1837, %v1701
        %v1839 = vpop.permute.xlu0 %1838
        %1840 = vset.pattern.permute.xlu0 1
        %1841 = vperm.xlu0 %1840, %v1702
        %v1842 = vpop.permute.xlu0 %1841
        %1843 = vset.pattern.permute.xlu0 1
        %1844 = vperm.xlu0 %1843, %v1703
        %v1845 = vpop.permute.xlu0 %1844
        %1846 = vset.pattern.permute.xlu0 1
        %1847 = vperm.xlu0 %1846, %v1704
        %v1848 = vpop.permute.xlu0 %1847
        %1849 = vset.pattern.permute.xlu0 1
        %1850 = vperm.xlu0 %1849, %v1705
        %v1851 = vpop.permute.xlu0 %1850
        %1852 = vset.pattern.permute.xlu0 1
        %1853 = vperm.xlu0 %1852, %v1706
        %v1854 = vpop.permute.xlu0 %1853
        %1855 = vset.pattern.permute.xlu0 1
        %1856 = vperm.xlu0 %1855, %v1707
        %v1857 = vpop.permute.xlu0 %1856
        %1858 = vset.pattern.permute.xlu0 1
        %1859 = vperm.xlu0 %1858, %v1708
        %v1860 = vpop.permute.xlu0 %1859
        %1861 = vset.pattern.permute.xlu0 1
        %1862 = vperm.xlu0 %1861, %v1709
        %v1863 = vpop.permute.xlu0 %1862
        %1864 = vset.pattern.permute.xlu0 1
        %1865 = vperm.xlu0 %1864, %v1710
        %v1866 = vpop.permute.xlu0 %1865
        %1867 = vset.pattern.permute.xlu0 1
        %1868 = vperm.xlu0 %1867, %v1711
        %v1869 = vpop.permute.xlu0 %1868
        %1870 = vset.pattern.permute.xlu0 1
        %1871 = vperm.xlu0 %1870, %v1712
        %v1872 = vpop.permute.xlu0 %1871
        %vm1873 = vcmp.eq.s32.totalorder %v1062, %v1827
        %vm1874 = vcmp.eq.s32.totalorder %v1062, %v1830
        %vm1875 = vcmp.eq.s32.totalorder %v1062, %v1833
        %vm1876 = vcmp.eq.s32.totalorder %v1062, %v1836
        %vm1877 = vcmp.eq.s32.totalorder %v1062, %v1839
        %vm1878 = vcmp.eq.s32.totalorder %v1062, %v1842
        %vm1879 = vcmp.eq.s32.totalorder %v1062, %v1845
        %vm1880 = vcmp.eq.s32.totalorder %v1062, %v1848
        %vm1881 = vcmp.eq.s32.totalorder %v1062, %v1851
        %vm1882 = vcmp.eq.s32.totalorder %v1062, %v1854
        %vm1883 = vcmp.eq.s32.totalorder %v1062, %v1857
        %vm1884 = vcmp.eq.s32.totalorder %v1062, %v1860
        %vm1885 = vcmp.eq.s32.totalorder %v1062, %v1863
        %vm1886 = vcmp.eq.s32.totalorder %v1062, %v1866
        %vm1887 = vcmp.eq.s32.totalorder %v1062, %v1869
        %vm1888 = vcmp.eq.s32.totalorder %v1062, %v1872
        %v1889 = vsel %vm1873, 1, 0
        %v1890 = vsel %vm1874, 1, 0
        %v1891 = vsel %vm1875, 1, 0
        %v1892 = vsel %vm1876, 1, 0
        %v1893 = vsel %vm1877, 1, 0
        %v1894 = vsel %vm1878, 1, 0
        %v1895 = vsel %vm1879, 1, 0
        %v1896 = vsel %vm1880, 1, 0
        %v1897 = vsel %vm1881, 1, 0
        %v1898 = vsel %vm1882, 1, 0
        %v1899 = vsel %vm1883, 1, 0
        %v1900 = vsel %vm1884, 1, 0
        %v1901 = vsel %vm1885, 1, 0
        %v1902 = vsel %vm1886, 1, 0
        %v1903 = vsel %vm1887, 1, 0
        %v1904 = vsel %vm1888, 1, 0
        %v1905 = vcvt.s32.f32 %v1889
        %v1906 = vcvt.s32.f32 %v1890
        %v1907 = vcvt.s32.f32 %v1891
        %v1908 = vcvt.s32.f32 %v1892
        %v1909 = vcvt.s32.f32 %v1893
        %v1910 = vcvt.s32.f32 %v1894
        %v1911 = vcvt.s32.f32 %v1895
        %v1912 = vcvt.s32.f32 %v1896
        %v1913 = vcvt.s32.f32 %v1897
        %v1914 = vcvt.s32.f32 %v1898
        %v1915 = vcvt.s32.f32 %v1899
        %v1916 = vcvt.s32.f32 %v1900
        %v1917 = vcvt.s32.f32 %v1901
        %v1918 = vcvt.s32.f32 %v1902
        %v1919 = vcvt.s32.f32 %v1903
        %v1920 = vcvt.s32.f32 %v1904
        %v1921 = vadd.f32 %v1809, %v1905
        %v1922 = vadd.f32 %v1810, %v1906
        %v1923 = vadd.f32 %v1811, %v1907
        %v1924 = vadd.f32 %v1812, %v1908
        %v1925 = vadd.f32 %v1813, %v1909
        %v1926 = vadd.f32 %v1814, %v1910
        %v1927 = vadd.f32 %v1815, %v1911
        %v1928 = vadd.f32 %v1816, %v1912
        %v1929 = vadd.f32 %v1817, %v1913
        %v1930 = vadd.f32 %v1818, %v1914
        %v1931 = vadd.f32 %v1819, %v1915
        %v1932 = vadd.f32 %v1820, %v1916
        %v1933 = vadd.f32 %v1821, %v1917
        %v1934 = vadd.f32 %v1822, %v1918
        %v1935 = vadd.f32 %v1823, %v1919
        %v1936 = vadd.f32 %v1824, %v1920
        %1937 = vset.pattern.permute.xlu0 2
        %1938 = vperm.xlu0 %1937, %v1697
        %v1939 = vpop.permute.xlu0 %1938
        %1940 = vset.pattern.permute.xlu0 2
        %1941 = vperm.xlu0 %1940, %v1698
        %v1942 = vpop.permute.xlu0 %1941
        %1943 = vset.pattern.permute.xlu0 2
        %1944 = vperm.xlu0 %1943, %v1699
        %v1945 = vpop.permute.xlu0 %1944
        %1946 = vset.pattern.permute.xlu0 2
        %1947 = vperm.xlu0 %1946, %v1700
        %v1948 = vpop.permute.xlu0 %1947
        %1949 = vset.pattern.permute.xlu0 2
        %1950 = vperm.xlu0 %1949, %v1701
        %v1951 = vpop.permute.xlu0 %1950
        %1952 = vset.pattern.permute.xlu0 2
        %1953 = vperm.xlu0 %1952, %v1702
        %v1954 = vpop.permute.xlu0 %1953
        %1955 = vset.pattern.permute.xlu0 2
        %1956 = vperm.xlu0 %1955, %v1703
        %v1957 = vpop.permute.xlu0 %1956
        %1958 = vset.pattern.permute.xlu0 2
        %1959 = vperm.xlu0 %1958, %v1704
        %v1960 = vpop.permute.xlu0 %1959
        %1961 = vset.pattern.permute.xlu0 2
        %1962 = vperm.xlu0 %1961, %v1705
        %v1963 = vpop.permute.xlu0 %1962
        %1964 = vset.pattern.permute.xlu0 2
        %1965 = vperm.xlu0 %1964, %v1706
        %v1966 = vpop.permute.xlu0 %1965
        %1967 = vset.pattern.permute.xlu0 2
        %1968 = vperm.xlu0 %1967, %v1707
        %v1969 = vpop.permute.xlu0 %1968
        %1970 = vset.pattern.permute.xlu0 2
        %1971 = vperm.xlu0 %1970, %v1708
        %v1972 = vpop.permute.xlu0 %1971
        %1973 = vset.pattern.permute.xlu0 2
        %1974 = vperm.xlu0 %1973, %v1709
        %v1975 = vpop.permute.xlu0 %1974
        %1976 = vset.pattern.permute.xlu0 2
        %1977 = vperm.xlu0 %1976, %v1710
        %v1978 = vpop.permute.xlu0 %1977
        %1979 = vset.pattern.permute.xlu0 2
        %1980 = vperm.xlu0 %1979, %v1711
        %v1981 = vpop.permute.xlu0 %1980
        %1982 = vset.pattern.permute.xlu0 2
        %1983 = vperm.xlu0 %1982, %v1712
        %v1984 = vpop.permute.xlu0 %1983
        %vm1985 = vcmp.eq.s32.totalorder %v1062, %v1939
        %vm1986 = vcmp.eq.s32.totalorder %v1062, %v1942
        %vm1987 = vcmp.eq.s32.totalorder %v1062, %v1945
        %vm1988 = vcmp.eq.s32.totalorder %v1062, %v1948
        %vm1989 = vcmp.eq.s32.totalorder %v1062, %v1951
        %vm1990 = vcmp.eq.s32.totalorder %v1062, %v1954
        %vm1991 = vcmp.eq.s32.totalorder %v1062, %v1957
        %vm1992 = vcmp.eq.s32.totalorder %v1062, %v1960
        %vm1993 = vcmp.eq.s32.totalorder %v1062, %v1963
        %vm1994 = vcmp.eq.s32.totalorder %v1062, %v1966
        %vm1995 = vcmp.eq.s32.totalorder %v1062, %v1969
        %vm1996 = vcmp.eq.s32.totalorder %v1062, %v1972
        %vm1997 = vcmp.eq.s32.totalorder %v1062, %v1975
        %vm1998 = vcmp.eq.s32.totalorder %v1062, %v1978
        %vm1999 = vcmp.eq.s32.totalorder %v1062, %v1981
        %vm2000 = vcmp.eq.s32.totalorder %v1062, %v1984
        %v2001 = vsel %vm1985, 1, 0
        %v2002 = vsel %vm1986, 1, 0
        %v2003 = vsel %vm1987, 1, 0
        %v2004 = vsel %vm1988, 1, 0
        %v2005 = vsel %vm1989, 1, 0
        %v2006 = vsel %vm1990, 1, 0
        %v2007 = vsel %vm1991, 1, 0
        %v2008 = vsel %vm1992, 1, 0
        %v2009 = vsel %vm1993, 1, 0
        %v2010 = vsel %vm1994, 1, 0
        %v2011 = vsel %vm1995, 1, 0
        %v2012 = vsel %vm1996, 1, 0
        %v2013 = vsel %vm1997, 1, 0
        %v2014 = vsel %vm1998, 1, 0
        %v2015 = vsel %vm1999, 1, 0
        %v2016 = vsel %vm2000, 1, 0
        %v2017 = vcvt.s32.f32 %v2001
        %v2018 = vcvt.s32.f32 %v2002
        %v2019 = vcvt.s32.f32 %v2003
        %v2020 = vcvt.s32.f32 %v2004
        %v2021 = vcvt.s32.f32 %v2005
        %v2022 = vcvt.s32.f32 %v2006
        %v2023 = vcvt.s32.f32 %v2007
        %v2024 = vcvt.s32.f32 %v2008
        %v2025 = vcvt.s32.f32 %v2009
        %v2026 = vcvt.s32.f32 %v2010
        %v2027 = vcvt.s32.f32 %v2011
        %v2028 = vcvt.s32.f32 %v2012
        %v2029 = vcvt.s32.f32 %v2013
        %v2030 = vcvt.s32.f32 %v2014
        %v2031 = vcvt.s32.f32 %v2015
        %v2032 = vcvt.s32.f32 %v2016
        %v2033 = vadd.f32 %v1921, %v2017
        %v2034 = vadd.f32 %v1922, %v2018
        %v2035 = vadd.f32 %v1923, %v2019
        %v2036 = vadd.f32 %v1924, %v2020
        %v2037 = vadd.f32 %v1925, %v2021
        %v2038 = vadd.f32 %v1926, %v2022
        %v2039 = vadd.f32 %v1927, %v2023
        %v2040 = vadd.f32 %v1928, %v2024
        %v2041 = vadd.f32 %v1929, %v2025
        %v2042 = vadd.f32 %v1930, %v2026
        %v2043 = vadd.f32 %v1931, %v2027
        %v2044 = vadd.f32 %v1932, %v2028
        %v2045 = vadd.f32 %v1933, %v2029
        %v2046 = vadd.f32 %v1934, %v2030
        %v2047 = vadd.f32 %v1935, %v2031
        %v2048 = vadd.f32 %v1936, %v2032
        %2049 = vset.pattern.permute.xlu0 3
        %2050 = vperm.xlu0 %2049, %v1697
        %v2051 = vpop.permute.xlu0 %2050
        %2052 = vset.pattern.permute.xlu0 3
        %2053 = vperm.xlu0 %2052, %v1698
        %v2054 = vpop.permute.xlu0 %2053
        %2055 = vset.pattern.permute.xlu0 3
        %2056 = vperm.xlu0 %2055, %v1699
        %v2057 = vpop.permute.xlu0 %2056
        %2058 = vset.pattern.permute.xlu0 3
        %2059 = vperm.xlu0 %2058, %v1700
        %v2060 = vpop.permute.xlu0 %2059
        %2061 = vset.pattern.permute.xlu0 3
        %2062 = vperm.xlu0 %2061, %v1701
        %v2063 = vpop.permute.xlu0 %2062
        %2064 = vset.pattern.permute.xlu0 3
        %2065 = vperm.xlu0 %2064, %v1702
        %v2066 = vpop.permute.xlu0 %2065
        %2067 = vset.pattern.permute.xlu0 3
        %2068 = vperm.xlu0 %2067, %v1703
        %v2069 = vpop.permute.xlu0 %2068
        %2070 = vset.pattern.permute.xlu0 3
        %2071 = vperm.xlu0 %2070, %v1704
        %v2072 = vpop.permute.xlu0 %2071
        %2073 = vset.pattern.permute.xlu0 3
        %2074 = vperm.xlu0 %2073, %v1705
        %v2075 = vpop.permute.xlu0 %2074
        %2076 = vset.pattern.permute.xlu0 3
        %2077 = vperm.xlu0 %2076, %v1706
        %v2078 = vpop.permute.xlu0 %2077
        %2079 = vset.pattern.permute.xlu0 3
        %2080 = vperm.xlu0 %2079, %v1707
        %v2081 = vpop.permute.xlu0 %2080
        %2082 = vset.pattern.permute.xlu0 3
        %2083 = vperm.xlu0 %2082, %v1708
        %v2084 = vpop.permute.xlu0 %2083
        %2085 = vset.pattern.permute.xlu0 3
        %2086 = vperm.xlu0 %2085, %v1709
        %v2087 = vpop.permute.xlu0 %2086
        %2088 = vset.pattern.permute.xlu0 3
        %2089 = vperm.xlu0 %2088, %v1710
        %v2090 = vpop.permute.xlu0 %2089
        %2091 = vset.pattern.permute.xlu0 3
        %2092 = vperm.xlu0 %2091, %v1711
        %v2093 = vpop.permute.xlu0 %2092
        %2094 = vset.pattern.permute.xlu0 3
        %2095 = vperm.xlu0 %2094, %v1712
        %v2096 = vpop.permute.xlu0 %2095
        %vm2097 = vcmp.eq.s32.totalorder %v1062, %v2051
        %vm2098 = vcmp.eq.s32.totalorder %v1062, %v2054
        %vm2099 = vcmp.eq.s32.totalorder %v1062, %v2057
        %vm2100 = vcmp.eq.s32.totalorder %v1062, %v2060
        %vm2101 = vcmp.eq.s32.totalorder %v1062, %v2063
        %vm2102 = vcmp.eq.s32.totalorder %v1062, %v2066
        %vm2103 = vcmp.eq.s32.totalorder %v1062, %v2069
        %vm2104 = vcmp.eq.s32.totalorder %v1062, %v2072
        %vm2105 = vcmp.eq.s32.totalorder %v1062, %v2075
        %vm2106 = vcmp.eq.s32.totalorder %v1062, %v2078
        %vm2107 = vcmp.eq.s32.totalorder %v1062, %v2081
        %vm2108 = vcmp.eq.s32.totalorder %v1062, %v2084
        %vm2109 = vcmp.eq.s32.totalorder %v1062, %v2087
        %vm2110 = vcmp.eq.s32.totalorder %v1062, %v2090
        %vm2111 = vcmp.eq.s32.totalorder %v1062, %v2093
        %vm2112 = vcmp.eq.s32.totalorder %v1062, %v2096
        %v2113 = vsel %vm2097, 1, 0
        %v2114 = vsel %vm2098, 1, 0
        %v2115 = vsel %vm2099, 1, 0
        %v2116 = vsel %vm2100, 1, 0
        %v2117 = vsel %vm2101, 1, 0
        %v2118 = vsel %vm2102, 1, 0
        %v2119 = vsel %vm2103, 1, 0
        %v2120 = vsel %vm2104, 1, 0
        %v2121 = vsel %vm2105, 1, 0
        %v2122 = vsel %vm2106, 1, 0
        %v2123 = vsel %vm2107, 1, 0
        %v2124 = vsel %vm2108, 1, 0
        %v2125 = vsel %vm2109, 1, 0
        %v2126 = vsel %vm2110, 1, 0
        %v2127 = vsel %vm2111, 1, 0
        %v2128 = vsel %vm2112, 1, 0
        %v2129 = vcvt.s32.f32 %v2113
        %v2130 = vcvt.s32.f32 %v2114
        %v2131 = vcvt.s32.f32 %v2115
        %v2132 = vcvt.s32.f32 %v2116
        %v2133 = vcvt.s32.f32 %v2117
        %v2134 = vcvt.s32.f32 %v2118
        %v2135 = vcvt.s32.f32 %v2119
        %v2136 = vcvt.s32.f32 %v2120
        %v2137 = vcvt.s32.f32 %v2121
        %v2138 = vcvt.s32.f32 %v2122
        %v2139 = vcvt.s32.f32 %v2123
        %v2140 = vcvt.s32.f32 %v2124
        %v2141 = vcvt.s32.f32 %v2125
        %v2142 = vcvt.s32.f32 %v2126
        %v2143 = vcvt.s32.f32 %v2127
        %v2144 = vcvt.s32.f32 %v2128
        %v2145 = vadd.f32 %v2033, %v2129
        %v2146 = vadd.f32 %v2034, %v2130
        %v2147 = vadd.f32 %v2035, %v2131
        %v2148 = vadd.f32 %v2036, %v2132
        %v2149 = vadd.f32 %v2037, %v2133
        %v2150 = vadd.f32 %v2038, %v2134
        %v2151 = vadd.f32 %v2039, %v2135
        %v2152 = vadd.f32 %v2040, %v2136
        %v2153 = vadd.f32 %v2041, %v2137
        %v2154 = vadd.f32 %v2042, %v2138
        %v2155 = vadd.f32 %v2043, %v2139
        %v2156 = vadd.f32 %v2044, %v2140
        %v2157 = vadd.f32 %v2045, %v2141
        %v2158 = vadd.f32 %v2046, %v2142
        %v2159 = vadd.f32 %v2047, %v2143
        %v2160 = vadd.f32 %v2048, %v2144
        %v2161 = vpack.c.bf16 %v2146, %v2145
        %v2162 = vpack.c.bf16 %v2148, %v2147
        %v2163 = vpack.c.bf16 %v2150, %v2149
        %v2164 = vpack.c.bf16 %v2152, %v2151
        %v2165 = vpack.c.bf16 %v2154, %v2153
        %v2166 = vpack.c.bf16 %v2156, %v2155
        %v2167 = vpack.c.bf16 %v2158, %v2157
        %v2168 = vpack.c.bf16 %v2160, %v2159
        %s2169 = scalar_lea.vmem %s2, 64
        %v2170 = vld [vmem:[%s2169] sm:$0xf]
        %v2171 = vld [vmem:[%s2169 + $0x4] sm:$0xf]
        %v2172 = vld [vmem:[%s2169 + $0x8] sm:$0xf]
        %v2173 = vld [vmem:[%s2169 + $0xc] sm:$0xf]
        %v2174 = vld [vmem:[%s2169 + $0x10] sm:$0xf]
        %v2175 = vld [vmem:[%s2169 + $0x14] sm:$0xf]
        %v2176 = vld [vmem:[%s2169 + $0x18] sm:$0xf]
        %v2177 = vld [vmem:[%s2169 + $0x1c] sm:$0xf]
        %v2178 = vld [vmem:[%s2169 + $0x20] sm:$0xf]
        %v2179 = vld [vmem:[%s2169 + $0x24] sm:$0xf]
        %v2180 = vld [vmem:[%s2169 + $0x28] sm:$0xf]
        %v2181 = vld [vmem:[%s2169 + $0x2c] sm:$0xf]
        %v2182 = vld [vmem:[%s2169 + $0x30] sm:$0xf]
        %v2183 = vld [vmem:[%s2169 + $0x34] sm:$0xf]
        %v2184 = vld [vmem:[%s2169 + $0x38] sm:$0xf]
        %v2185 = vld [vmem:[%s2169 + $0x3c] sm:$0xf]
        %v2202 = vunpack.c.l.b16 %v2170
        %v2203 = vunpack.c.l.b16 %v2171
        %v2204 = vunpack.c.l.b16 %v2172
        %v2205 = vunpack.c.l.b16 %v2173
        %v2206 = vunpack.c.l.b16 %v2174
        %v2207 = vunpack.c.l.b16 %v2175
        %v2208 = vunpack.c.l.b16 %v2176
        %v2209 = vunpack.c.l.b16 %v2177
        %v2210 = vunpack.c.l.b16 %v2178
        %v2211 = vunpack.c.l.b16 %v2179
        %v2212 = vunpack.c.l.b16 %v2180
        %v2213 = vunpack.c.l.b16 %v2181
        %v2214 = vunpack.c.l.b16 %v2182
        %v2215 = vunpack.c.l.b16 %v2183
        %v2216 = vunpack.c.l.b16 %v2184
        %v2217 = vunpack.c.l.b16 %v2185
        %v2218 = vpack.c.b16 %v2203, %v2202
        %v2219 = vpack.c.b16 %v2205, %v2204
        %v2220 = vpack.c.b16 %v2207, %v2206
        %v2221 = vpack.c.b16 %v2209, %v2208
        %v2222 = vpack.c.b16 %v2211, %v2210
        %v2223 = vpack.c.b16 %v2213, %v2212
        %v2224 = vpack.c.b16 %v2215, %v2214
        %v2225 = vpack.c.b16 %v2217, %v2216
        %2234 = vmatprep.subr.bf16.mxu0 0
        %2235 = vmatpush1.bf16.msra.mxu0 %v2225
        %2236 = vmatprep.subr.bf16.mxu0 0
        %2237 = vmatpush1.bf16.msra.mxu0 %v2224
        %2238 = vmatprep.subr.bf16.mxu0 0
        %2239 = vmatpush1.bf16.msra.mxu0 %v2223
        %2240 = vmatprep.subr.bf16.mxu0 0
        %2241 = vmatpush1.bf16.msra.mxu0 %v2222
        %2242 = vmatprep.subr.bf16.mxu0 0
        %2243 = vmatpush1.bf16.msra.mxu0 %v2221
        %2244 = vmatprep.subr.bf16.mxu0 0
        %2245 = vmatpush1.bf16.msra.mxu0 %v2220
        %2246 = vmatprep.subr.bf16.mxu0 0
        %2247 = vmatpush1.bf16.msra.mxu0 %v2219
        %2248 = vmatprep.subr.bf16.mxu0 0
        %2249 = vmatpush1.bf16.msra.mxu0 %v2218
        %2250 = vmatprep.subr.bf16.mxu0 0
        %2251 = vmatpush2.bf16.msra.mxu0 0
        %2252 = vmatprep.subr.bf16.mxu0 0
        %2253 = vmatpush2.bf16.msra.mxu0 0
        %2254 = vmatprep.subr.bf16.mxu0 0
        %2255 = vmatpush2.bf16.msra.mxu0 0
        %2256 = vmatprep.subr.bf16.mxu0 0
        %2257 = vmatpush2.bf16.msra.mxu0 0
        %2258 = vmatprep.subr.bf16.mxu0 0
        %2259 = vmatpush2.bf16.msra.mxu0 0
        %2260 = vmatprep.subr.bf16.mxu0 0
        %2261 = vmatpush2.bf16.msra.mxu0 0
        %2262 = vmatprep.subr.bf16.mxu0 0
        %2263 = vmatpush2.bf16.msra.mxu0 0
        %2264 = vmatprep.subr.bf16.mxu0 0
        %2265 = vmatpush2.bf16.msra.mxu0 0
        %2266 = vmatprep.mubr.bf16.mxu0 0
        %2267 = vmatmul.mubr.bf16.gmra.mxu0 %v2161
        %v2268 = vpop.f32.mrf.mxu0
        %v2269 = vadd.f32 0.0, %v2268
        %v2270 = vpop.f32.mrf.mxu0
        %v2271 = vpop.f32.mrf.mxu0
        %v2272 = vadd.f32 0.0, %v2271
        %v2273 = vpop.f32.mrf.mxu0
        %2274 = vmatprep.mubr.bf16.mxu0 0
        %2275 = vmatmul.mubr.bf16.gmra.mxu0 %v2162
        %v2276 = vpop.f32.mrf.mxu0
        %v2277 = vadd.f32 0.0, %v2276
        %v2278 = vpop.f32.mrf.mxu0
        %v2279 = vpop.f32.mrf.mxu0
        %v2280 = vadd.f32 0.0, %v2279
        %v2281 = vpop.f32.mrf.mxu0
        %2282 = vmatprep.mubr.bf16.mxu0 0
        %2283 = vmatmul.mubr.bf16.gmra.mxu0 %v2163
        %v2284 = vpop.f32.mrf.mxu0
        %v2285 = vadd.f32 0.0, %v2284
        %v2286 = vpop.f32.mrf.mxu0
        %v2287 = vpop.f32.mrf.mxu0
        %v2288 = vadd.f32 0.0, %v2287
        %v2289 = vpop.f32.mrf.mxu0
        %2290 = vmatprep.mubr.bf16.mxu0 0
        %2291 = vmatmul.mubr.bf16.gmra.mxu0 %v2164
        %v2292 = vpop.f32.mrf.mxu0
        %v2293 = vadd.f32 0.0, %v2292
        %v2294 = vpop.f32.mrf.mxu0
        %v2295 = vpop.f32.mrf.mxu0
        %v2296 = vadd.f32 0.0, %v2295
        %v2297 = vpop.f32.mrf.mxu0
        %2298 = vmatprep.mubr.bf16.mxu0 0
        %2299 = vmatmul.mubr.bf16.gmra.mxu0 %v2165
        %v2300 = vpop.f32.mrf.mxu0
        %v2301 = vadd.f32 0.0, %v2300
        %v2302 = vpop.f32.mrf.mxu0
        %v2303 = vpop.f32.mrf.mxu0
        %v2304 = vadd.f32 0.0, %v2303
        %v2305 = vpop.f32.mrf.mxu0
        %2306 = vmatprep.mubr.bf16.mxu0 0
        %2307 = vmatmul.mubr.bf16.gmra.mxu0 %v2166
        %v2308 = vpop.f32.mrf.mxu0
        %v2309 = vadd.f32 0.0, %v2308
        %v2310 = vpop.f32.mrf.mxu0
        %v2311 = vpop.f32.mrf.mxu0
        %v2312 = vadd.f32 0.0, %v2311
        %v2313 = vpop.f32.mrf.mxu0
        %2314 = vmatprep.mubr.bf16.mxu0 0
        %2315 = vmatmul.mubr.bf16.gmra.mxu0 %v2167
        %v2316 = vpop.f32.mrf.mxu0
        %v2317 = vadd.f32 0.0, %v2316
        %v2318 = vpop.f32.mrf.mxu0
        %v2319 = vpop.f32.mrf.mxu0
        %v2320 = vadd.f32 0.0, %v2319
        %v2321 = vpop.f32.mrf.mxu0
        %2322 = vmatprep.mubr.bf16.mxu0 0
        %2323 = vmatmul.mubr.bf16.gmra.mxu0 %v2168
        %v2324 = vpop.f32.mrf.mxu0
        %v2325 = vadd.f32 0.0, %v2324
        %v2326 = vpop.f32.mrf.mxu0
        %v2327 = vpop.f32.mrf.mxu0
        %v2328 = vadd.f32 0.0, %v2327
        %v2329 = vpop.f32.mrf.mxu0
        %2330 = vdwg.mxu0
        %s2331 = scalar_lea.vmem %s658, 256 [#allocation2]
        %v2332 = vld [vmem:[%s2331] sm:$0xff]
        %v2333 = vld [vmem:[%s2331 + $0x8] sm:$0xff]
        %v2334 = vld [vmem:[%s2331 + $0x10] sm:$0xff]
        %v2335 = vld [vmem:[%s2331 + $0x18] sm:$0xff]
        %v2336 = vld [vmem:[%s2331 + $0x20] sm:$0xff]
        %v2337 = vld [vmem:[%s2331 + $0x28] sm:$0xff]
        %v2338 = vld [vmem:[%s2331 + $0x30] sm:$0xff]
        %v2339 = vld [vmem:[%s2331 + $0x38] sm:$0xff]
        %v2340 = vld [vmem:[%s2331 + $0x40] sm:$0xff]
        %v2341 = vld [vmem:[%s2331 + $0x48] sm:$0xff]
        %v2342 = vld [vmem:[%s2331 + $0x50] sm:$0xff]
        %v2343 = vld [vmem:[%s2331 + $0x58] sm:$0xff]
        %v2344 = vld [vmem:[%s2331 + $0x60] sm:$0xff]
        %v2345 = vld [vmem:[%s2331 + $0x68] sm:$0xff]
        %v2346 = vld [vmem:[%s2331 + $0x70] sm:$0xff]
        %v2347 = vld [vmem:[%s2331 + $0x78] sm:$0xff]
        %2348 = vset.pattern.permute.xlu0 0
        %2349 = vperm.xlu0 %2348, %v2332
        %v2350 = vpop.permute.xlu0 %2349
        %2351 = vset.pattern.permute.xlu0 0
        %2352 = vperm.xlu0 %2351, %v2333
        %v2353 = vpop.permute.xlu0 %2352
        %2354 = vset.pattern.permute.xlu0 0
        %2355 = vperm.xlu0 %2354, %v2334
        %v2356 = vpop.permute.xlu0 %2355
        %2357 = vset.pattern.permute.xlu0 0
        %2358 = vperm.xlu0 %2357, %v2335
        %v2359 = vpop.permute.xlu0 %2358
        %2360 = vset.pattern.permute.xlu0 0
        %2361 = vperm.xlu0 %2360, %v2336
        %v2362 = vpop.permute.xlu0 %2361
        %2363 = vset.pattern.permute.xlu0 0
        %2364 = vperm.xlu0 %2363, %v2337
        %v2365 = vpop.permute.xlu0 %2364
        %2366 = vset.pattern.permute.xlu0 0
        %2367 = vperm.xlu0 %2366, %v2338
        %v2368 = vpop.permute.xlu0 %2367
        %2369 = vset.pattern.permute.xlu0 0
        %2370 = vperm.xlu0 %2369, %v2339
        %v2371 = vpop.permute.xlu0 %2370
        %2372 = vset.pattern.permute.xlu0 0
        %2373 = vperm.xlu0 %2372, %v2340
        %v2374 = vpop.permute.xlu0 %2373
        %2375 = vset.pattern.permute.xlu0 0
        %2376 = vperm.xlu0 %2375, %v2341
        %v2377 = vpop.permute.xlu0 %2376
        %2378 = vset.pattern.permute.xlu0 0
        %2379 = vperm.xlu0 %2378, %v2342
        %v2380 = vpop.permute.xlu0 %2379
        %2381 = vset.pattern.permute.xlu0 0
        %2382 = vperm.xlu0 %2381, %v2343
        %v2383 = vpop.permute.xlu0 %2382
        %2384 = vset.pattern.permute.xlu0 0
        %2385 = vperm.xlu0 %2384, %v2344
        %v2386 = vpop.permute.xlu0 %2385
        %2387 = vset.pattern.permute.xlu0 0
        %2388 = vperm.xlu0 %2387, %v2345
        %v2389 = vpop.permute.xlu0 %2388
        %2390 = vset.pattern.permute.xlu0 0
        %2391 = vperm.xlu0 %2390, %v2346
        %v2392 = vpop.permute.xlu0 %2391
        %2393 = vset.pattern.permute.xlu0 0
        %2394 = vperm.xlu0 %2393, %v2347
        %v2395 = vpop.permute.xlu0 %2394
        %vm2396 = vcmp.eq.s32.totalorder %v1062, %v2350
        %vm2397 = vcmp.eq.s32.totalorder %v1062, %v2353
        %vm2398 = vcmp.eq.s32.totalorder %v1062, %v2356
        %vm2399 = vcmp.eq.s32.totalorder %v1062, %v2359
        %vm2400 = vcmp.eq.s32.totalorder %v1062, %v2362
        %vm2401 = vcmp.eq.s32.totalorder %v1062, %v2365
        %vm2402 = vcmp.eq.s32.totalorder %v1062, %v2368
        %vm2403 = vcmp.eq.s32.totalorder %v1062, %v2371
        %vm2404 = vcmp.eq.s32.totalorder %v1062, %v2374
        %vm2405 = vcmp.eq.s32.totalorder %v1062, %v2377
        %vm2406 = vcmp.eq.s32.totalorder %v1062, %v2380
        %vm2407 = vcmp.eq.s32.totalorder %v1062, %v2383
        %vm2408 = vcmp.eq.s32.totalorder %v1062, %v2386
        %vm2409 = vcmp.eq.s32.totalorder %v1062, %v2389
        %vm2410 = vcmp.eq.s32.totalorder %v1062, %v2392
        %vm2411 = vcmp.eq.s32.totalorder %v1062, %v2395
        %v2412 = vsel %vm2396, 1, 0
        %v2413 = vsel %vm2397, 1, 0
        %v2414 = vsel %vm2398, 1, 0
        %v2415 = vsel %vm2399, 1, 0
        %v2416 = vsel %vm2400, 1, 0
        %v2417 = vsel %vm2401, 1, 0
        %v2418 = vsel %vm2402, 1, 0
        %v2419 = vsel %vm2403, 1, 0
        %v2420 = vsel %vm2404, 1, 0
        %v2421 = vsel %vm2405, 1, 0
        %v2422 = vsel %vm2406, 1, 0
        %v2423 = vsel %vm2407, 1, 0
        %v2424 = vsel %vm2408, 1, 0
        %v2425 = vsel %vm2409, 1, 0
        %v2426 = vsel %vm2410, 1, 0
        %v2427 = vsel %vm2411, 1, 0
        %v2428 = vcvt.s32.f32 %v2412
        %v2429 = vcvt.s32.f32 %v2413
        %v2430 = vcvt.s32.f32 %v2414
        %v2431 = vcvt.s32.f32 %v2415
        %v2432 = vcvt.s32.f32 %v2416
        %v2433 = vcvt.s32.f32 %v2417
        %v2434 = vcvt.s32.f32 %v2418
        %v2435 = vcvt.s32.f32 %v2419
        %v2436 = vcvt.s32.f32 %v2420
        %v2437 = vcvt.s32.f32 %v2421
        %v2438 = vcvt.s32.f32 %v2422
        %v2439 = vcvt.s32.f32 %v2423
        %v2440 = vcvt.s32.f32 %v2424
        %v2441 = vcvt.s32.f32 %v2425
        %v2442 = vcvt.s32.f32 %v2426
        %v2443 = vcvt.s32.f32 %v2427
        %v2444 = vadd.f32 %v2428, 0.0
        %v2445 = vadd.f32 %v2429, 0.0
        %v2446 = vadd.f32 %v2430, 0.0
        %v2447 = vadd.f32 %v2431, 0.0
        %v2448 = vadd.f32 %v2432, 0.0
        %v2449 = vadd.f32 %v2433, 0.0
        %v2450 = vadd.f32 %v2434, 0.0
        %v2451 = vadd.f32 %v2435, 0.0
        %v2452 = vadd.f32 %v2436, 0.0
        %v2453 = vadd.f32 %v2437, 0.0
        %v2454 = vadd.f32 %v2438, 0.0
        %v2455 = vadd.f32 %v2439, 0.0
        %v2456 = vadd.f32 %v2440, 0.0
        %v2457 = vadd.f32 %v2441, 0.0
        %v2458 = vadd.f32 %v2442, 0.0
        %v2459 = vadd.f32 %v2443, 0.0
        %2460 = vset.pattern.permute.xlu0 1
        %2461 = vperm.xlu0 %2460, %v2332
        %v2462 = vpop.permute.xlu0 %2461
        %2463 = vset.pattern.permute.xlu0 1
        %2464 = vperm.xlu0 %2463, %v2333
        %v2465 = vpop.permute.xlu0 %2464
        %2466 = vset.pattern.permute.xlu0 1
        %2467 = vperm.xlu0 %2466, %v2334
        %v2468 = vpop.permute.xlu0 %2467
        %2469 = vset.pattern.permute.xlu0 1
        %2470 = vperm.xlu0 %2469, %v2335
        %v2471 = vpop.permute.xlu0 %2470
        %2472 = vset.pattern.permute.xlu0 1
        %2473 = vperm.xlu0 %2472, %v2336
        %v2474 = vpop.permute.xlu0 %2473
        %2475 = vset.pattern.permute.xlu0 1
        %2476 = vperm.xlu0 %2475, %v2337
        %v2477 = vpop.permute.xlu0 %2476
        %2478 = vset.pattern.permute.xlu0 1
        %2479 = vperm.xlu0 %2478, %v2338
        %v2480 = vpop.permute.xlu0 %2479
        %2481 = vset.pattern.permute.xlu0 1
        %2482 = vperm.xlu0 %2481, %v2339
        %v2483 = vpop.permute.xlu0 %2482
        %2484 = vset.pattern.permute.xlu0 1
        %2485 = vperm.xlu0 %2484, %v2340
        %v2486 = vpop.permute.xlu0 %2485
        %2487 = vset.pattern.permute.xlu0 1
        %2488 = vperm.xlu0 %2487, %v2341
        %v2489 = vpop.permute.xlu0 %2488
        %2490 = vset.pattern.permute.xlu0 1
        %2491 = vperm.xlu0 %2490, %v2342
        %v2492 = vpop.permute.xlu0 %2491
        %2493 = vset.pattern.permute.xlu0 1
        %2494 = vperm.xlu0 %2493, %v2343
        %v2495 = vpop.permute.xlu0 %2494
        %2496 = vset.pattern.permute.xlu0 1
        %2497 = vperm.xlu0 %2496, %v2344
        %v2498 = vpop.permute.xlu0 %2497
        %2499 = vset.pattern.permute.xlu0 1
        %2500 = vperm.xlu0 %2499, %v2345
        %v2501 = vpop.permute.xlu0 %2500
        %2502 = vset.pattern.permute.xlu0 1
        %2503 = vperm.xlu0 %2502, %v2346
        %v2504 = vpop.permute.xlu0 %2503
        %2505 = vset.pattern.permute.xlu0 1
        %2506 = vperm.xlu0 %2505, %v2347
        %v2507 = vpop.permute.xlu0 %2506
        %vm2508 = vcmp.eq.s32.totalorder %v1062, %v2462
        %vm2509 = vcmp.eq.s32.totalorder %v1062, %v2465
        %vm2510 = vcmp.eq.s32.totalorder %v1062, %v2468
        %vm2511 = vcmp.eq.s32.totalorder %v1062, %v2471
        %vm2512 = vcmp.eq.s32.totalorder %v1062, %v2474
        %vm2513 = vcmp.eq.s32.totalorder %v1062, %v2477
        %vm2514 = vcmp.eq.s32.totalorder %v1062, %v2480
        %vm2515 = vcmp.eq.s32.totalorder %v1062, %v2483
        %vm2516 = vcmp.eq.s32.totalorder %v1062, %v2486
        %vm2517 = vcmp.eq.s32.totalorder %v1062, %v2489
        %vm2518 = vcmp.eq.s32.totalorder %v1062, %v2492
        %vm2519 = vcmp.eq.s32.totalorder %v1062, %v2495
        %vm2520 = vcmp.eq.s32.totalorder %v1062, %v2498
        %vm2521 = vcmp.eq.s32.totalorder %v1062, %v2501
        %vm2522 = vcmp.eq.s32.totalorder %v1062, %v2504
        %vm2523 = vcmp.eq.s32.totalorder %v1062, %v2507
        %v2524 = vsel %vm2508, 1, 0
        %v2525 = vsel %vm2509, 1, 0
        %v2526 = vsel %vm2510, 1, 0
        %v2527 = vsel %vm2511, 1, 0
        %v2528 = vsel %vm2512, 1, 0
        %v2529 = vsel %vm2513, 1, 0
        %v2530 = vsel %vm2514, 1, 0
        %v2531 = vsel %vm2515, 1, 0
        %v2532 = vsel %vm2516, 1, 0
        %v2533 = vsel %vm2517, 1, 0
        %v2534 = vsel %vm2518, 1, 0
        %v2535 = vsel %vm2519, 1, 0
        %v2536 = vsel %vm2520, 1, 0
        %v2537 = vsel %vm2521, 1, 0
        %v2538 = vsel %vm2522, 1, 0
        %v2539 = vsel %vm2523, 1, 0
        %v2540 = vcvt.s32.f32 %v2524
        %v2541 = vcvt.s32.f32 %v2525
        %v2542 = vcvt.s32.f32 %v2526
        %v2543 = vcvt.s32.f32 %v2527
        %v2544 = vcvt.s32.f32 %v2528
        %v2545 = vcvt.s32.f32 %v2529
        %v2546 = vcvt.s32.f32 %v2530
        %v2547 = vcvt.s32.f32 %v2531
        %v2548 = vcvt.s32.f32 %v2532
        %v2549 = vcvt.s32.f32 %v2533
        %v2550 = vcvt.s32.f32 %v2534
        %v2551 = vcvt.s32.f32 %v2535
        %v2552 = vcvt.s32.f32 %v2536
        %v2553 = vcvt.s32.f32 %v2537
        %v2554 = vcvt.s32.f32 %v2538
        %v2555 = vcvt.s32.f32 %v2539
        %v2556 = vadd.f32 %v2444, %v2540
        %v2557 = vadd.f32 %v2445, %v2541
        %v2558 = vadd.f32 %v2446, %v2542
        %v2559 = vadd.f32 %v2447, %v2543
        %v2560 = vadd.f32 %v2448, %v2544
        %v2561 = vadd.f32 %v2449, %v2545
        %v2562 = vadd.f32 %v2450, %v2546
        %v2563 = vadd.f32 %v2451, %v2547
        %v2564 = vadd.f32 %v2452, %v2548
        %v2565 = vadd.f32 %v2453, %v2549
        %v2566 = vadd.f32 %v2454, %v2550
        %v2567 = vadd.f32 %v2455, %v2551
        %v2568 = vadd.f32 %v2456, %v2552
        %v2569 = vadd.f32 %v2457, %v2553
        %v2570 = vadd.f32 %v2458, %v2554
        %v2571 = vadd.f32 %v2459, %v2555
        %2572 = vset.pattern.permute.xlu0 2
        %2573 = vperm.xlu0 %2572, %v2332
        %v2574 = vpop.permute.xlu0 %2573
        %2575 = vset.pattern.permute.xlu0 2
        %2576 = vperm.xlu0 %2575, %v2333
        %v2577 = vpop.permute.xlu0 %2576
        %2578 = vset.pattern.permute.xlu0 2
        %2579 = vperm.xlu0 %2578, %v2334
        %v2580 = vpop.permute.xlu0 %2579
        %2581 = vset.pattern.permute.xlu0 2
        %2582 = vperm.xlu0 %2581, %v2335
        %v2583 = vpop.permute.xlu0 %2582
        %2584 = vset.pattern.permute.xlu0 2
        %2585 = vperm.xlu0 %2584, %v2336
        %v2586 = vpop.permute.xlu0 %2585
        %2587 = vset.pattern.permute.xlu0 2
        %2588 = vperm.xlu0 %2587, %v2337
        %v2589 = vpop.permute.xlu0 %2588
        %2590 = vset.pattern.permute.xlu0 2
        %2591 = vperm.xlu0 %2590, %v2338
        %v2592 = vpop.permute.xlu0 %2591
        %2593 = vset.pattern.permute.xlu0 2
        %2594 = vperm.xlu0 %2593, %v2339
        %v2595 = vpop.permute.xlu0 %2594
        %2596 = vset.pattern.permute.xlu0 2
        %2597 = vperm.xlu0 %2596, %v2340
        %v2598 = vpop.permute.xlu0 %2597
        %2599 = vset.pattern.permute.xlu0 2
        %2600 = vperm.xlu0 %2599, %v2341
        %v2601 = vpop.permute.xlu0 %2600
        %2602 = vset.pattern.permute.xlu0 2
        %2603 = vperm.xlu0 %2602, %v2342
        %v2604 = vpop.permute.xlu0 %2603
        %2605 = vset.pattern.permute.xlu0 2
        %2606 = vperm.xlu0 %2605, %v2343
        %v2607 = vpop.permute.xlu0 %2606
        %2608 = vset.pattern.permute.xlu0 2
        %2609 = vperm.xlu0 %2608, %v2344
        %v2610 = vpop.permute.xlu0 %2609
        %2611 = vset.pattern.permute.xlu0 2
        %2612 = vperm.xlu0 %2611, %v2345
        %v2613 = vpop.permute.xlu0 %2612
        %2614 = vset.pattern.permute.xlu0 2
        %2615 = vperm.xlu0 %2614, %v2346
        %v2616 = vpop.permute.xlu0 %2615
        %2617 = vset.pattern.permute.xlu0 2
        %2618 = vperm.xlu0 %2617, %v2347
        %v2619 = vpop.permute.xlu0 %2618
        %vm2620 = vcmp.eq.s32.totalorder %v1062, %v2574
        %vm2621 = vcmp.eq.s32.totalorder %v1062, %v2577
        %vm2622 = vcmp.eq.s32.totalorder %v1062, %v2580
        %vm2623 = vcmp.eq.s32.totalorder %v1062, %v2583
        %vm2624 = vcmp.eq.s32.totalorder %v1062, %v2586
        %vm2625 = vcmp.eq.s32.totalorder %v1062, %v2589
        %vm2626 = vcmp.eq.s32.totalorder %v1062, %v2592
        %vm2627 = vcmp.eq.s32.totalorder %v1062, %v2595
        %vm2628 = vcmp.eq.s32.totalorder %v1062, %v2598
        %vm2629 = vcmp.eq.s32.totalorder %v1062, %v2601
        %vm2630 = vcmp.eq.s32.totalorder %v1062, %v2604
        %vm2631 = vcmp.eq.s32.totalorder %v1062, %v2607
        %vm2632 = vcmp.eq.s32.totalorder %v1062, %v2610
        %vm2633 = vcmp.eq.s32.totalorder %v1062, %v2613
        %vm2634 = vcmp.eq.s32.totalorder %v1062, %v2616
        %vm2635 = vcmp.eq.s32.totalorder %v1062, %v2619
        %v2636 = vsel %vm2620, 1, 0
        %v2637 = vsel %vm2621, 1, 0
        %v2638 = vsel %vm2622, 1, 0
        %v2639 = vsel %vm2623, 1, 0
        %v2640 = vsel %vm2624, 1, 0
        %v2641 = vsel %vm2625, 1, 0
        %v2642 = vsel %vm2626, 1, 0
        %v2643 = vsel %vm2627, 1, 0
        %v2644 = vsel %vm2628, 1, 0
        %v2645 = vsel %vm2629, 1, 0
        %v2646 = vsel %vm2630, 1, 0
        %v2647 = vsel %vm2631, 1, 0
        %v2648 = vsel %vm2632, 1, 0
        %v2649 = vsel %vm2633, 1, 0
        %v2650 = vsel %vm2634, 1, 0
        %v2651 = vsel %vm2635, 1, 0
        %v2652 = vcvt.s32.f32 %v2636
        %v2653 = vcvt.s32.f32 %v2637
        %v2654 = vcvt.s32.f32 %v2638
        %v2655 = vcvt.s32.f32 %v2639
        %v2656 = vcvt.s32.f32 %v2640
        %v2657 = vcvt.s32.f32 %v2641
        %v2658 = vcvt.s32.f32 %v2642
        %v2659 = vcvt.s32.f32 %v2643
        %v2660 = vcvt.s32.f32 %v2644
        %v2661 = vcvt.s32.f32 %v2645
        %v2662 = vcvt.s32.f32 %v2646
        %v2663 = vcvt.s32.f32 %v2647
        %v2664 = vcvt.s32.f32 %v2648
        %v2665 = vcvt.s32.f32 %v2649
        %v2666 = vcvt.s32.f32 %v2650
        %v2667 = vcvt.s32.f32 %v2651
        %v2668 = vadd.f32 %v2556, %v2652
        %v2669 = vadd.f32 %v2557, %v2653
        %v2670 = vadd.f32 %v2558, %v2654
        %v2671 = vadd.f32 %v2559, %v2655
        %v2672 = vadd.f32 %v2560, %v2656
        %v2673 = vadd.f32 %v2561, %v2657
        %v2674 = vadd.f32 %v2562, %v2658
        %v2675 = vadd.f32 %v2563, %v2659
        %v2676 = vadd.f32 %v2564, %v2660
        %v2677 = vadd.f32 %v2565, %v2661
        %v2678 = vadd.f32 %v2566, %v2662
        %v2679 = vadd.f32 %v2567, %v2663
        %v2680 = vadd.f32 %v2568, %v2664
        %v2681 = vadd.f32 %v2569, %v2665
        %v2682 = vadd.f32 %v2570, %v2666
        %v2683 = vadd.f32 %v2571, %v2667
        %2684 = vset.pattern.permute.xlu0 3
        %2685 = vperm.xlu0 %2684, %v2332
        %v2686 = vpop.permute.xlu0 %2685
        %2687 = vset.pattern.permute.xlu0 3
        %2688 = vperm.xlu0 %2687, %v2333
        %v2689 = vpop.permute.xlu0 %2688
        %2690 = vset.pattern.permute.xlu0 3
        %2691 = vperm.xlu0 %2690, %v2334
        %v2692 = vpop.permute.xlu0 %2691
        %2693 = vset.pattern.permute.xlu0 3
        %2694 = vperm.xlu0 %2693, %v2335
        %v2695 = vpop.permute.xlu0 %2694
        %2696 = vset.pattern.permute.xlu0 3
        %2697 = vperm.xlu0 %2696, %v2336
        %v2698 = vpop.permute.xlu0 %2697
        %2699 = vset.pattern.permute.xlu0 3
        %2700 = vperm.xlu0 %2699, %v2337
        %v2701 = vpop.permute.xlu0 %2700
        %2702 = vset.pattern.permute.xlu0 3
        %2703 = vperm.xlu0 %2702, %v2338
        %v2704 = vpop.permute.xlu0 %2703
        %2705 = vset.pattern.permute.xlu0 3
        %2706 = vperm.xlu0 %2705, %v2339
        %v2707 = vpop.permute.xlu0 %2706
        %2708 = vset.pattern.permute.xlu0 3
        %2709 = vperm.xlu0 %2708, %v2340
        %v2710 = vpop.permute.xlu0 %2709
        %2711 = vset.pattern.permute.xlu0 3
        %2712 = vperm.xlu0 %2711, %v2341
        %v2713 = vpop.permute.xlu0 %2712
        %2714 = vset.pattern.permute.xlu0 3
        %2715 = vperm.xlu0 %2714, %v2342
        %v2716 = vpop.permute.xlu0 %2715
        %2717 = vset.pattern.permute.xlu0 3
        %2718 = vperm.xlu0 %2717, %v2343
        %v2719 = vpop.permute.xlu0 %2718
        %2720 = vset.pattern.permute.xlu0 3
        %2721 = vperm.xlu0 %2720, %v2344
        %v2722 = vpop.permute.xlu0 %2721
        %2723 = vset.pattern.permute.xlu0 3
        %2724 = vperm.xlu0 %2723, %v2345
        %v2725 = vpop.permute.xlu0 %2724
        %2726 = vset.pattern.permute.xlu0 3
        %2727 = vperm.xlu0 %2726, %v2346
        %v2728 = vpop.permute.xlu0 %2727
        %2729 = vset.pattern.permute.xlu0 3
        %2730 = vperm.xlu0 %2729, %v2347
        %v2731 = vpop.permute.xlu0 %2730
        %vm2732 = vcmp.eq.s32.totalorder %v1062, %v2686
        %vm2733 = vcmp.eq.s32.totalorder %v1062, %v2689
        %vm2734 = vcmp.eq.s32.totalorder %v1062, %v2692
        %vm2735 = vcmp.eq.s32.totalorder %v1062, %v2695
        %vm2736 = vcmp.eq.s32.totalorder %v1062, %v2698
        %vm2737 = vcmp.eq.s32.totalorder %v1062, %v2701
        %vm2738 = vcmp.eq.s32.totalorder %v1062, %v2704
        %vm2739 = vcmp.eq.s32.totalorder %v1062, %v2707
        %vm2740 = vcmp.eq.s32.totalorder %v1062, %v2710
        %vm2741 = vcmp.eq.s32.totalorder %v1062, %v2713
        %vm2742 = vcmp.eq.s32.totalorder %v1062, %v2716
        %vm2743 = vcmp.eq.s32.totalorder %v1062, %v2719
        %vm2744 = vcmp.eq.s32.totalorder %v1062, %v2722
        %vm2745 = vcmp.eq.s32.totalorder %v1062, %v2725
        %vm2746 = vcmp.eq.s32.totalorder %v1062, %v2728
        %vm2747 = vcmp.eq.s32.totalorder %v1062, %v2731
        %v2748 = vsel %vm2732, 1, 0
        %v2749 = vsel %vm2733, 1, 0
        %v2750 = vsel %vm2734, 1, 0
        %v2751 = vsel %vm2735, 1, 0
        %v2752 = vsel %vm2736, 1, 0
        %v2753 = vsel %vm2737, 1, 0
        %v2754 = vsel %vm2738, 1, 0
        %v2755 = vsel %vm2739, 1, 0
        %v2756 = vsel %vm2740, 1, 0
        %v2757 = vsel %vm2741, 1, 0
        %v2758 = vsel %vm2742, 1, 0
        %v2759 = vsel %vm2743, 1, 0
        %v2760 = vsel %vm2744, 1, 0
        %v2761 = vsel %vm2745, 1, 0
        %v2762 = vsel %vm2746, 1, 0
        %v2763 = vsel %vm2747, 1, 0
        %v2764 = vcvt.s32.f32 %v2748
        %v2765 = vcvt.s32.f32 %v2749
        %v2766 = vcvt.s32.f32 %v2750
        %v2767 = vcvt.s32.f32 %v2751
        %v2768 = vcvt.s32.f32 %v2752
        %v2769 = vcvt.s32.f32 %v2753
        %v2770 = vcvt.s32.f32 %v2754
        %v2771 = vcvt.s32.f32 %v2755
        %v2772 = vcvt.s32.f32 %v2756
        %v2773 = vcvt.s32.f32 %v2757
        %v2774 = vcvt.s32.f32 %v2758
        %v2775 = vcvt.s32.f32 %v2759
        %v2776 = vcvt.s32.f32 %v2760
        %v2777 = vcvt.s32.f32 %v2761
        %v2778 = vcvt.s32.f32 %v2762
        %v2779 = vcvt.s32.f32 %v2763
        %v2780 = vadd.f32 %v2668, %v2764
        %v2781 = vadd.f32 %v2669, %v2765
        %v2782 = vadd.f32 %v2670, %v2766
        %v2783 = vadd.f32 %v2671, %v2767
        %v2784 = vadd.f32 %v2672, %v2768
        %v2785 = vadd.f32 %v2673, %v2769
        %v2786 = vadd.f32 %v2674, %v2770
        %v2787 = vadd.f32 %v2675, %v2771
        %v2788 = vadd.f32 %v2676, %v2772
        %v2789 = vadd.f32 %v2677, %v2773
        %v2790 = vadd.f32 %v2678, %v2774
        %v2791 = vadd.f32 %v2679, %v2775
        %v2792 = vadd.f32 %v2680, %v2776
        %v2793 = vadd.f32 %v2681, %v2777
        %v2794 = vadd.f32 %v2682, %v2778
        %v2795 = vadd.f32 %v2683, %v2779
        %v2796 = vpack.c.bf16 %v2781, %v2780
        %v2797 = vpack.c.bf16 %v2783, %v2782
        %v2798 = vpack.c.bf16 %v2785, %v2784
        %v2799 = vpack.c.bf16 %v2787, %v2786
        %v2800 = vpack.c.bf16 %v2789, %v2788
        %v2801 = vpack.c.bf16 %v2791, %v2790
        %v2802 = vpack.c.bf16 %v2793, %v2792
        %v2803 = vpack.c.bf16 %v2795, %v2794
        %s2804 = scalar_lea.vmem %s2, 128
        %v2805 = vld [vmem:[%s2804] sm:$0xf]
        %v2806 = vld [vmem:[%s2804 + $0x4] sm:$0xf]
        %v2807 = vld [vmem:[%s2804 + $0x8] sm:$0xf]
        %v2808 = vld [vmem:[%s2804 + $0xc] sm:$0xf]
        %v2809 = vld [vmem:[%s2804 + $0x10] sm:$0xf]
        %v2810 = vld [vmem:[%s2804 + $0x14] sm:$0xf]
        %v2811 = vld [vmem:[%s2804 + $0x18] sm:$0xf]
        %v2812 = vld [vmem:[%s2804 + $0x1c] sm:$0xf]
        %v2813 = vld [vmem:[%s2804 + $0x20] sm:$0xf]
        %v2814 = vld [vmem:[%s2804 + $0x24] sm:$0xf]
        %v2815 = vld [vmem:[%s2804 + $0x28] sm:$0xf]
        %v2816 = vld [vmem:[%s2804 + $0x2c] sm:$0xf]
        %v2817 = vld [vmem:[%s2804 + $0x30] sm:$0xf]
        %v2818 = vld [vmem:[%s2804 + $0x34] sm:$0xf]
        %v2819 = vld [vmem:[%s2804 + $0x38] sm:$0xf]
        %v2820 = vld [vmem:[%s2804 + $0x3c] sm:$0xf]
        %v2837 = vunpack.c.l.b16 %v2805
        %v2838 = vunpack.c.l.b16 %v2806
        %v2839 = vunpack.c.l.b16 %v2807
        %v2840 = vunpack.c.l.b16 %v2808
        %v2841 = vunpack.c.l.b16 %v2809
        %v2842 = vunpack.c.l.b16 %v2810
        %v2843 = vunpack.c.l.b16 %v2811
        %v2844 = vunpack.c.l.b16 %v2812
        %v2845 = vunpack.c.l.b16 %v2813
        %v2846 = vunpack.c.l.b16 %v2814
        %v2847 = vunpack.c.l.b16 %v2815
        %v2848 = vunpack.c.l.b16 %v2816
        %v2849 = vunpack.c.l.b16 %v2817
        %v2850 = vunpack.c.l.b16 %v2818
        %v2851 = vunpack.c.l.b16 %v2819
        %v2852 = vunpack.c.l.b16 %v2820
        %v2853 = vpack.c.b16 %v2838, %v2837
        %v2854 = vpack.c.b16 %v2840, %v2839
        %v2855 = vpack.c.b16 %v2842, %v2841
        %v2856 = vpack.c.b16 %v2844, %v2843
        %v2857 = vpack.c.b16 %v2846, %v2845
        %v2858 = vpack.c.b16 %v2848, %v2847
        %v2859 = vpack.c.b16 %v2850, %v2849
        %v2860 = vpack.c.b16 %v2852, %v2851
        %2869 = vmatprep.subr.bf16.mxu0 0
        %2870 = vmatpush1.bf16.msra.mxu0 %v2860
        %2871 = vmatprep.subr.bf16.mxu0 0
        %2872 = vmatpush1.bf16.msra.mxu0 %v2859
        %2873 = vmatprep.subr.bf16.mxu0 0
        %2874 = vmatpush1.bf16.msra.mxu0 %v2858
        %2875 = vmatprep.subr.bf16.mxu0 0
        %2876 = vmatpush1.bf16.msra.mxu0 %v2857
        %2877 = vmatprep.subr.bf16.mxu0 0
        %2878 = vmatpush1.bf16.msra.mxu0 %v2856
        %2879 = vmatprep.subr.bf16.mxu0 0
        %2880 = vmatpush1.bf16.msra.mxu0 %v2855
        %2881 = vmatprep.subr.bf16.mxu0 0
        %2882 = vmatpush1.bf16.msra.mxu0 %v2854
        %2883 = vmatprep.subr.bf16.mxu0 0
        %2884 = vmatpush1.bf16.msra.mxu0 %v2853
        %2885 = vmatprep.subr.bf16.mxu0 0
        %2886 = vmatpush2.bf16.msra.mxu0 0
        %2887 = vmatprep.subr.bf16.mxu0 0
        %2888 = vmatpush2.bf16.msra.mxu0 0
        %2889 = vmatprep.subr.bf16.mxu0 0
        %2890 = vmatpush2.bf16.msra.mxu0 0
        %2891 = vmatprep.subr.bf16.mxu0 0
        %2892 = vmatpush2.bf16.msra.mxu0 0
        %2893 = vmatprep.subr.bf16.mxu0 0
        %2894 = vmatpush2.bf16.msra.mxu0 0
        %2895 = vmatprep.subr.bf16.mxu0 0
        %2896 = vmatpush2.bf16.msra.mxu0 0
        %2897 = vmatprep.subr.bf16.mxu0 0
        %2898 = vmatpush2.bf16.msra.mxu0 0
        %2899 = vmatprep.subr.bf16.mxu0 0
        %2900 = vmatpush2.bf16.msra.mxu0 0
        %2901 = vmatprep.mubr.bf16.mxu0 0
        %2902 = vmatmul.mubr.bf16.gmra.mxu0 %v2796
        %v2903 = vpop.f32.mrf.mxu0
        %v2904 = vadd.f32 0.0, %v2903
        %v2905 = vpop.f32.mrf.mxu0
        %v2906 = vpop.f32.mrf.mxu0
        %v2907 = vadd.f32 0.0, %v2906
        %v2908 = vpop.f32.mrf.mxu0
        %2909 = vmatprep.mubr.bf16.mxu0 0
        %2910 = vmatmul.mubr.bf16.gmra.mxu0 %v2797
        %v2911 = vpop.f32.mrf.mxu0
        %v2912 = vadd.f32 0.0, %v2911
        %v2913 = vpop.f32.mrf.mxu0
        %v2914 = vpop.f32.mrf.mxu0
        %v2915 = vadd.f32 0.0, %v2914
        %v2916 = vpop.f32.mrf.mxu0
        %2917 = vmatprep.mubr.bf16.mxu0 0
        %2918 = vmatmul.mubr.bf16.gmra.mxu0 %v2798
        %v2919 = vpop.f32.mrf.mxu0
        %v2920 = vadd.f32 0.0, %v2919
        %v2921 = vpop.f32.mrf.mxu0
        %v2922 = vpop.f32.mrf.mxu0
        %v2923 = vadd.f32 0.0, %v2922
        %v2924 = vpop.f32.mrf.mxu0
        %2925 = vmatprep.mubr.bf16.mxu0 0
        %2926 = vmatmul.mubr.bf16.gmra.mxu0 %v2799
        %v2927 = vpop.f32.mrf.mxu0
        %v2928 = vadd.f32 0.0, %v2927
        %v2929 = vpop.f32.mrf.mxu0
        %v2930 = vpop.f32.mrf.mxu0
        %v2931 = vadd.f32 0.0, %v2930
        %v2932 = vpop.f32.mrf.mxu0
        %2933 = vmatprep.mubr.bf16.mxu0 0
        %2934 = vmatmul.mubr.bf16.gmra.mxu0 %v2800
        %v2935 = vpop.f32.mrf.mxu0
        %v2936 = vadd.f32 0.0, %v2935
        %v2937 = vpop.f32.mrf.mxu0
        %v2938 = vpop.f32.mrf.mxu0
        %v2939 = vadd.f32 0.0, %v2938
        %v2940 = vpop.f32.mrf.mxu0
        %2941 = vmatprep.mubr.bf16.mxu0 0
        %2942 = vmatmul.mubr.bf16.gmra.mxu0 %v2801
        %v2943 = vpop.f32.mrf.mxu0
        %v2944 = vadd.f32 0.0, %v2943
        %v2945 = vpop.f32.mrf.mxu0
        %v2946 = vpop.f32.mrf.mxu0
        %v2947 = vadd.f32 0.0, %v2946
        %v2948 = vpop.f32.mrf.mxu0
        %2949 = vmatprep.mubr.bf16.mxu0 0
        %2950 = vmatmul.mubr.bf16.gmra.mxu0 %v2802
        %v2951 = vpop.f32.mrf.mxu0
        %v2952 = vadd.f32 0.0, %v2951
        %v2953 = vpop.f32.mrf.mxu0
        %v2954 = vpop.f32.mrf.mxu0
        %v2955 = vadd.f32 0.0, %v2954
        %v2956 = vpop.f32.mrf.mxu0
        %2957 = vmatprep.mubr.bf16.mxu0 0
        %2958 = vmatmul.mubr.bf16.gmra.mxu0 %v2803
        %v2959 = vpop.f32.mrf.mxu0
        %v2960 = vadd.f32 0.0, %v2959
        %v2961 = vpop.f32.mrf.mxu0
        %v2962 = vpop.f32.mrf.mxu0
        %v2963 = vadd.f32 0.0, %v2962
        %v2964 = vpop.f32.mrf.mxu0
        %2965 = vdwg.mxu0
        %2982 = vrot.lane.b32.xlu0 %v1634, 16
        %v2983 = vpop.permute.xlu0 %2982
        %2984 = vrot.lane.b32.xlu0 %v1637, 16
        %v2985 = vpop.permute.xlu0 %2984
        %2986 = vrot.lane.b32.xlu0 %v1642, 16
        %v2987 = vpop.permute.xlu0 %2986
        %2988 = vrot.lane.b32.xlu0 %v1645, 16
        %v2989 = vpop.permute.xlu0 %2988
        %2990 = vrot.lane.b32.xlu0 %v1650, 16
        %v2991 = vpop.permute.xlu0 %2990
        %2992 = vrot.lane.b32.xlu0 %v1653, 16
        %v2993 = vpop.permute.xlu0 %2992
        %2994 = vrot.lane.b32.xlu0 %v1658, 16
        %v2995 = vpop.permute.xlu0 %2994
        %2996 = vrot.lane.b32.xlu0 %v1661, 16
        %v2997 = vpop.permute.xlu0 %2996
        %2998 = vrot.lane.b32.xlu0 %v1666, 16
        %v2999 = vpop.permute.xlu0 %2998
        %3000 = vrot.lane.b32.xlu0 %v1669, 16
        %v3001 = vpop.permute.xlu0 %3000
        %3002 = vrot.lane.b32.xlu0 %v1674, 16
        %v3003 = vpop.permute.xlu0 %3002
        %3004 = vrot.lane.b32.xlu0 %v1677, 16
        %v3005 = vpop.permute.xlu0 %3004
        %3006 = vrot.lane.b32.xlu0 %v1682, 16
        %v3007 = vpop.permute.xlu0 %3006
        %3008 = vrot.lane.b32.xlu0 %v1685, 16
        %v3009 = vpop.permute.xlu0 %3008
        %3010 = vrot.lane.b32.xlu0 %v1690, 16
        %v3011 = vpop.permute.xlu0 %3010
        %3012 = vrot.lane.b32.xlu0 %v1693, 16
        %v3013 = vpop.permute.xlu0 %3012
        %3046 = vrot.lane.b32.xlu0 %v2269, 32
        %v3047 = vpop.permute.xlu0 %3046
        %3048 = vrot.lane.b32.xlu0 %v2272, 32
        %v3049 = vpop.permute.xlu0 %3048
        %3050 = vrot.lane.b32.xlu0 %v2277, 32
        %v3051 = vpop.permute.xlu0 %3050
        %3052 = vrot.lane.b32.xlu0 %v2280, 32
        %v3053 = vpop.permute.xlu0 %3052
        %3054 = vrot.lane.b32.xlu0 %v2285, 32
        %v3055 = vpop.permute.xlu0 %3054
        %3056 = vrot.lane.b32.xlu0 %v2288, 32
        %v3057 = vpop.permute.xlu0 %3056
        %3058 = vrot.lane.b32.xlu0 %v2293, 32
        %v3059 = vpop.permute.xlu0 %3058
        %3060 = vrot.lane.b32.xlu0 %v2296, 32
        %v3061 = vpop.permute.xlu0 %3060
        %3062 = vrot.lane.b32.xlu0 %v2301, 32
        %v3063 = vpop.permute.xlu0 %3062
        %3064 = vrot.lane.b32.xlu0 %v2304, 32
        %v3065 = vpop.permute.xlu0 %3064
        %3066 = vrot.lane.b32.xlu0 %v2309, 32
        %v3067 = vpop.permute.xlu0 %3066
        %3068 = vrot.lane.b32.xlu0 %v2312, 32
        %v3069 = vpop.permute.xlu0 %3068
        %3070 = vrot.lane.b32.xlu0 %v2317, 32
        %v3071 = vpop.permute.xlu0 %3070
        %3072 = vrot.lane.b32.xlu0 %v2320, 32
        %v3073 = vpop.permute.xlu0 %3072
        %3074 = vrot.lane.b32.xlu0 %v2325, 32
        %v3075 = vpop.permute.xlu0 %3074
        %3076 = vrot.lane.b32.xlu0 %v2328, 32
        %v3077 = vpop.permute.xlu0 %3076
        %3110 = vrot.lane.b32.xlu0 %v2904, 48
        %v3111 = vpop.permute.xlu0 %3110
        %3112 = vrot.lane.b32.xlu0 %v2907, 48
        %v3113 = vpop.permute.xlu0 %3112
        %3114 = vrot.lane.b32.xlu0 %v2912, 48
        %v3115 = vpop.permute.xlu0 %3114
        %3116 = vrot.lane.b32.xlu0 %v2915, 48
        %v3117 = vpop.permute.xlu0 %3116
        %3118 = vrot.lane.b32.xlu0 %v2920, 48
        %v3119 = vpop.permute.xlu0 %3118
        %3120 = vrot.lane.b32.xlu0 %v2923, 48
        %v3121 = vpop.permute.xlu0 %3120
        %3122 = vrot.lane.b32.xlu0 %v2928, 48
        %v3123 = vpop.permute.xlu0 %3122
        %3124 = vrot.lane.b32.xlu0 %v2931, 48
        %v3125 = vpop.permute.xlu0 %3124
        %3126 = vrot.lane.b32.xlu0 %v2936, 48
        %v3127 = vpop.permute.xlu0 %3126
        %3128 = vrot.lane.b32.xlu0 %v2939, 48
        %v3129 = vpop.permute.xlu0 %3128
        %3130 = vrot.lane.b32.xlu0 %v2944, 48
        %v3131 = vpop.permute.xlu0 %3130
        %3132 = vrot.lane.b32.xlu0 %v2947, 48
        %v3133 = vpop.permute.xlu0 %3132
        %3134 = vrot.lane.b32.xlu0 %v2952, 48
        %v3135 = vpop.permute.xlu0 %3134
        %3136 = vrot.lane.b32.xlu0 %v2955, 48
        %v3137 = vpop.permute.xlu0 %3136
        %3138 = vrot.lane.b32.xlu0 %v2960, 48
        %v3139 = vpop.permute.xlu0 %3138
        %3140 = vrot.lane.b32.xlu0 %v2963, 48
        %v3141 = vpop.permute.xlu0 %3140
        %v3158 = vsel %vm754, %v1045, %v2983
        %v3159 = vsel %vm754, %v1046, %v2985
        %v3160 = vsel %vm754, %v1047, %v2987
        %v3161 = vsel %vm754, %v1048, %v2989
        %v3162 = vsel %vm754, %v1049, %v2991
        %v3163 = vsel %vm754, %v1050, %v2993
        %v3164 = vsel %vm754, %v1051, %v2995
        %v3165 = vsel %vm754, %v1052, %v2997
        %v3166 = vsel %vm754, %v1053, %v2999
        %v3167 = vsel %vm754, %v1054, %v3001
        %v3168 = vsel %vm754, %v1055, %v3003
        %v3169 = vsel %vm754, %v1056, %v3005
        %v3170 = vsel %vm754, %v1057, %v3007
        %v3171 = vsel %vm754, %v1058, %v3009
        %v3172 = vsel %vm754, %v1059, %v3011
        %v3173 = vsel %vm754, %v1060, %v3013
        %v3174 = vsel %vm923, %v3158, %v3047
        %v3175 = vsel %vm923, %v3159, %v3049
        %v3176 = vsel %vm923, %v3160, %v3051
        %v3177 = vsel %vm923, %v3161, %v3053
        %v3178 = vsel %vm923, %v3162, %v3055
        %v3179 = vsel %vm923, %v3163, %v3057
        %v3180 = vsel %vm923, %v3164, %v3059
        %v3181 = vsel %vm923, %v3165, %v3061
        %v3182 = vsel %vm923, %v3166, %v3063
        %v3183 = vsel %vm923, %v3167, %v3065
        %v3184 = vsel %vm923, %v3168, %v3067
        %v3185 = vsel %vm923, %v3169, %v3069
        %v3186 = vsel %vm923, %v3170, %v3071
        %v3187 = vsel %vm923, %v3171, %v3073
        %v3188 = vsel %vm923, %v3172, %v3075
        %v3189 = vsel %vm923, %v3173, %v3077
        %vm3190 = vcmask 392192
        %v3191 = vsel %vm3190, %v3174, %v3111
        %v3192 = vsel %vm3190, %v3175, %v3113
        %v3193 = vsel %vm3190, %v3176, %v3115
        %v3194 = vsel %vm3190, %v3177, %v3117
        %v3195 = vsel %vm3190, %v3178, %v3119
        %v3196 = vsel %vm3190, %v3179, %v3121
        %v3197 = vsel %vm3190, %v3180, %v3123
        %v3198 = vsel %vm3190, %v3181, %v3125
        %v3199 = vsel %vm3190, %v3182, %v3127
        %v3200 = vsel %vm3190, %v3183, %v3129
        %v3201 = vsel %vm3190, %v3184, %v3131
        %v3202 = vsel %vm3190, %v3185, %v3133
        %v3203 = vsel %vm3190, %v3186, %v3135
        %v3204 = vsel %vm3190, %v3187, %v3137
        %v3205 = vsel %vm3190, %v3188, %v3139
        %v3206 = vsel %vm3190, %v3189, %v3141
        %v3207 = vpack.c.bf16 %v3192, %v3191
        %v3208 = vpack.c.bf16 %v3194, %v3193
        %v3209 = vpack.c.bf16 %v3196, %v3195
        %v3210 = vpack.c.bf16 %v3198, %v3197
        %v3211 = vpack.c.bf16 %v3200, %v3199
        %v3212 = vpack.c.bf16 %v3202, %v3201
        %v3213 = vpack.c.bf16 %v3204, %v3203
        %v3214 = vpack.c.bf16 %v3206, %v3205
        %v3215 = vld [vmem:[%s3] sm:$0xf]
        %v3216 = vld [vmem:[%s3 + $0x4] sm:$0xf]
        %v3217 = vld [vmem:[%s3 + $0x8] sm:$0xf]
        %v3218 = vld [vmem:[%s3 + $0xc] sm:$0xf]
        %v3219 = vld [vmem:[%s3 + $0x10] sm:$0xf]
        %v3220 = vld [vmem:[%s3 + $0x14] sm:$0xf]
        %v3221 = vld [vmem:[%s3 + $0x18] sm:$0xf]
        %v3222 = vld [vmem:[%s3 + $0x1c] sm:$0xf]
        %v3231 = vunpack.c.l.b16 %v3215
        %v3232 = vunpack.c.l.b16 %v3216
        %v3233 = vunpack.c.l.b16 %v3217
        %v3234 = vunpack.c.l.b16 %v3218
        %v3235 = vunpack.c.l.b16 %v3219
        %v3236 = vunpack.c.l.b16 %v3220
        %v3237 = vunpack.c.l.b16 %v3221
        %v3238 = vunpack.c.l.b16 %v3222
        %v3239 = vpack.c.b16 %v3232, %v3231
        %v3240 = vpack.c.b16 %v3234, %v3233
        %v3241 = vpack.c.b16 %v3236, %v3235
        %v3242 = vpack.c.b16 %v3238, %v3237
        %vm3247 = vcmask 523264
        %v3249 = vsel %vm3247, %v3207, 0
        %v3252 = vsel %vm3247, %v3208, 0
        %v3255 = vsel %vm3247, %v3209, 0
        %v3258 = vsel %vm3247, %v3210, 0
        %v3261 = vsel %vm3247, %v3211, 0
        %v3264 = vsel %vm3247, %v3212, 0
        %v3267 = vsel %vm3247, %v3213, 0
        %v3270 = vsel %vm3247, %v3214, 0
        %3272 = vmatprep.subr.bf16.mxu0 0
        %3273 = vmatpush1.bf16.msra.mxu0 0
        %3274 = vmatprep.subr.bf16.mxu0 0
        %3275 = vmatpush1.bf16.msra.mxu0 0
        %3276 = vmatprep.subr.bf16.mxu0 0
        %3277 = vmatpush1.bf16.msra.mxu0 0
        %3278 = vmatprep.subr.bf16.mxu0 0
        %3279 = vmatpush1.bf16.msra.mxu0 0
        %3280 = vmatprep.subr.bf16.mxu0 0
        %3281 = vmatpush1.bf16.msra.mxu0 %v3242
        %3282 = vmatprep.subr.bf16.mxu0 0
        %3283 = vmatpush1.bf16.msra.mxu0 %v3241
        %3284 = vmatprep.subr.bf16.mxu0 0
        %3285 = vmatpush1.bf16.msra.mxu0 %v3240
        %3286 = vmatprep.subr.bf16.mxu0 0
        %3287 = vmatpush1.bf16.msra.mxu0 %v3239
        %3288 = vmatprep.subr.bf16.mxu0 0
        %3289 = vmatpush2.bf16.msra.mxu0 0
        %3290 = vmatprep.subr.bf16.mxu0 0
        %3291 = vmatpush2.bf16.msra.mxu0 0
        %3292 = vmatprep.subr.bf16.mxu0 0
        %3293 = vmatpush2.bf16.msra.mxu0 0
        %3294 = vmatprep.subr.bf16.mxu0 0
        %3295 = vmatpush2.bf16.msra.mxu0 0
        %3296 = vmatprep.subr.bf16.mxu0 0
        %3297 = vmatpush2.bf16.msra.mxu0 0
        %3298 = vmatprep.subr.bf16.mxu0 0
        %3299 = vmatpush2.bf16.msra.mxu0 0
        %3300 = vmatprep.subr.bf16.mxu0 0
        %3301 = vmatpush2.bf16.msra.mxu0 0
        %3302 = vmatprep.subr.bf16.mxu0 0
        %3303 = vmatpush2.bf16.msra.mxu0 0
        %3304 = vmatprep.mubr.bf16.mxu0 0
        %3305 = vmatmul.mubr.bf16.gmra.mxu0 %v3249
        %v3306 = vpop.f32.mrf.mxu0
        %v3307 = vadd.f32 0.0, %v3306
        %v3308 = vpop.f32.mrf.mxu0
        %v3309 = vpop.f32.mrf.mxu0
        %v3310 = vadd.f32 0.0, %v3309
        %v3311 = vpop.f32.mrf.mxu0
        %3312 = vmatprep.mubr.bf16.mxu0 0
        %3313 = vmatmul.mubr.bf16.gmra.mxu0 %v3252
        %v3314 = vpop.f32.mrf.mxu0
        %v3315 = vadd.f32 0.0, %v3314
        %v3316 = vpop.f32.mrf.mxu0
        %v3317 = vpop.f32.mrf.mxu0
        %v3318 = vadd.f32 0.0, %v3317
        %v3319 = vpop.f32.mrf.mxu0
        %3320 = vmatprep.mubr.bf16.mxu0 0
        %3321 = vmatmul.mubr.bf16.gmra.mxu0 %v3255
        %v3322 = vpop.f32.mrf.mxu0
        %v3323 = vadd.f32 0.0, %v3322
        %v3324 = vpop.f32.mrf.mxu0
        %v3325 = vpop.f32.mrf.mxu0
        %v3326 = vadd.f32 0.0, %v3325
        %v3327 = vpop.f32.mrf.mxu0
        %3328 = vmatprep.mubr.bf16.mxu0 0
        %3329 = vmatmul.mubr.bf16.gmra.mxu0 %v3258
        %v3330 = vpop.f32.mrf.mxu0
        %v3331 = vadd.f32 0.0, %v3330
        %v3332 = vpop.f32.mrf.mxu0
        %v3333 = vpop.f32.mrf.mxu0
        %v3334 = vadd.f32 0.0, %v3333
        %v3335 = vpop.f32.mrf.mxu0
        %3336 = vmatprep.mubr.bf16.mxu0 0
        %3337 = vmatmul.mubr.bf16.gmra.mxu0 %v3261
        %v3338 = vpop.f32.mrf.mxu0
        %v3339 = vadd.f32 0.0, %v3338
        %v3340 = vpop.f32.mrf.mxu0
        %v3341 = vpop.f32.mrf.mxu0
        %v3342 = vadd.f32 0.0, %v3341
        %v3343 = vpop.f32.mrf.mxu0
        %3344 = vmatprep.mubr.bf16.mxu0 0
        %3345 = vmatmul.mubr.bf16.gmra.mxu0 %v3264
        %v3346 = vpop.f32.mrf.mxu0
        %v3347 = vadd.f32 0.0, %v3346
        %v3348 = vpop.f32.mrf.mxu0
        %v3349 = vpop.f32.mrf.mxu0
        %v3350 = vadd.f32 0.0, %v3349
        %v3351 = vpop.f32.mrf.mxu0
        %3352 = vmatprep.mubr.bf16.mxu0 0
        %3353 = vmatmul.mubr.bf16.gmra.mxu0 %v3267
        %v3354 = vpop.f32.mrf.mxu0
        %v3355 = vadd.f32 0.0, %v3354
        %v3356 = vpop.f32.mrf.mxu0
        %v3357 = vpop.f32.mrf.mxu0
        %v3358 = vadd.f32 0.0, %v3357
        %v3359 = vpop.f32.mrf.mxu0
        %3360 = vmatprep.mubr.bf16.mxu0 0
        %3361 = vmatmul.mubr.bf16.gmra.mxu0 %v3270
        %v3362 = vpop.f32.mrf.mxu0
        %v3363 = vadd.f32 0.0, %v3362
        %v3364 = vpop.f32.mrf.mxu0
        %v3365 = vpop.f32.mrf.mxu0
        %v3366 = vadd.f32 0.0, %v3365
        %v3367 = vpop.f32.mrf.mxu0
        %3368 = vdwg.mxu0
        %v3369 = vld [vmem:[%s4] sm:$0xf]
        %v3370 = vld [vmem:[%s4 + $0x4] sm:$0xf]
        %v3371 = vld [vmem:[%s4 + $0x8] sm:$0xf]
        %v3372 = vld [vmem:[%s4 + $0xc] sm:$0xf]
        %v3373 = vld [vmem:[%s4 + $0x10] sm:$0xf]
        %v3374 = vld [vmem:[%s4 + $0x14] sm:$0xf]
        %v3375 = vld [vmem:[%s4 + $0x18] sm:$0xf]
        %v3376 = vld [vmem:[%s4 + $0x1c] sm:$0xf]
        %v3385 = vunpack.c.l.b16 %v3369
        %v3386 = vunpack.c.l.b16 %v3370
        %v3387 = vunpack.c.l.b16 %v3371
        %v3388 = vunpack.c.l.b16 %v3372
        %v3389 = vunpack.c.l.b16 %v3373
        %v3390 = vunpack.c.l.b16 %v3374
        %v3391 = vunpack.c.l.b16 %v3375
        %v3392 = vunpack.c.l.b16 %v3376
        %v3393 = vpack.c.b16 %v3386, %v3385
        %v3394 = vpack.c.b16 %v3388, %v3387
        %v3395 = vpack.c.b16 %v3390, %v3389
        %v3396 = vpack.c.b16 %v3392, %v3391
        %3401 = vmatprep.subr.bf16.mxu0 0
        %3402 = vmatpush1.bf16.msra.mxu0 0
        %3403 = vmatprep.subr.bf16.mxu0 0
        %3404 = vmatpush1.bf16.msra.mxu0 0
        %3405 = vmatprep.subr.bf16.mxu0 0
        %3406 = vmatpush1.bf16.msra.mxu0 0
        %3407 = vmatprep.subr.bf16.mxu0 0
        %3408 = vmatpush1.bf16.msra.mxu0 0
        %3409 = vmatprep.subr.bf16.mxu0 0
        %3410 = vmatpush1.bf16.msra.mxu0 %v3396
        %3411 = vmatprep.subr.bf16.mxu0 0
        %3412 = vmatpush1.bf16.msra.mxu0 %v3395
        %3413 = vmatprep.subr.bf16.mxu0 0
        %3414 = vmatpush1.bf16.msra.mxu0 %v3394
        %3415 = vmatprep.subr.bf16.mxu0 0
        %3416 = vmatpush1.bf16.msra.mxu0 %v3393
        %3417 = vmatprep.subr.bf16.mxu0 0
        %3418 = vmatpush2.bf16.msra.mxu0 0
        %3419 = vmatprep.subr.bf16.mxu0 0
        %3420 = vmatpush2.bf16.msra.mxu0 0
        %3421 = vmatprep.subr.bf16.mxu0 0
        %3422 = vmatpush2.bf16.msra.mxu0 0
        %3423 = vmatprep.subr.bf16.mxu0 0
        %3424 = vmatpush2.bf16.msra.mxu0 0
        %3425 = vmatprep.subr.bf16.mxu0 0
        %3426 = vmatpush2.bf16.msra.mxu0 0
        %3427 = vmatprep.subr.bf16.mxu0 0
        %3428 = vmatpush2.bf16.msra.mxu0 0
        %3429 = vmatprep.subr.bf16.mxu0 0
        %3430 = vmatpush2.bf16.msra.mxu0 0
        %3431 = vmatprep.subr.bf16.mxu0 0
        %3432 = vmatpush2.bf16.msra.mxu0 0
        %3433 = vmatprep.mubr.bf16.mxu0 0
        %3434 = vmatmul.mubr.bf16.gmra.mxu0 %v3249
        %v3435 = vpop.f32.mrf.mxu0
        %v3436 = vadd.f32 0.0, %v3435
        %v3437 = vpop.f32.mrf.mxu0
        %v3438 = vpop.f32.mrf.mxu0
        %v3439 = vadd.f32 0.0, %v3438
        %v3440 = vpop.f32.mrf.mxu0
        %3441 = vmatprep.mubr.bf16.mxu0 0
        %3442 = vmatmul.mubr.bf16.gmra.mxu0 %v3252
        %v3443 = vpop.f32.mrf.mxu0
        %v3444 = vadd.f32 0.0, %v3443
        %v3445 = vpop.f32.mrf.mxu0
        %v3446 = vpop.f32.mrf.mxu0
        %v3447 = vadd.f32 0.0, %v3446
        %v3448 = vpop.f32.mrf.mxu0
        %3449 = vmatprep.mubr.bf16.mxu0 0
        %3450 = vmatmul.mubr.bf16.gmra.mxu0 %v3255
        %v3451 = vpop.f32.mrf.mxu0
        %v3452 = vadd.f32 0.0, %v3451
        %v3453 = vpop.f32.mrf.mxu0
        %v3454 = vpop.f32.mrf.mxu0
        %v3455 = vadd.f32 0.0, %v3454
        %v3456 = vpop.f32.mrf.mxu0
        %3457 = vmatprep.mubr.bf16.mxu0 0
        %3458 = vmatmul.mubr.bf16.gmra.mxu0 %v3258
        %v3459 = vpop.f32.mrf.mxu0
        %v3460 = vadd.f32 0.0, %v3459
        %v3461 = vpop.f32.mrf.mxu0
        %v3462 = vpop.f32.mrf.mxu0
        %v3463 = vadd.f32 0.0, %v3462
        %v3464 = vpop.f32.mrf.mxu0
        %3465 = vmatprep.mubr.bf16.mxu0 0
        %3466 = vmatmul.mubr.bf16.gmra.mxu0 %v3261
        %v3467 = vpop.f32.mrf.mxu0
        %v3468 = vadd.f32 0.0, %v3467
        %v3469 = vpop.f32.mrf.mxu0
        %v3470 = vpop.f32.mrf.mxu0
        %v3471 = vadd.f32 0.0, %v3470
        %v3472 = vpop.f32.mrf.mxu0
        %3473 = vmatprep.mubr.bf16.mxu0 0
        %3474 = vmatmul.mubr.bf16.gmra.mxu0 %v3264
        %v3475 = vpop.f32.mrf.mxu0
        %v3476 = vadd.f32 0.0, %v3475
        %v3477 = vpop.f32.mrf.mxu0
        %v3478 = vpop.f32.mrf.mxu0
        %v3479 = vadd.f32 0.0, %v3478
        %v3480 = vpop.f32.mrf.mxu0
        %3481 = vmatprep.mubr.bf16.mxu0 0
        %3482 = vmatmul.mubr.bf16.gmra.mxu0 %v3267
        %v3483 = vpop.f32.mrf.mxu0
        %v3484 = vadd.f32 0.0, %v3483
        %v3485 = vpop.f32.mrf.mxu0
        %v3486 = vpop.f32.mrf.mxu0
        %v3487 = vadd.f32 0.0, %v3486
        %v3488 = vpop.f32.mrf.mxu0
        %3489 = vmatprep.mubr.bf16.mxu0 0
        %3490 = vmatmul.mubr.bf16.gmra.mxu0 %v3270
        %v3491 = vpop.f32.mrf.mxu0
        %v3492 = vadd.f32 0.0, %v3491
        %v3493 = vpop.f32.mrf.mxu0
        %v3494 = vpop.f32.mrf.mxu0
        %v3495 = vadd.f32 0.0, %v3494
        %v3496 = vpop.f32.mrf.mxu0
        %3497 = vdwg.mxu0
        %v3498 = vmul.f32 %v3307, %v3436
        %v3499 = vmul.f32 %v3310, %v3439
        %v3500 = vmul.f32 %v3315, %v3444
        %v3501 = vmul.f32 %v3318, %v3447
        %v3502 = vmul.f32 %v3323, %v3452
        %v3503 = vmul.f32 %v3326, %v3455
        %v3504 = vmul.f32 %v3331, %v3460
        %v3505 = vmul.f32 %v3334, %v3463
        %v3506 = vmul.f32 %v3339, %v3468
        %v3507 = vmul.f32 %v3342, %v3471
        %v3508 = vmul.f32 %v3347, %v3476
        %v3509 = vmul.f32 %v3350, %v3479
        %v3510 = vmul.f32 %v3355, %v3484
        %v3511 = vmul.f32 %v3358, %v3487
        %v3512 = vmul.f32 %v3363, %v3492
        %v3513 = vmul.f32 %v3366, %v3495
        %v3514 = vpack.c.bf16 %v3499, %v3498
        %v3515 = vpack.c.bf16 %v3501, %v3500
        %v3516 = vpack.c.bf16 %v3503, %v3502
        %v3517 = vpack.c.bf16 %v3505, %v3504
        %v3518 = vpack.c.bf16 %v3507, %v3506
        %v3519 = vpack.c.bf16 %v3509, %v3508
        %v3520 = vpack.c.bf16 %v3511, %v3510
        %v3521 = vpack.c.bf16 %v3513, %v3512
        %v3522 = vld [vmem:[%s5] sm:$0xf]
        %v3523 = vld [vmem:[%s5 + $0x4] sm:$0xf]
        %v3524 = vld [vmem:[%s5 + $0x8] sm:$0xf]
        %v3525 = vld [vmem:[%s5 + $0xc] sm:$0xf]
        %v3526 = vld [vmem:[%s5 + $0x10] sm:$0xf]
        %v3527 = vld [vmem:[%s5 + $0x14] sm:$0xf]
        %v3528 = vld [vmem:[%s5 + $0x18] sm:$0xf]
        %v3529 = vld [vmem:[%s5 + $0x1c] sm:$0xf]
        %v3530 = vld [vmem:[%s5 + $0x20] sm:$0xf]
        %v3531 = vld [vmem:[%s5 + $0x24] sm:$0xf]
        %v3532 = vld [vmem:[%s5 + $0x28] sm:$0xf]
        %v3533 = vld [vmem:[%s5 + $0x2c] sm:$0xf]
        %v3546 = vunpack.c.l.b16 %v3522
        %v3547 = vunpack.c.l.b16 %v3523
        %v3548 = vunpack.c.l.b16 %v3524
        %v3549 = vunpack.c.l.b16 %v3525
        %v3550 = vunpack.c.l.b16 %v3526
        %v3551 = vunpack.c.l.b16 %v3527
        %v3552 = vunpack.c.l.b16 %v3528
        %v3553 = vunpack.c.l.b16 %v3529
        %v3554 = vunpack.c.l.b16 %v3530
        %v3555 = vunpack.c.l.b16 %v3531
        %v3556 = vunpack.c.l.b16 %v3532
        %v3557 = vunpack.c.l.b16 %v3533
        %v3558 = vpack.c.b16 %v3547, %v3546
        %v3559 = vpack.c.b16 %v3549, %v3548
        %v3560 = vpack.c.b16 %v3551, %v3550
        %v3561 = vpack.c.b16 %v3553, %v3552
        %v3562 = vpack.c.b16 %v3555, %v3554
        %v3563 = vpack.c.b16 %v3557, %v3556
        %vm3570 = vcmask 785408
        %v3572 = vsel %vm3570, %v3514, 0
        %v3575 = vsel %vm3570, %v3515, 0
        %v3578 = vsel %vm3570, %v3516, 0
        %v3581 = vsel %vm3570, %v3517, 0
        %v3584 = vsel %vm3570, %v3518, 0
        %v3587 = vsel %vm3570, %v3519, 0
        %v3590 = vsel %vm3570, %v3520, 0
        %v3593 = vsel %vm3570, %v3521, 0
        %3595 = vmatprep.subr.bf16.mxu0 0
        %3596 = vmatpush1.bf16.msra.mxu0 0
        %3597 = vmatprep.subr.bf16.mxu0 0
        %3598 = vmatpush1.bf16.msra.mxu0 0
        %3599 = vmatprep.subr.bf16.mxu0 0
        %3600 = vmatpush1.bf16.msra.mxu0 %v3563
        %3601 = vmatprep.subr.bf16.mxu0 0
        %3602 = vmatpush1.bf16.msra.mxu0 %v3562
        %3603 = vmatprep.subr.bf16.mxu0 0
        %3604 = vmatpush1.bf16.msra.mxu0 %v3561
        %3605 = vmatprep.subr.bf16.mxu0 0
        %3606 = vmatpush1.bf16.msra.mxu0 %v3560
        %3607 = vmatprep.subr.bf16.mxu0 0
        %3608 = vmatpush1.bf16.msra.mxu0 %v3559
        %3609 = vmatprep.subr.bf16.mxu0 0
        %3610 = vmatpush1.bf16.msra.mxu0 %v3558
        %3611 = vmatprep.subr.bf16.mxu0 0
        %3612 = vmatpush2.bf16.msra.mxu0 0
        %3613 = vmatprep.subr.bf16.mxu0 0
        %3614 = vmatpush2.bf16.msra.mxu0 0
        %3615 = vmatprep.subr.bf16.mxu0 0
        %3616 = vmatpush2.bf16.msra.mxu0 0
        %3617 = vmatprep.subr.bf16.mxu0 0
        %3618 = vmatpush2.bf16.msra.mxu0 0
        %3619 = vmatprep.subr.bf16.mxu0 0
        %3620 = vmatpush2.bf16.msra.mxu0 0
        %3621 = vmatprep.subr.bf16.mxu0 0
        %3622 = vmatpush2.bf16.msra.mxu0 0
        %3623 = vmatprep.subr.bf16.mxu0 0
        %3624 = vmatpush2.bf16.msra.mxu0 0
        %3625 = vmatprep.subr.bf16.mxu0 0
        %3626 = vmatpush2.bf16.msra.mxu0 0
        %3627 = vmatprep.mubr.bf16.mxu0 0
        %3628 = vmatmul.mubr.bf16.gmra.mxu0 %v3572
        %v3629 = vpop.f32.mrf.mxu0
        %v3630 = vadd.f32 0.0, %v3629
        %v3631 = vpop.f32.mrf.mxu0
        %v3632 = vpop.f32.mrf.mxu0
        %v3633 = vadd.f32 0.0, %v3632
        %v3634 = vpop.f32.mrf.mxu0
        %3635 = vmatprep.mubr.bf16.mxu0 0
        %3636 = vmatmul.mubr.bf16.gmra.mxu0 %v3575
        %v3637 = vpop.f32.mrf.mxu0
        %v3638 = vadd.f32 0.0, %v3637
        %v3639 = vpop.f32.mrf.mxu0
        %v3640 = vpop.f32.mrf.mxu0
        %v3641 = vadd.f32 0.0, %v3640
        %v3642 = vpop.f32.mrf.mxu0
        %3643 = vmatprep.mubr.bf16.mxu0 0
        %3644 = vmatmul.mubr.bf16.gmra.mxu0 %v3578
        %v3645 = vpop.f32.mrf.mxu0
        %v3646 = vadd.f32 0.0, %v3645
        %v3647 = vpop.f32.mrf.mxu0
        %v3648 = vpop.f32.mrf.mxu0
        %v3649 = vadd.f32 0.0, %v3648
        %v3650 = vpop.f32.mrf.mxu0
        %3651 = vmatprep.mubr.bf16.mxu0 0
        %3652 = vmatmul.mubr.bf16.gmra.mxu0 %v3581
        %v3653 = vpop.f32.mrf.mxu0
        %v3654 = vadd.f32 0.0, %v3653
        %v3655 = vpop.f32.mrf.mxu0
        %v3656 = vpop.f32.mrf.mxu0
        %v3657 = vadd.f32 0.0, %v3656
        %v3658 = vpop.f32.mrf.mxu0
        %3659 = vmatprep.mubr.bf16.mxu0 0
        %3660 = vmatmul.mubr.bf16.gmra.mxu0 %v3584
        %v3661 = vpop.f32.mrf.mxu0
        %v3662 = vadd.f32 0.0, %v3661
        %v3663 = vpop.f32.mrf.mxu0
        %v3664 = vpop.f32.mrf.mxu0
        %v3665 = vadd.f32 0.0, %v3664
        %v3666 = vpop.f32.mrf.mxu0
        %3667 = vmatprep.mubr.bf16.mxu0 0
        %3668 = vmatmul.mubr.bf16.gmra.mxu0 %v3587
        %v3669 = vpop.f32.mrf.mxu0
        %v3670 = vadd.f32 0.0, %v3669
        %v3671 = vpop.f32.mrf.mxu0
        %v3672 = vpop.f32.mrf.mxu0
        %v3673 = vadd.f32 0.0, %v3672
        %v3674 = vpop.f32.mrf.mxu0
        %3675 = vmatprep.mubr.bf16.mxu0 0
        %3676 = vmatmul.mubr.bf16.gmra.mxu0 %v3590
        %v3677 = vpop.f32.mrf.mxu0
        %v3678 = vadd.f32 0.0, %v3677
        %v3679 = vpop.f32.mrf.mxu0
        %v3680 = vpop.f32.mrf.mxu0
        %v3681 = vadd.f32 0.0, %v3680
        %v3682 = vpop.f32.mrf.mxu0
        %3683 = vmatprep.mubr.bf16.mxu0 0
        %3684 = vmatmul.mubr.bf16.gmra.mxu0 %v3593
        %v3685 = vpop.f32.mrf.mxu0
        %v3686 = vadd.f32 0.0, %v3685
        %v3687 = vpop.f32.mrf.mxu0
        %v3688 = vpop.f32.mrf.mxu0
        %v3689 = vadd.f32 0.0, %v3688
        %v3690 = vpop.f32.mrf.mxu0
        %3691 = vdwg.mxu0
        %3708 = vrot.lane.b32.xlu0 %v3630, 16
        %v3709 = vpop.permute.xlu0 %3708
        %3710 = vrot.lane.b32.xlu0 %v3633, 16
        %v3711 = vpop.permute.xlu0 %3710
        %3712 = vrot.lane.b32.xlu0 %v3638, 16
        %v3713 = vpop.permute.xlu0 %3712
        %3714 = vrot.lane.b32.xlu0 %v3641, 16
        %v3715 = vpop.permute.xlu0 %3714
        %3716 = vrot.lane.b32.xlu0 %v3646, 16
        %v3717 = vpop.permute.xlu0 %3716
        %3718 = vrot.lane.b32.xlu0 %v3649, 16
        %v3719 = vpop.permute.xlu0 %3718
        %3720 = vrot.lane.b32.xlu0 %v3654, 16
        %v3721 = vpop.permute.xlu0 %3720
        %3722 = vrot.lane.b32.xlu0 %v3657, 16
        %v3723 = vpop.permute.xlu0 %3722
        %3724 = vrot.lane.b32.xlu0 %v3662, 16
        %v3725 = vpop.permute.xlu0 %3724
        %3726 = vrot.lane.b32.xlu0 %v3665, 16
        %v3727 = vpop.permute.xlu0 %3726
        %3728 = vrot.lane.b32.xlu0 %v3670, 16
        %v3729 = vpop.permute.xlu0 %3728
        %3730 = vrot.lane.b32.xlu0 %v3673, 16
        %v3731 = vpop.permute.xlu0 %3730
        %3732 = vrot.lane.b32.xlu0 %v3678, 16
        %v3733 = vpop.permute.xlu0 %3732
        %3734 = vrot.lane.b32.xlu0 %v3681, 16
        %v3735 = vpop.permute.xlu0 %3734
        %3736 = vrot.lane.b32.xlu0 %v3686, 16
        %v3737 = vpop.permute.xlu0 %3736
        %3738 = vrot.lane.b32.xlu0 %v3689, 16
        %v3739 = vpop.permute.xlu0 %3738
        %v3756 = vsel %vm754, %v1045, %v3709
        %v3757 = vsel %vm754, %v1046, %v3711
        %v3758 = vsel %vm754, %v1047, %v3713
        %v3759 = vsel %vm754, %v1048, %v3715
        %v3760 = vsel %vm754, %v1049, %v3717
        %v3761 = vsel %vm754, %v1050, %v3719
        %v3762 = vsel %vm754, %v1051, %v3721
        %v3763 = vsel %vm754, %v1052, %v3723
        %v3764 = vsel %vm754, %v1053, %v3725
        %v3765 = vsel %vm754, %v1054, %v3727
        %v3766 = vsel %vm754, %v1055, %v3729
        %v3767 = vsel %vm754, %v1056, %v3731
        %v3768 = vsel %vm754, %v1057, %v3733
        %v3769 = vsel %vm754, %v1058, %v3735
        %v3770 = vsel %vm754, %v1059, %v3737
        %v3771 = vsel %vm754, %v1060, %v3739
        %v3772 = vpack.c.bf16 %v3757, %v3756
        %v3773 = vpack.c.bf16 %v3759, %v3758
        %v3774 = vpack.c.bf16 %v3761, %v3760
        %v3775 = vpack.c.bf16 %v3763, %v3762
        %v3776 = vpack.c.bf16 %v3765, %v3764
        %v3777 = vpack.c.bf16 %v3767, %v3766
        %v3778 = vpack.c.bf16 %v3769, %v3768
        %v3779 = vpack.c.bf16 %v3771, %v3770
        %v3780 = vld [vmem:[%s10] sm:$0xf]
        %v3781 = vld [vmem:[%s10 + $0x4] sm:$0xf]
        %v3782 = vld [vmem:[%s10 + $0x8] sm:$0xf]
        %v3783 = vld [vmem:[%s10 + $0xc] sm:$0xf]
        %v3784 = vld [vmem:[%s11] sm:$0x1]
        %v3786 = vlaneseq
        %v3787 = vshrl.u32 %v3786, 7
        %v3788 = vsub.s32 0, %v3787
        %v3789 = vrot.slane %v3784, %v3788
        %v3795 = vunpack.c.l.b16 %v3780
        %v3796 = vunpack.c.l.b16 %v3781
        %v3797 = vunpack.c.l.b16 %v3782
        %v3798 = vunpack.c.l.b16 %v3783
        %v3799 = vpack.c.b16 %v3796, %v3795
        %v3800 = vpack.c.b16 %v3798, %v3797
        %v3804 = vsel %vm923, %v3772, 0
        %v3807 = vsel %vm923, %v3773, 0
        %v3810 = vsel %vm923, %v3774, 0
        %v3813 = vsel %vm923, %v3775, 0
        %v3816 = vsel %vm923, %v3776, 0
        %v3819 = vsel %vm923, %v3777, 0
        %v3822 = vsel %vm923, %v3778, 0
        %v3825 = vsel %vm923, %v3779, 0
        %3827 = vmatprep.subr.bf16.mxu0 0
        %3828 = vmatpush1.bf16.msra.mxu0 0
        %3829 = vmatprep.subr.bf16.mxu0 0
        %3830 = vmatpush1.bf16.msra.mxu0 0
        %3831 = vmatprep.subr.bf16.mxu0 0
        %3832 = vmatpush1.bf16.msra.mxu0 0
        %3833 = vmatprep.subr.bf16.mxu0 0
        %3834 = vmatpush1.bf16.msra.mxu0 0
        %3835 = vmatprep.subr.bf16.mxu0 0
        %3836 = vmatpush1.bf16.msra.mxu0 0
        %3837 = vmatprep.subr.bf16.mxu0 0
        %3838 = vmatpush1.bf16.msra.mxu0 0
        %3839 = vmatprep.subr.bf16.mxu0 0
        %3840 = vmatpush1.bf16.msra.mxu0 %v3800
        %3841 = vmatprep.subr.bf16.mxu0 0
        %3842 = vmatpush1.bf16.msra.mxu0 %v3799
        %3843 = vmatprep.subr.bf16.mxu0 0
        %3844 = vmatpush2.bf16.msra.mxu0 0
        %3845 = vmatprep.subr.bf16.mxu0 0
        %3846 = vmatpush2.bf16.msra.mxu0 0
        %3847 = vmatprep.subr.bf16.mxu0 0
        %3848 = vmatpush2.bf16.msra.mxu0 0
        %3849 = vmatprep.subr.bf16.mxu0 0
        %3850 = vmatpush2.bf16.msra.mxu0 0
        %3851 = vmatprep.subr.bf16.mxu0 0
        %3852 = vmatpush2.bf16.msra.mxu0 0
        %3853 = vmatprep.subr.bf16.mxu0 0
        %3854 = vmatpush2.bf16.msra.mxu0 0
        %3855 = vmatprep.subr.bf16.mxu0 0
        %3856 = vmatpush2.bf16.msra.mxu0 0
        %3857 = vmatprep.subr.bf16.mxu0 0
        %3858 = vmatpush2.bf16.msra.mxu0 0
        %3859 = vmatprep.mubr.bf16.mxu0 0
        %3860 = vmatmul.mubr.bf16.gmra.mxu0 %v3804
        %v3861 = vpop.f32.mrf.mxu0
        %v3862 = vadd.f32 %v3789, %v3861
        %v3863 = vpop.f32.mrf.mxu0
        %v3864 = vpop.f32.mrf.mxu0
        %v3865 = vadd.f32 %v3789, %v3864
        %v3866 = vpop.f32.mrf.mxu0
        %3867 = vmatprep.mubr.bf16.mxu0 0
        %3868 = vmatmul.mubr.bf16.gmra.mxu0 %v3807
        %v3869 = vpop.f32.mrf.mxu0
        %v3870 = vadd.f32 %v3789, %v3869
        %v3871 = vpop.f32.mrf.mxu0
        %v3872 = vpop.f32.mrf.mxu0
        %v3873 = vadd.f32 %v3789, %v3872
        %v3874 = vpop.f32.mrf.mxu0
        %3875 = vmatprep.mubr.bf16.mxu0 0
        %3876 = vmatmul.mubr.bf16.gmra.mxu0 %v3810
        %v3877 = vpop.f32.mrf.mxu0
        %v3878 = vadd.f32 %v3789, %v3877
        %v3879 = vpop.f32.mrf.mxu0
        %v3880 = vpop.f32.mrf.mxu0
        %v3881 = vadd.f32 %v3789, %v3880
        %v3882 = vpop.f32.mrf.mxu0
        %3883 = vmatprep.mubr.bf16.mxu0 0
        %3884 = vmatmul.mubr.bf16.gmra.mxu0 %v3813
        %v3885 = vpop.f32.mrf.mxu0
        %v3886 = vadd.f32 %v3789, %v3885
        %v3887 = vpop.f32.mrf.mxu0
        %v3888 = vpop.f32.mrf.mxu0
        %v3889 = vadd.f32 %v3789, %v3888
        %v3890 = vpop.f32.mrf.mxu0
        %3891 = vmatprep.mubr.bf16.mxu0 0
        %3892 = vmatmul.mubr.bf16.gmra.mxu0 %v3816
        %v3893 = vpop.f32.mrf.mxu0
        %v3894 = vadd.f32 %v3789, %v3893
        %v3895 = vpop.f32.mrf.mxu0
        %v3896 = vpop.f32.mrf.mxu0
        %v3897 = vadd.f32 %v3789, %v3896
        %v3898 = vpop.f32.mrf.mxu0
        %3899 = vmatprep.mubr.bf16.mxu0 0
        %3900 = vmatmul.mubr.bf16.gmra.mxu0 %v3819
        %v3901 = vpop.f32.mrf.mxu0
        %v3902 = vadd.f32 %v3789, %v3901
        %v3903 = vpop.f32.mrf.mxu0
        %v3904 = vpop.f32.mrf.mxu0
        %v3905 = vadd.f32 %v3789, %v3904
        %v3906 = vpop.f32.mrf.mxu0
        %3907 = vmatprep.mubr.bf16.mxu0 0
        %3908 = vmatmul.mubr.bf16.gmra.mxu0 %v3822
        %v3909 = vpop.f32.mrf.mxu0
        %v3910 = vadd.f32 %v3789, %v3909
        %v3911 = vpop.f32.mrf.mxu0
        %v3912 = vpop.f32.mrf.mxu0
        %v3913 = vadd.f32 %v3789, %v3912
        %v3914 = vpop.f32.mrf.mxu0
        %3915 = vmatprep.mubr.bf16.mxu0 0
        %3916 = vmatmul.mubr.bf16.gmra.mxu0 %v3825
        %v3917 = vpop.f32.mrf.mxu0
        %v3918 = vadd.f32 %v3789, %v3917
        %v3919 = vpop.f32.mrf.mxu0
        %v3920 = vpop.f32.mrf.mxu0
        %v3921 = vadd.f32 %v3789, %v3920
        %v3922 = vpop.f32.mrf.mxu0
        %3923 = vdwg.mxu0
        %v3924 = vmax.f32 %v3862, 0.0
        %v3925 = vmax.f32 %v3865, 0.0
        %v3926 = vmax.f32 %v3870, 0.0
        %v3927 = vmax.f32 %v3873, 0.0
        %v3928 = vmax.f32 %v3878, 0.0
        %v3929 = vmax.f32 %v3881, 0.0
        %v3930 = vmax.f32 %v3886, 0.0
        %v3931 = vmax.f32 %v3889, 0.0
        %v3932 = vmax.f32 %v3894, 0.0
        %v3933 = vmax.f32 %v3897, 0.0
        %v3934 = vmax.f32 %v3902, 0.0
        %v3935 = vmax.f32 %v3905, 0.0
        %v3936 = vmax.f32 %v3910, 0.0
        %v3937 = vmax.f32 %v3913, 0.0
        %v3938 = vmax.f32 %v3918, 0.0
        %v3939 = vmax.f32 %v3921, 0.0
        %v3940 = vpack.c.bf16 %v3925, %v3924
        %v3941 = vpack.c.bf16 %v3927, %v3926
        %v3942 = vpack.c.bf16 %v3929, %v3928
        %v3943 = vpack.c.bf16 %v3931, %v3930
        %v3944 = vpack.c.bf16 %v3933, %v3932
        %v3945 = vpack.c.bf16 %v3935, %v3934
        %v3946 = vpack.c.bf16 %v3937, %v3936
        %v3947 = vpack.c.bf16 %v3939, %v3938
        %v3948 = vld [vmem:[%s12] sm:$0xf]
        %v3949 = vld [vmem:[%s12 + $0x4] sm:$0xf]
        %v3950 = vld [vmem:[%s12 + $0x8] sm:$0xf]
        %v3951 = vld [vmem:[%s12 + $0xc] sm:$0xf]
        %v3952 = vld [vmem:[%s13] sm:$0x1]
        %v3954 = vlaneseq
        %v3955 = vshrl.u32 %v3954, 7
        %v3956 = vsub.s32 0, %v3955
        %v3957 = vrot.slane %v3952, %v3956
        %v3963 = vunpack.c.l.b16 %v3948
        %v3964 = vunpack.c.l.b16 %v3949
        %v3965 = vunpack.c.l.b16 %v3950
        %v3966 = vunpack.c.l.b16 %v3951
        %v3967 = vpack.c.b16 %v3964, %v3963
        %v3968 = vpack.c.b16 %v3966, %v3965
        %v3972 = vsel %vm923, %v3940, 0
        %v3975 = vsel %vm923, %v3941, 0
        %v3978 = vsel %vm923, %v3942, 0
        %v3981 = vsel %vm923, %v3943, 0
        %v3984 = vsel %vm923, %v3944, 0
        %v3987 = vsel %vm923, %v3945, 0
        %v3990 = vsel %vm923, %v3946, 0
        %v3993 = vsel %vm923, %v3947, 0
        %3995 = vmatprep.subr.bf16.mxu0 0
        %3996 = vmatpush1.bf16.msra.mxu0 0
        %3997 = vmatprep.subr.bf16.mxu0 0
        %3998 = vmatpush1.bf16.msra.mxu0 0
        %3999 = vmatprep.subr.bf16.mxu0 0
        %4000 = vmatpush1.bf16.msra.mxu0 0
        %4001 = vmatprep.subr.bf16.mxu0 0
        %4002 = vmatpush1.bf16.msra.mxu0 0
        %4003 = vmatprep.subr.bf16.mxu0 0
        %4004 = vmatpush1.bf16.msra.mxu0 0
        %4005 = vmatprep.subr.bf16.mxu0 0
        %4006 = vmatpush1.bf16.msra.mxu0 0
        %4007 = vmatprep.subr.bf16.mxu0 0
        %4008 = vmatpush1.bf16.msra.mxu0 %v3968
        %4009 = vmatprep.subr.bf16.mxu0 0
        %4010 = vmatpush1.bf16.msra.mxu0 %v3967
        %4011 = vmatprep.subr.bf16.mxu0 0
        %4012 = vmatpush2.bf16.msra.mxu0 0
        %4013 = vmatprep.subr.bf16.mxu0 0
        %4014 = vmatpush2.bf16.msra.mxu0 0
        %4015 = vmatprep.subr.bf16.mxu0 0
        %4016 = vmatpush2.bf16.msra.mxu0 0
        %4017 = vmatprep.subr.bf16.mxu0 0
        %4018 = vmatpush2.bf16.msra.mxu0 0
        %4019 = vmatprep.subr.bf16.mxu0 0
        %4020 = vmatpush2.bf16.msra.mxu0 0
        %4021 = vmatprep.subr.bf16.mxu0 0
        %4022 = vmatpush2.bf16.msra.mxu0 0
        %4023 = vmatprep.subr.bf16.mxu0 0
        %4024 = vmatpush2.bf16.msra.mxu0 0
        %4025 = vmatprep.subr.bf16.mxu0 0
        %4026 = vmatpush2.bf16.msra.mxu0 0
        %4027 = vmatprep.mubr.bf16.mxu0 0
        %4028 = vmatmul.mubr.bf16.gmra.mxu0 %v3972
        %v4029 = vpop.f32.mrf.mxu0
        %v4030 = vadd.f32 %v3957, %v4029
        %v4031 = vpop.f32.mrf.mxu0
        %v4032 = vpop.f32.mrf.mxu0
        %v4033 = vadd.f32 %v3957, %v4032
        %v4034 = vpop.f32.mrf.mxu0
        %4035 = vmatprep.mubr.bf16.mxu0 0
        %4036 = vmatmul.mubr.bf16.gmra.mxu0 %v3975
        %v4037 = vpop.f32.mrf.mxu0
        %v4038 = vadd.f32 %v3957, %v4037
        %v4039 = vpop.f32.mrf.mxu0
        %v4040 = vpop.f32.mrf.mxu0
        %v4041 = vadd.f32 %v3957, %v4040
        %v4042 = vpop.f32.mrf.mxu0
        %4043 = vmatprep.mubr.bf16.mxu0 0
        %4044 = vmatmul.mubr.bf16.gmra.mxu0 %v3978
        %v4045 = vpop.f32.mrf.mxu0
        %v4046 = vadd.f32 %v3957, %v4045
        %v4047 = vpop.f32.mrf.mxu0
        %v4048 = vpop.f32.mrf.mxu0
        %v4049 = vadd.f32 %v3957, %v4048
        %v4050 = vpop.f32.mrf.mxu0
        %4051 = vmatprep.mubr.bf16.mxu0 0
        %4052 = vmatmul.mubr.bf16.gmra.mxu0 %v3981
        %v4053 = vpop.f32.mrf.mxu0
        %v4054 = vadd.f32 %v3957, %v4053
        %v4055 = vpop.f32.mrf.mxu0
        %v4056 = vpop.f32.mrf.mxu0
        %v4057 = vadd.f32 %v3957, %v4056
        %v4058 = vpop.f32.mrf.mxu0
        %4059 = vmatprep.mubr.bf16.mxu0 0
        %4060 = vmatmul.mubr.bf16.gmra.mxu0 %v3984
        %v4061 = vpop.f32.mrf.mxu0
        %v4062 = vadd.f32 %v3957, %v4061
        %v4063 = vpop.f32.mrf.mxu0
        %v4064 = vpop.f32.mrf.mxu0
        %v4065 = vadd.f32 %v3957, %v4064
        %v4066 = vpop.f32.mrf.mxu0
        %4067 = vmatprep.mubr.bf16.mxu0 0
        %4068 = vmatmul.mubr.bf16.gmra.mxu0 %v3987
        %v4069 = vpop.f32.mrf.mxu0
        %v4070 = vadd.f32 %v3957, %v4069
        %v4071 = vpop.f32.mrf.mxu0
        %v4072 = vpop.f32.mrf.mxu0
        %v4073 = vadd.f32 %v3957, %v4072
        %v4074 = vpop.f32.mrf.mxu0
        %4075 = vmatprep.mubr.bf16.mxu0 0
        %4076 = vmatmul.mubr.bf16.gmra.mxu0 %v3990
        %v4077 = vpop.f32.mrf.mxu0
        %v4078 = vadd.f32 %v3957, %v4077
        %v4079 = vpop.f32.mrf.mxu0
        %v4080 = vpop.f32.mrf.mxu0
        %v4081 = vadd.f32 %v3957, %v4080
        %v4082 = vpop.f32.mrf.mxu0
        %4083 = vmatprep.mubr.bf16.mxu0 0
        %4084 = vmatmul.mubr.bf16.gmra.mxu0 %v3993
        %v4085 = vpop.f32.mrf.mxu0
        %v4086 = vadd.f32 %v3957, %v4085
        %v4087 = vpop.f32.mrf.mxu0
        %v4088 = vpop.f32.mrf.mxu0
        %v4089 = vadd.f32 %v3957, %v4088
        %v4090 = vpop.f32.mrf.mxu0
        %4091 = vdwg.mxu0
        %v4092 = vxor.u32 %v4030, 2147483648
        %v4093 = vxor.u32 %v4033, 2147483648
        %v4094 = vxor.u32 %v4038, 2147483648
        %v4095 = vxor.u32 %v4041, 2147483648
        %v4096 = vxor.u32 %v4046, 2147483648
        %v4097 = vxor.u32 %v4049, 2147483648
        %v4098 = vxor.u32 %v4054, 2147483648
        %v4099 = vxor.u32 %v4057, 2147483648
        %v4100 = vxor.u32 %v4062, 2147483648
        %v4101 = vxor.u32 %v4065, 2147483648
        %v4102 = vxor.u32 %v4070, 2147483648
        %v4103 = vxor.u32 %v4073, 2147483648
        %v4104 = vxor.u32 %v4078, 2147483648
        %v4105 = vxor.u32 %v4081, 2147483648
        %v4106 = vxor.u32 %v4086, 2147483648
        %v4107 = vxor.u32 %v4089, 2147483648
        %v4108 = vmul.f32 %v4092, 1.442695
        %v4109 = vpow.pop %v4108
        %v4110 = vmul.f32 %v4093, 1.442695
        %v4111 = vpow.pop %v4110
        %v4112 = vmul.f32 %v4094, 1.442695
        %v4113 = vpow.pop %v4112
        %v4114 = vmul.f32 %v4095, 1.442695
        %v4115 = vpow.pop %v4114
        %v4116 = vmul.f32 %v4096, 1.442695
        %v4117 = vpow.pop %v4116
        %v4118 = vmul.f32 %v4097, 1.442695
        %v4119 = vpow.pop %v4118
        %v4120 = vmul.f32 %v4098, 1.442695
        %v4121 = vpow.pop %v4120
        %v4122 = vmul.f32 %v4099, 1.442695
        %v4123 = vpow.pop %v4122
        %v4124 = vmul.f32 %v4100, 1.442695
        %v4125 = vpow.pop %v4124
        %v4126 = vmul.f32 %v4101, 1.442695
        %v4127 = vpow.pop %v4126
        %v4128 = vmul.f32 %v4102, 1.442695
        %v4129 = vpow.pop %v4128
        %v4130 = vmul.f32 %v4103, 1.442695
        %v4131 = vpow.pop %v4130
        %v4132 = vmul.f32 %v4104, 1.442695
        %v4133 = vpow.pop %v4132
        %v4134 = vmul.f32 %v4105, 1.442695
        %v4135 = vpow.pop %v4134
        %v4136 = vmul.f32 %v4106, 1.442695
        %v4137 = vpow.pop %v4136
        %v4138 = vmul.f32 %v4107, 1.442695
        %v4139 = vpow.pop %v4138
        %v4140 = vadd.f32 %v4109, 1.0
        %v4141 = vadd.f32 %v4111, 1.0
        %v4142 = vadd.f32 %v4113, 1.0
        %v4143 = vadd.f32 %v4115, 1.0
        %v4144 = vadd.f32 %v4117, 1.0
        %v4145 = vadd.f32 %v4119, 1.0
        %v4146 = vadd.f32 %v4121, 1.0
        %v4147 = vadd.f32 %v4123, 1.0
        %v4148 = vadd.f32 %v4125, 1.0
        %v4149 = vadd.f32 %v4127, 1.0
        %v4150 = vadd.f32 %v4129, 1.0
        %v4151 = vadd.f32 %v4131, 1.0
        %v4152 = vadd.f32 %v4133, 1.0
        %v4153 = vadd.f32 %v4135, 1.0
        %v4154 = vadd.f32 %v4137, 1.0
        %v4155 = vadd.f32 %v4139, 1.0
        %v4156 = vrcp.pop %v4140
        %v4157 = vmul.f32 1.0, %v4156
        %v4158 = vrcp.pop %v4141
        %v4159 = vmul.f32 1.0, %v4158
        %v4160 = vrcp.pop %v4142
        %v4161 = vmul.f32 1.0, %v4160
        %v4162 = vrcp.pop %v4143
        %v4163 = vmul.f32 1.0, %v4162
        %v4164 = vrcp.pop %v4144
        %v4165 = vmul.f32 1.0, %v4164
        %v4166 = vrcp.pop %v4145
        %v4167 = vmul.f32 1.0, %v4166
        %v4168 = vrcp.pop %v4146
        %v4169 = vmul.f32 1.0, %v4168
        %v4170 = vrcp.pop %v4147
        %v4171 = vmul.f32 1.0, %v4170
        %v4172 = vrcp.pop %v4148
        %v4173 = vmul.f32 1.0, %v4172
        %v4174 = vrcp.pop %v4149
        %v4175 = vmul.f32 1.0, %v4174
        %v4176 = vrcp.pop %v4150
        %v4177 = vmul.f32 1.0, %v4176
        %v4178 = vrcp.pop %v4151
        %v4179 = vmul.f32 1.0, %v4178
        %v4180 = vrcp.pop %v4152
        %v4181 = vmul.f32 1.0, %v4180
        %v4182 = vrcp.pop %v4153
        %v4183 = vmul.f32 1.0, %v4182
        %v4184 = vrcp.pop %v4154
        %v4185 = vmul.f32 1.0, %v4184
        %v4186 = vrcp.pop %v4155
        %v4187 = vmul.f32 1.0, %v4186
        %4188 = vst [vmem:[%s705] sm:$0xff] %v4157
        %4189 = vst [vmem:[%s705 + $0x8] sm:$0xff] %v4159
        %4190 = vst [vmem:[%s705 + $0x10] sm:$0xff] %v4161
        %4191 = vst [vmem:[%s705 + $0x18] sm:$0xff] %v4163
        %4192 = vst [vmem:[%s705 + $0x20] sm:$0xff] %v4165
        %4193 = vst [vmem:[%s705 + $0x28] sm:$0xff] %v4167
        %4194 = vst [vmem:[%s705 + $0x30] sm:$0xff] %v4169
        %4195 = vst [vmem:[%s705 + $0x38] sm:$0xff] %v4171
        %4196 = vst [vmem:[%s705 + $0x40] sm:$0xff] %v4173
        %4197 = vst [vmem:[%s705 + $0x48] sm:$0xff] %v4175
        %4198 = vst [vmem:[%s705 + $0x50] sm:$0xff] %v4177
        %4199 = vst [vmem:[%s705 + $0x58] sm:$0xff] %v4179
        %4200 = vst [vmem:[%s705 + $0x60] sm:$0xff] %v4181
        %4201 = vst [vmem:[%s705 + $0x68] sm:$0xff] %v4183
        %4202 = vst [vmem:[%s705 + $0x70] sm:$0xff] %v4185
        %4203 = vst [vmem:[%s705 + $0x78] sm:$0xff] %v4187
        %s4204 = sand.u32 %s340, 1
        %s4205 = scalar_lea.sflag [#allocation4], %s4204
        %s4206 = sand.u32 %s340, 1
        %s4207 = smul.addr %s4206, 128
        %s4208 = scalar_lea.vmem [#allocation3], %s4207
        // Predicated region
        $region115: #{tpu_custom_call.1} parent=109 // pred_check
          %p4209 = pneg %p350
        $region116: #{tpu_custom_call.1} parent=109 // pred_check_branch
          %4211 = sbr.rel (%p4209) target = $region118
        $region117: #{tpu_custom_call.1} parent=109 // pred_region
          %s4212 = smul.u32 16, %s28
          %s4214 = ssub.s32 2048, 2048
          %4215 = vsyncadd %s4205, %s4214
          %s4216 = smul.addr %s4212, 128
          %s4217 = scalar_lea.hbm %s14, %s4216
          %s4218 = sshll.u32 %s4208, 4
          %s4219 = int_to_ptr.vmem [resolvable:$true] %s4218
          %4224 = dma.vmem_to_hbm [thread:$0]  %s4219, 2048, %s4217, %s4205, 128, 128, 8
        $region118: #{tpu_custom_call.1} parent=109 // pred_fallthru
          _
      $region110: #{tpu_custom_call.1} parent=5 // pred_fallthru
        _
      %p4225 = scmp.le.s32.totalorder 2, %s23
      // Predicated region
      $region119: #{tpu_custom_call.1} parent=5 // pred_check
        %p4226 = pneg %p4225
      $region120: #{tpu_custom_call.1} parent=5 // pred_check_branch
        %4228 = sbr.rel (%p4226) target = $region122
      $region121: #{tpu_custom_call.1} parent=5 // pred_region
        %s4229 = ssub.s32 %s23, 2
        // Predicated region
        $region123: #{tpu_custom_call.1} parent=121 // pred_check
          %p4230 = pneg %p356
        $region124: #{tpu_custom_call.1} parent=121 // pred_check_branch
          %4232 = sbr.rel (%p4230) target = $region126
        $region125: #{tpu_custom_call.1} parent=121 // pred_region
          %s4233 = sand.u32 %s341, 1
          %s4234 = scalar_lea.sflag [#allocation4], %s4233
          %s4235 = sand.u32 %s341, 1
          %s4236 = smul.addr %s4235, 128
          %s4237 = scalar_lea.vmem [#allocation3], %s4236
          %4238 = dma.done %s4234, 2048
        $region126: #{tpu_custom_call.1} parent=121 // pred_fallthru
          _
      $region122: #{tpu_custom_call.1} parent=5 // pred_fallthru
        _
    $region6: #{tpu_custom_call.1} parent=1 // loop_footer
      %s27 = sadd.s32 1, %s23
    $region7: #{tpu_custom_call.1} parent=1 // loop_footer_branch
      %22 = sbr.rel target = $region3
    $region8: #{tpu_custom_call.1} parent=1 // loop_exit
      _
    %4239 = vsyncpa [#allocation4], 1
    %s4240 = scalar_lea.sflag [#allocation4], 1
    %4241 = vsyncpa %s4240, 1

</llo_original>
